<compile_context>
chip_gen: v7x
topology: tpu7x:2x2x1
jax: 0.10.0
libtpu: 0.0.40
codegen_flags: <defaults>
</compile_context>

<pallas_src>
import math
import functools

import jax
import jax.numpy as jnp
from jax import lax
from jax.experimental import pallas as pl
from jax.experimental.pallas import tpu as pltpu


OUT_ROWS = 8          # output rows (0,1,2 = eta, mu, sigma; 3..7 zero padding)
D1_PAD = 64           # first MLP width 60 padded to a sublane multiple
D2 = 24               # second MLP width (3 heads x 8)


# ----------------------------------------------------------------------------
# Pallas kernel (batch in lanes, hidden/gate dims in sublanes)
# ----------------------------------------------------------------------------
def impact_rnn_kernel(seq_ref,                 # (T, H, TILE_N) time-major, lane = batch
                      w_ref,                   # (6H + 64, H)  = [Wi; Wh; W1]
                      w2_ref,                  # (24, 64)
                      w3_ref,                  # (8, 24)
                      c_ref,                   # (8H + 96, 1)  packed scales/biases
                      out_ref,                 # (8, TILE_N)
                      *, max_val: float):
    T, H, TN = seq_ref.shape
    G = 3 * H

    # ---- unpack consolidated constant operands (static, 8-aligned slices) ----
    consts = c_ref[...]                               # (8H+96, 1) f32
    ln_g = consts[0:H]
    ln_b = consts[H:2 * H]
    bi = consts[2 * H:2 * H + G]
    bh = consts[2 * H + G:2 * H + 2 * G]
    off = 2 * H + 2 * G
    b1 = consts[off:off + D1_PAD]
    b2 = consts[off + D1_PAD:off + D1_PAD + D2]
    b3 = consts[off + D1_PAD + D2:off + D1_PAD + D2 + OUT_ROWS]

    wfull = w_ref[...].astype(jnp.float32)            # (6H+64, H)
    wi = wfull[0:G]                                   # (3H, H)  rows = r|z|n
    wh = wfull[G:2 * G]                               # (3H, H)
    w1 = wfull[2 * G:2 * G + D1_PAD]                  # (64, H)
    w2 = w2_ref[...].astype(jnp.float32)              # (24, 64)
    w3 = w3_ref[...].astype(jnp.float32)              # (8, 24)

    def layer_norm(x):
        # One-pass stats over the hidden (sublane) axis; eps inside rsqrt and
        # var clamped at 0 so zero-padded batch lanes stay finite.
        mean = jnp.mean(x, axis=-2, keepdims=True)
        ex2 = jnp.mean(x * x, axis=-2, keepdims=True)
        var = jnp.maximum(ex2 - mean * mean, 0.0)
        xm = x - mean
        return xm * (lax.rsqrt(var + 1e-5) * ln_g) + ln_b

    # LayerNorm of the whole sequence tile (reduction over sublane H axis).
    seq_n = layer_norm(seq_ref[...].astype(jnp.float32))          # (T, H, TN)

    # GRU recurrence (num_layers=1, h0=0).  T is tiny & static -> Python unroll.
    # gi_t does not depend on h, so only h @ Wh sits on the serial chain.
    h = jnp.zeros((H, TN), jnp.float32)
    for t in range(T):
        gi_t = jnp.dot(wi, seq_n[t], preferred_element_type=jnp.float32) + bi
        gh = jnp.dot(wh, h, preferred_element_type=jnp.float32) + bh
        # fused r/z: one 2H-wide add + sigmoid, then 8-aligned sublane splits
        s_rz = jax.nn.sigmoid(gi_t[0:2 * H] + gh[0:2 * H])
        r = s_rz[0:H]
        zg = s_rz[H:2 * H]
        n = jnp.tanh(gi_t[2 * H:G] + r * gh[2 * H:G])
        h = (1.0 - zg) * n + zg * h

    # Dropout(0.1) is identity in eval mode; second LayerNorm.
    z = layer_norm(h)                                             # (H, TN)

    # Fused three-head MLP (rows = eta | mu | sigma blocks, batch in lanes).
    h1 = jnp.maximum(jnp.dot(w1, z, preferred_element_type=jnp.float32) + b1, 0.0)
    h2 = jnp.maximum(jnp.dot(w2, h1, preferred_element_type=jnp.float32) + b2, 0.0)
    o = jnp.dot(w3, h2, preferred_element_type=jnp.float32) + b3  # (8, TN)

    # Per-row clamps written as one lane-dense (8, TN) store.
    row = lax.broadcasted_iota(jnp.int32, o.shape, 0)
    eta_mu = jnp.clip(o, -max_val, max_val)
    sigma = jnp.clip(jnp.maximum(o, 0.0) + 0.2, 0.2, max_val)
    out_ref[...] = jnp.where(row == 2, sigma, eta_mu)


# ----------------------------------------------------------------------------
# Parameter initialization (mirrors module._init_weights, kernel-friendly layout)
# ----------------------------------------------------------------------------
def _orthogonal(key, shape, gain):
    rows, cols = shape
    a = jax.random.normal(key, (rows, cols), jnp.float32)
    q, r = jnp.linalg.qr(a)
    d = jnp.sign(jnp.diagonal(r))
    return gain * (q * d[None, :])


def _xavier_uniform(key, shape, gain):
    fan_out, fan_in = shape                  # torch Linear weight is [out, in]
    bound = gain * math.sqrt(6.0 / (fan_in + fan_out))
    return jax.random.uniform(key, shape, jnp.float32, -bound, bound)


def init_params(key, hidden_dim):
    H = hidden_dim
    gru_gain = min(0.1, 1.0 / math.sqrt(H))
    mlp_gain = min(0.1, 1.0 / math.sqrt(H))
    keys = jax.random.split(key, 16)

    # GRU: torch layout weight_ih_l0 [3H, H], gate order (r, z, n) — used as-is
    # because the kernel computes W @ x with batch in lanes.
    params = {
        "ln_g": jnp.ones((H, 1), jnp.float32),
        "ln_b": jnp.zeros((H, 1), jnp.float32),
        "wi": _orthogonal(keys[0], (3 * H, H), gru_gain),
        "wh": _orthogonal(keys[1], (3 * H, H), gru_gain),
        "bi": jnp.full((3 * H, 1), 0.01, jnp.float32),
        "bh": jnp.full((3 * H, 1), 0.01, jnp.float32),
    }

    gains = {"eta": mlp_gain * 0.5, "mu": mlp_gain, "sigma": mlp_gain * 1.5}
    bias_consts = {"eta": 0.1, "mu": 0.0, "sigma": 0.2}

    w1_rows, b1_rows, w2_blocks, b2_rows, w3_blocks, b3_rows = [], [], [], [], [], []
    ki = 2
    for name in ("eta", "mu", "sigma"):
        g, bc = gains[name], bias_consts[name]
        W1 = _xavier_uniform(keys[ki], (20, H), g); ki += 1
        W2 = _xavier_uniform(keys[ki], (8, 20), g); ki += 1
        W3 = _xavier_uniform(keys[ki], (1, 8), g); ki += 1
        w1_rows.append(W1); b1_rows.append(jnp.full((20, 1), bc, jnp.float32))
        w2_blocks.append(W2); b2_rows.append(jnp.full((8, 1), bc, jnp.float32))
        w3_blocks.append(W3); b3_rows.append(jnp.full((1, 1), bc, jnp.float32))

    w1 = jnp.concatenate(w1_rows, axis=0)                   # (60, H)
    b1 = jnp.concatenate(b1_rows, axis=0)                   # (60, 1)
    w2 = jax.scipy.linalg.block_diag(*w2_blocks)            # (24, 60)
    b2 = jnp.concatenate(b2_rows, axis=0)                   # (24, 1)
    w3 = jax.scipy.linalg.block_diag(*w3_blocks)            # (3, 24)
    b3 = jnp.concatenate(b3_rows, axis=0)                   # (3, 1)

    # Pad head dims to sublane multiples of 8.  Padding is exact zeros, which
    # is what keeps rows 3..7 of the output slab inert.
    params["w1"] = jnp.pad(w1, ((0, D1_PAD - 60), (0, 0)))  # (64, H)
    params["b1"] = jnp.pad(b1, ((0, D1_PAD - 60), (0, 0)))  # (64, 1)
    params["w2"] = jnp.pad(w2, ((0, 0), (0, D1_PAD - 60)))  # (24, 64)
    params["b2"] = b2                                       # (24, 1)
    params["w3"] = jnp.pad(w3, ((0, OUT_ROWS - 3), (0, 0))) # (8, 24)
    params["b3"] = jnp.pad(b3, ((0, OUT_ROWS - 3), (0, 0))) # (8, 1)
    return params


# ----------------------------------------------------------------------------
# Wrapper
# ----------------------------------------------------------------------------
def _choose_tile_n(N, max_tile=512):
    """Lane tile: multiple of 128, capped, and >=2 grid steps when N allows
    (so v7x dual-TC can shard the 'parallel' batch axis)."""
    n128 = -(-N // 128)
    if n128 <= 1:
        return 128
    return int(min(max_tile, 128 * max(1, n128 // 2)))


def impact_rnn_forward(seq, params, *, tile_n=None, storage_dtype=jnp.float32,
                       max_tile_n=512):
    N, T, H = seq.shape
    if H % 8 != 0:
        raise ValueError("hidden_dim must be a multiple of 8")
    max_val = 8.0 / math.sqrt(H / 8.0)

    if tile_n is None:
        tile_n = _choose_tile_n(N, max_tile_n)
    n_pad = pl.cdiv(N, tile_n) * tile_n

    # Time-major, lane-dense layout: (T, H, N) so the batch tile rides in lanes
    # and the HBM->VMEM DMA of the seq block is contiguous.
    seq_t = jnp.transpose(seq, (1, 2, 0)).astype(storage_dtype)   # (T, H, N)
    if n_pad != N:
        seq_t = jnp.pad(seq_t, ((0, 0), (0, 0), (0, n_pad - N)))

    # Consolidated operands: [Wi;Wh;W1] share the H-column width; all small
    # bias/scale vectors go into one (8H+96, 1) array (segments 8-row aligned).
    wfused = jnp.concatenate([params["wi"], params["wh"], params["w1"]],
                             axis=0).astype(storage_dtype)        # (6H+64, H)
    w2 = params["w2"].astype(storage_dtype)                       # (24, 64)
    w3 = params["w3"].astype(storage_dtype)                       # (8, 24)
    consts = jnp.concatenate(
        [params["ln_g"], params["ln_b"], params["bi"], params["bh"],
         params["b1"], params["b2"], params["b3"]], axis=0)       # (8H+96, 1) f32

    grid = (n_pad // tile_n,)
    in_specs = [
        pl.BlockSpec((T, H, tile_n), lambda i: (0, 0, i)),
        pl.BlockSpec(wfused.shape, lambda i: (0, 0)),
        pl.BlockSpec(w2.shape, lambda i: (0, 0)),
        pl.BlockSpec(w3.shape, lambda i: (0, 0)),
        pl.BlockSpec(consts.shape, lambda i: (0, 0)),
    ]
    out_specs = pl.BlockSpec((OUT_ROWS, tile_n), lambda i: (0, i))

    itemsize = jnp.dtype(storage_dtype).itemsize
    flops = int(4 * T * 3 * H * H * n_pad                         # gi + gh matmuls
                + 2 * n_pad * (D1_PAD * H + D2 * D1_PAD + OUT_ROWS * D2))
    transcendentals = int(n_pad * (T * 3 * H + 2))                # sigmoid/tanh/rsqrt
    bytes_accessed = int(itemsize * (seq_t.size + wfused.size + w2.size + w3.size)
                         + 4 * (consts.size + OUT_ROWS * n_pad))

    out = pl.pallas_call(
        functools.partial(impact_rnn_kernel, max_val=max_val),
        out_shape=jax.ShapeDtypeStruct((OUT_ROWS, n_pad), jnp.float32),
        grid=grid,
        in_specs=in_specs,
        out_specs=out_specs,
        compiler_params=pltpu.CompilerParams(
            dimension_semantics=("parallel",)),
        cost_estimate=pl.CostEstimate(flops=flops,
                                      transcendentals=transcendentals,
                                      bytes_accessed=bytes_accessed),
    )(seq_t, wfused, w2, w3, consts)

    # rows 0/1/2 = eta/mu/sigma; wrapper slice mirrors squeeze(-1) in the module
    return out[0, :N], out[1, :N], out[2, :N]


# ----------------------------------------------------------------------------
# Pure-JAX reference (correctness check only)
# ----------------------------------------------------------------------------
def reference_forward(seq, params):
    N, T, H = seq.shape
    max_val = 8.0 / math.sqrt(H / 8.0)
    hp = lax.Precision.HIGHEST
    g, b = params["ln_g"][:, 0], params["ln_b"][:, 0]

    def ln(x):
        m = jnp.mean(x, -1, keepdims=True)
        v = jnp.mean((x - m) ** 2, -1, keepdims=True)
        return (x - m) / jnp.sqrt(v + 1e-5) * g + b

    x = ln(seq.astype(jnp.float32))
    wi, wh = params["wi"], params["wh"]
    bi, bh = params["bi"][:, 0], params["bh"][:, 0]
    h = jnp.zeros((N, H), jnp.float32)
    for t in range(T):
        gi = jnp.dot(x[:, t, :], wi.T, precision=hp) + bi
        gh = jnp.dot(h, wh.T, precision=hp) + bh
        r = jax.nn.sigmoid(gi[:, :H] + gh[:, :H])
        zg = jax.nn.sigmoid(gi[:, H:2 * H] + gh[:, H:2 * H])
        n = jnp.tanh(gi[:, 2 * H:] + r * gh[:, 2 * H:])
        h = (1.0 - zg) * n + zg * h
    z = ln(h)
    h1 = jnp.maximum(jnp.dot(z, params["w1"].T, precision=hp) + params["b1"][:, 0], 0.0)
    h2 = jnp.maximum(jnp.dot(h1, params["w2"].T, precision=hp) + params["b2"][:, 0], 0.0)
    o = jnp.dot(h2, params["w3"].T, precision=hp) + params["b3"][:, 0]
    eta = jnp.clip(o[:, 0], -max_val, max_val)
    mu = jnp.clip(o[:, 1], -max_val, max_val)
    sigma = jnp.clip(jnp.maximum(o[:, 2], 0.0) + 0.2, 0.2, max_val)
    return eta, mu, sigma


# ----------------------------------------------------------------------------
if __name__ == "__main__":
    N, T, H = 2, 6, 32          # input [N, 6, H] per the module docstring
    key = jax.random.PRNGKey(0)
    k_seq, k_params = jax.random.split(key)

    seq = jax.random.normal(k_seq, (N, T, H), jnp.float32)
    params = init_params(k_params, H)

    # TODO(synk): pass storage_dtype=jnp.bfloat16 on v6e/v7x for halved seq/weight
    # HBM traffic (f32 accumulation is preserved in-kernel); f32 here keeps the
    # check against the f32 reference tight on all generations (incl. v5e).
    eta, mu, sigma = impact_rnn_forward(seq, params)
    jax.block_until_ready((eta, mu, sigma))

    eta_r, mu_r, sigma_r = reference_forward(seq, params)
    assert jnp.allclose(eta, eta_r, atol=1e-3, rtol=1e-3)
    assert jnp.allclose(mu, mu_r, atol=1e-3, rtol=1e-3)
    assert jnp.allclose(sigma, sigma_r, atol=1e-3, rtol=1e-3)

    print("KERNEL_OK")
</pallas_src>

<mosaic_0001>
module attributes {stable_mosaic.version = 11 : i64} {
  func.func @impact_rnn_kernel(%arg0: i32, %arg1: memref<6x32x128xf32, #tpu.memory_space<vmem>>, %arg2: memref<256x32xf32, #tpu.memory_space<vmem>>, %arg3: memref<24x64xf32, #tpu.memory_space<vmem>>, %arg4: memref<8x24xf32, #tpu.memory_space<vmem>>, %arg5: memref<352x1xf32, #tpu.memory_space<vmem>>, %arg6: memref<8x128xf32, #tpu.memory_space<vmem>>) attributes {dimension_semantics = [#tpu.dimension_semantics<parallel>], iteration_bounds = array<i64: 1>, scalar_prefetch = 0 : i64, scratch_operands = 0 : i64, tpu.core_type = #tpu.core_type<tc>, window_params = [{transform_indices = @transform_0, window_bounds = array<i64: 6, 32, 128>}, {pipeline_mode = #tpu.pipeline_mode<synchronous>, transform_indices = @transform_1, window_bounds = array<i64: 256, 32>}, {pipeline_mode = #tpu.pipeline_mode<synchronous>, transform_indices = @transform_2, window_bounds = array<i64: 24, 64>}, {pipeline_mode = #tpu.pipeline_mode<synchronous>, transform_indices = @transform_3, window_bounds = array<i64: 8, 24>}, {pipeline_mode = #tpu.pipeline_mode<synchronous>, transform_indices = @transform_4, window_bounds = array<i64: 352, 1>}, {transform_indices = @transform_5, window_bounds = array<i64: 8, 128>}]} {
    %c0 = arith.constant 0 : index
    %c0_0 = arith.constant 0 : index
    %0 = vector.load %arg5[%c0, %c0_0] : memref<352x1xf32, #tpu.memory_space<vmem>>, vector<352x1xf32>
    %1 = vector.extract_strided_slice %0 {offsets = [0, 0], sizes = [32, 1], strides = [1, 1]} : vector<352x1xf32> to vector<32x1xf32>
    %2 = vector.extract_strided_slice %0 {offsets = [32, 0], sizes = [32, 1], strides = [1, 1]} : vector<352x1xf32> to vector<32x1xf32>
    %3 = vector.extract_strided_slice %0 {offsets = [64, 0], sizes = [96, 1], strides = [1, 1]} : vector<352x1xf32> to vector<96x1xf32>
    %4 = vector.extract_strided_slice %0 {offsets = [160, 0], sizes = [96, 1], strides = [1, 1]} : vector<352x1xf32> to vector<96x1xf32>
    %5 = vector.extract_strided_slice %0 {offsets = [256, 0], sizes = [64, 1], strides = [1, 1]} : vector<352x1xf32> to vector<64x1xf32>
    %6 = vector.extract_strided_slice %0 {offsets = [320, 0], sizes = [24, 1], strides = [1, 1]} : vector<352x1xf32> to vector<24x1xf32>
    %7 = vector.extract_strided_slice %0 {offsets = [344, 0], sizes = [8, 1], strides = [1, 1]} : vector<352x1xf32> to vector<8x1xf32>
    %c0_1 = arith.constant 0 : index
    %c0_2 = arith.constant 0 : index
    %8 = vector.load %arg2[%c0_1, %c0_2] : memref<256x32xf32, #tpu.memory_space<vmem>>, vector<256x32xf32>
    %9 = vector.extract_strided_slice %8 {offsets = [0, 0], sizes = [96, 32], strides = [1, 1]} : vector<256x32xf32> to vector<96x32xf32>
    %10 = vector.extract_strided_slice %8 {offsets = [96, 0], sizes = [96, 32], strides = [1, 1]} : vector<256x32xf32> to vector<96x32xf32>
    %11 = vector.extract_strided_slice %8 {offsets = [192, 0], sizes = [64, 32], strides = [1, 1]} : vector<256x32xf32> to vector<64x32xf32>
    %c0_3 = arith.constant 0 : index
    %c0_4 = arith.constant 0 : index
    %12 = vector.load %arg3[%c0_3, %c0_4] : memref<24x64xf32, #tpu.memory_space<vmem>>, vector<24x64xf32>
    %c0_5 = arith.constant 0 : index
    %c0_6 = arith.constant 0 : index
    %13 = vector.load %arg4[%c0_5, %c0_6] : memref<8x24xf32, #tpu.memory_space<vmem>>, vector<8x24xf32>
    %c0_7 = arith.constant 0 : index
    %c0_8 = arith.constant 0 : index
    %c0_9 = arith.constant 0 : index
    %14 = vector.load %arg1[%c0_7, %c0_8, %c0_9] : memref<6x32x128xf32, #tpu.memory_space<vmem>>, vector<6x32x128xf32>
    %cst = arith.constant dense<0.000000e+00> : vector<6x128xf32>
    %15 = vector.multi_reduction <add>, %14, %cst [1] : vector<6x32x128xf32> to vector<6x128xf32>
    %16 = vector.shape_cast %15 : vector<6x128xf32> to vector<6x1x128xf32>
    %cst_10 = arith.constant 3.200000e+01 : f32
    %17 = vector.broadcast %cst_10 : f32 to vector<6x1x128xf32>
    %18 = arith.divf %16, %17 : vector<6x1x128xf32>
    %19 = arith.mulf %14, %14 : vector<6x32x128xf32>
    %cst_11 = arith.constant dense<0.000000e+00> : vector<6x128xf32>
    %20 = vector.multi_reduction <add>, %19, %cst_11 [1] : vector<6x32x128xf32> to vector<6x128xf32>
    %21 = vector.shape_cast %20 : vector<6x128xf32> to vector<6x1x128xf32>
    %cst_12 = arith.constant 3.200000e+01 : f32
    %22 = vector.broadcast %cst_12 : f32 to vector<6x1x128xf32>
    %23 = arith.divf %21, %22 : vector<6x1x128xf32>
    %24 = arith.mulf %18, %18 : vector<6x1x128xf32>
    %25 = arith.subf %23, %24 : vector<6x1x128xf32>
    %cst_13 = arith.constant 0.000000e+00 : f32
    %26 = vector.broadcast %cst_13 : f32 to vector<6x1x128xf32>
    %27 = arith.maximumf %25, %26 : vector<6x1x128xf32>
    %28 = vector.broadcast %18 : vector<6x1x128xf32> to vector<6x32x128xf32>
    %29 = arith.subf %14, %28 : vector<6x32x128xf32>
    %cst_14 = arith.constant 9.99999974E-6 : f32
    %30 = vector.broadcast %cst_14 : f32 to vector<6x1x128xf32>
    %31 = arith.addf %27, %30 : vector<6x1x128xf32>
    %32 = math.rsqrt %31 : vector<6x1x128xf32>
    %33 = vector.shape_cast %1 : vector<32x1xf32> to vector<1x32x1xf32>
    %34 = vector.broadcast %32 : vector<6x1x128xf32> to vector<6x32x128xf32>
    %35 = vector.broadcast %33 : vector<1x32x1xf32> to vector<6x32x128xf32>
    %36 = arith.mulf %34, %35 : vector<6x32x128xf32>
    %37 = arith.mulf %29, %36 : vector<6x32x128xf32>
    %38 = vector.shape_cast %2 : vector<32x1xf32> to vector<1x32x1xf32>
    %39 = vector.broadcast %38 : vector<1x32x1xf32> to vector<6x32x128xf32>
    %40 = arith.addf %37, %39 : vector<6x32x128xf32>
    %cst_15 = arith.constant 0.000000e+00 : f32
    %41 = vector.broadcast %cst_15 : f32 to vector<32x128xf32>
    %42 = vector.extract_strided_slice %40 {offsets = [0, 0, 0], sizes = [1, 32, 128], strides = [1, 1, 1]} : vector<6x32x128xf32> to vector<1x32x128xf32>
    %43 = vector.shape_cast %42 : vector<1x32x128xf32> to vector<32x128xf32>
    %cst_16 = arith.constant dense<0.000000e+00> : vector<96x128xf32>
    %44 = tpu.matmul %9, %43, %cst_16 {dimension_numbers = #tpu.dot_dimension_numbers<[1], [0], [0], [1], [0, 0, 1, 1], [], []>} : vector<96x32xf32>, vector<32x128xf32>, vector<96x128xf32> -> vector<96x128xf32>
    %45 = vector.broadcast %3 : vector<96x1xf32> to vector<96x128xf32>
    %46 = arith.addf %44, %45 : vector<96x128xf32>
    %cst_17 = arith.constant dense<0.000000e+00> : vector<96x128xf32>
    %47 = tpu.matmul %10, %41, %cst_17 {dimension_numbers = #tpu.dot_dimension_numbers<[1], [0], [0], [1], [0, 0, 1, 1], [], []>} : vector<96x32xf32>, vector<32x128xf32>, vector<96x128xf32> -> vector<96x128xf32>
    %48 = vector.broadcast %4 : vector<96x1xf32> to vector<96x128xf32>
    %49 = arith.addf %47, %48 : vector<96x128xf32>
    %50 = vector.extract_strided_slice %46 {offsets = [0, 0], sizes = [64, 128], strides = [1, 1]} : vector<96x128xf32> to vector<64x128xf32>
    %51 = vector.extract_strided_slice %49 {offsets = [0, 0], sizes = [64, 128], strides = [1, 1]} : vector<96x128xf32> to vector<64x128xf32>
    %52 = arith.addf %50, %51 : vector<64x128xf32>
    %53 = arith.negf %52 : vector<64x128xf32>
    %54 = math.exp %53 : vector<64x128xf32>
    %cst_18 = arith.constant 1.000000e+00 : f32
    %55 = vector.broadcast %cst_18 : f32 to vector<64x128xf32>
    %56 = arith.addf %55, %54 : vector<64x128xf32>
    %57 = arith.divf %55, %56 : vector<64x128xf32>
    %58 = vector.extract_strided_slice %57 {offsets = [0, 0], sizes = [32, 128], strides = [1, 1]} : vector<64x128xf32> to vector<32x128xf32>
    %59 = vector.extract_strided_slice %57 {offsets = [32, 0], sizes = [32, 128], strides = [1, 1]} : vector<64x128xf32> to vector<32x128xf32>
    %60 = vector.extract_strided_slice %46 {offsets = [64, 0], sizes = [32, 128], strides = [1, 1]} : vector<96x128xf32> to vector<32x128xf32>
    %61 = vector.extract_strided_slice %49 {offsets = [64, 0], sizes = [32, 128], strides = [1, 1]} : vector<96x128xf32> to vector<32x128xf32>
    %62 = arith.mulf %58, %61 : vector<32x128xf32>
    %63 = arith.addf %60, %62 : vector<32x128xf32>
    %64 = math.tanh %63 : vector<32x128xf32>
    %cst_19 = arith.constant 1.000000e+00 : f32
    %65 = vector.broadcast %cst_19 : f32 to vector<32x128xf32>
    %66 = arith.subf %65, %59 : vector<32x128xf32>
    %67 = arith.mulf %66, %64 : vector<32x128xf32>
    %68 = arith.mulf %59, %41 : vector<32x128xf32>
    %69 = arith.addf %67, %68 : vector<32x128xf32>
    %70 = vector.extract_strided_slice %40 {offsets = [1, 0, 0], sizes = [1, 32, 128], strides = [1, 1, 1]} : vector<6x32x128xf32> to vector<1x32x128xf32>
    %71 = vector.shape_cast %70 : vector<1x32x128xf32> to vector<32x128xf32>
    %cst_20 = arith.constant dense<0.000000e+00> : vector<96x128xf32>
    %72 = tpu.matmul %9, %71, %cst_20 {dimension_numbers = #tpu.dot_dimension_numbers<[1], [0], [0], [1], [0, 0, 1, 1], [], []>} : vector<96x32xf32>, vector<32x128xf32>, vector<96x128xf32> -> vector<96x128xf32>
    %73 = vector.broadcast %3 : vector<96x1xf32> to vector<96x128xf32>
    %74 = arith.addf %72, %73 : vector<96x128xf32>
    %cst_21 = arith.constant dense<0.000000e+00> : vector<96x128xf32>
    %75 = tpu.matmul %10, %69, %cst_21 {dimension_numbers = #tpu.dot_dimension_numbers<[1], [0], [0], [1], [0, 0, 1, 1], [], []>} : vector<96x32xf32>, vector<32x128xf32>, vector<96x128xf32> -> vector<96x128xf32>
    %76 = vector.broadcast %4 : vector<96x1xf32> to vector<96x128xf32>
    %77 = arith.addf %75, %76 : vector<96x128xf32>
    %78 = vector.extract_strided_slice %74 {offsets = [0, 0], sizes = [64, 128], strides = [1, 1]} : vector<96x128xf32> to vector<64x128xf32>
    %79 = vector.extract_strided_slice %77 {offsets = [0, 0], sizes = [64, 128], strides = [1, 1]} : vector<96x128xf32> to vector<64x128xf32>
    %80 = arith.addf %78, %79 : vector<64x128xf32>
    %81 = arith.negf %80 : vector<64x128xf32>
    %82 = math.exp %81 : vector<64x128xf32>
    %cst_22 = arith.constant 1.000000e+00 : f32
    %83 = vector.broadcast %cst_22 : f32 to vector<64x128xf32>
    %84 = arith.addf %83, %82 : vector<64x128xf32>
    %85 = arith.divf %83, %84 : vector<64x128xf32>
    %86 = vector.extract_strided_slice %85 {offsets = [0, 0], sizes = [32, 128], strides = [1, 1]} : vector<64x128xf32> to vector<32x128xf32>
    %87 = vector.extract_strided_slice %85 {offsets = [32, 0], sizes = [32, 128], strides = [1, 1]} : vector<64x128xf32> to vector<32x128xf32>
    %88 = vector.extract_strided_slice %74 {offsets = [64, 0], sizes = [32, 128], strides = [1, 1]} : vector<96x128xf32> to vector<32x128xf32>
    %89 = vector.extract_strided_slice %77 {offsets = [64, 0], sizes = [32, 128], strides = [1, 1]} : vector<96x128xf32> to vector<32x128xf32>
    %90 = arith.mulf %86, %89 : vector<32x128xf32>
    %91 = arith.addf %88, %90 : vector<32x128xf32>
    %92 = math.tanh %91 : vector<32x128xf32>
    %cst_23 = arith.constant 1.000000e+00 : f32
    %93 = vector.broadcast %cst_23 : f32 to vector<32x128xf32>
    %94 = arith.subf %93, %87 : vector<32x128xf32>
    %95 = arith.mulf %94, %92 : vector<32x128xf32>
    %96 = arith.mulf %87, %69 : vector<32x128xf32>
    %97 = arith.addf %95, %96 : vector<32x128xf32>
    %98 = vector.extract_strided_slice %40 {offsets = [2, 0, 0], sizes = [1, 32, 128], strides = [1, 1, 1]} : vector<6x32x128xf32> to vector<1x32x128xf32>
    %99 = vector.shape_cast %98 : vector<1x32x128xf32> to vector<32x128xf32>
    %cst_24 = arith.constant dense<0.000000e+00> : vector<96x128xf32>
    %100 = tpu.matmul %9, %99, %cst_24 {dimension_numbers = #tpu.dot_dimension_numbers<[1], [0], [0], [1], [0, 0, 1, 1], [], []>} : vector<96x32xf32>, vector<32x128xf32>, vector<96x128xf32> -> vector<96x128xf32>
    %101 = vector.broadcast %3 : vector<96x1xf32> to vector<96x128xf32>
    %102 = arith.addf %100, %101 : vector<96x128xf32>
    %cst_25 = arith.constant dense<0.000000e+00> : vector<96x128xf32>
    %103 = tpu.matmul %10, %97, %cst_25 {dimension_numbers = #tpu.dot_dimension_numbers<[1], [0], [0], [1], [0, 0, 1, 1], [], []>} : vector<96x32xf32>, vector<32x128xf32>, vector<96x128xf32> -> vector<96x128xf32>
    %104 = vector.broadcast %4 : vector<96x1xf32> to vector<96x128xf32>
    %105 = arith.addf %103, %104 : vector<96x128xf32>
    %106 = vector.extract_strided_slice %102 {offsets = [0, 0], sizes = [64, 128], strides = [1, 1]} : vector<96x128xf32> to vector<64x128xf32>
    %107 = vector.extract_strided_slice %105 {offsets = [0, 0], sizes = [64, 128], strides = [1, 1]} : vector<96x128xf32> to vector<64x128xf32>
    %108 = arith.addf %106, %107 : vector<64x128xf32>
    %109 = arith.negf %108 : vector<64x128xf32>
    %110 = math.exp %109 : vector<64x128xf32>
    %cst_26 = arith.constant 1.000000e+00 : f32
    %111 = vector.broadcast %cst_26 : f32 to vector<64x128xf32>
    %112 = arith.addf %111, %110 : vector<64x128xf32>
    %113 = arith.divf %111, %112 : vector<64x128xf32>
    %114 = vector.extract_strided_slice %113 {offsets = [0, 0], sizes = [32, 128], strides = [1, 1]} : vector<64x128xf32> to vector<32x128xf32>
    %115 = vector.extract_strided_slice %113 {offsets = [32, 0], sizes = [32, 128], strides = [1, 1]} : vector<64x128xf32> to vector<32x128xf32>
    %116 = vector.extract_strided_slice %102 {offsets = [64, 0], sizes = [32, 128], strides = [1, 1]} : vector<96x128xf32> to vector<32x128xf32>
    %117 = vector.extract_strided_slice %105 {offsets = [64, 0], sizes = [32, 128], strides = [1, 1]} : vector<96x128xf32> to vector<32x128xf32>
    %118 = arith.mulf %114, %117 : vector<32x128xf32>
    %119 = arith.addf %116, %118 : vector<32x128xf32>
    %120 = math.tanh %119 : vector<32x128xf32>
    %cst_27 = arith.constant 1.000000e+00 : f32
    %121 = vector.broadcast %cst_27 : f32 to vector<32x128xf32>
    %122 = arith.subf %121, %115 : vector<32x128xf32>
    %123 = arith.mulf %122, %120 : vector<32x128xf32>
    %124 = arith.mulf %115, %97 : vector<32x128xf32>
    %125 = arith.addf %123, %124 : vector<32x128xf32>
    %126 = vector.extract_strided_slice %40 {offsets = [3, 0, 0], sizes = [1, 32, 128], strides = [1, 1, 1]} : vector<6x32x128xf32> to vector<1x32x128xf32>
    %127 = vector.shape_cast %126 : vector<1x32x128xf32> to vector<32x128xf32>
    %cst_28 = arith.constant dense<0.000000e+00> : vector<96x128xf32>
    %128 = tpu.matmul %9, %127, %cst_28 {dimension_numbers = #tpu.dot_dimension_numbers<[1], [0], [0], [1], [0, 0, 1, 1], [], []>} : vector<96x32xf32>, vector<32x128xf32>, vector<96x128xf32> -> vector<96x128xf32>
    %129 = vector.broadcast %3 : vector<96x1xf32> to vector<96x128xf32>
    %130 = arith.addf %128, %129 : vector<96x128xf32>
    %cst_29 = arith.constant dense<0.000000e+00> : vector<96x128xf32>
    %131 = tpu.matmul %10, %125, %cst_29 {dimension_numbers = #tpu.dot_dimension_numbers<[1], [0], [0], [1], [0, 0, 1, 1], [], []>} : vector<96x32xf32>, vector<32x128xf32>, vector<96x128xf32> -> vector<96x128xf32>
    %132 = vector.broadcast %4 : vector<96x1xf32> to vector<96x128xf32>
    %133 = arith.addf %131, %132 : vector<96x128xf32>
    %134 = vector.extract_strided_slice %130 {offsets = [0, 0], sizes = [64, 128], strides = [1, 1]} : vector<96x128xf32> to vector<64x128xf32>
    %135 = vector.extract_strided_slice %133 {offsets = [0, 0], sizes = [64, 128], strides = [1, 1]} : vector<96x128xf32> to vector<64x128xf32>
    %136 = arith.addf %134, %135 : vector<64x128xf32>
    %137 = arith.negf %136 : vector<64x128xf32>
    %138 = math.exp %137 : vector<64x128xf32>
    %cst_30 = arith.constant 1.000000e+00 : f32
    %139 = vector.broadcast %cst_30 : f32 to vector<64x128xf32>
    %140 = arith.addf %139, %138 : vector<64x128xf32>
    %141 = arith.divf %139, %140 : vector<64x128xf32>
    %142 = vector.extract_strided_slice %141 {offsets = [0, 0], sizes = [32, 128], strides = [1, 1]} : vector<64x128xf32> to vector<32x128xf32>
    %143 = vector.extract_strided_slice %141 {offsets = [32, 0], sizes = [32, 128], strides = [1, 1]} : vector<64x128xf32> to vector<32x128xf32>
    %144 = vector.extract_strided_slice %130 {offsets = [64, 0], sizes = [32, 128], strides = [1, 1]} : vector<96x128xf32> to vector<32x128xf32>
    %145 = vector.extract_strided_slice %133 {offsets = [64, 0], sizes = [32, 128], strides = [1, 1]} : vector<96x128xf32> to vector<32x128xf32>
    %146 = arith.mulf %142, %145 : vector<32x128xf32>
    %147 = arith.addf %144, %146 : vector<32x128xf32>
    %148 = math.tanh %147 : vector<32x128xf32>
    %cst_31 = arith.constant 1.000000e+00 : f32
    %149 = vector.broadcast %cst_31 : f32 to vector<32x128xf32>
    %150 = arith.subf %149, %143 : vector<32x128xf32>
    %151 = arith.mulf %150, %148 : vector<32x128xf32>
    %152 = arith.mulf %143, %125 : vector<32x128xf32>
    %153 = arith.addf %151, %152 : vector<32x128xf32>
    %154 = vector.extract_strided_slice %40 {offsets = [4, 0, 0], sizes = [1, 32, 128], strides = [1, 1, 1]} : vector<6x32x128xf32> to vector<1x32x128xf32>
    %155 = vector.shape_cast %154 : vector<1x32x128xf32> to vector<32x128xf32>
    %cst_32 = arith.constant dense<0.000000e+00> : vector<96x128xf32>
    %156 = tpu.matmul %9, %155, %cst_32 {dimension_numbers = #tpu.dot_dimension_numbers<[1], [0], [0], [1], [0, 0, 1, 1], [], []>} : vector<96x32xf32>, vector<32x128xf32>, vector<96x128xf32> -> vector<96x128xf32>
    %157 = vector.broadcast %3 : vector<96x1xf32> to vector<96x128xf32>
    %158 = arith.addf %156, %157 : vector<96x128xf32>
    %cst_33 = arith.constant dense<0.000000e+00> : vector<96x128xf32>
    %159 = tpu.matmul %10, %153, %cst_33 {dimension_numbers = #tpu.dot_dimension_numbers<[1], [0], [0], [1], [0, 0, 1, 1], [], []>} : vector<96x32xf32>, vector<32x128xf32>, vector<96x128xf32> -> vector<96x128xf32>
    %160 = vector.broadcast %4 : vector<96x1xf32> to vector<96x128xf32>
    %161 = arith.addf %159, %160 : vector<96x128xf32>
    %162 = vector.extract_strided_slice %158 {offsets = [0, 0], sizes = [64, 128], strides = [1, 1]} : vector<96x128xf32> to vector<64x128xf32>
    %163 = vector.extract_strided_slice %161 {offsets = [0, 0], sizes = [64, 128], strides = [1, 1]} : vector<96x128xf32> to vector<64x128xf32>
    %164 = arith.addf %162, %163 : vector<64x128xf32>
    %165 = arith.negf %164 : vector<64x128xf32>
    %166 = math.exp %165 : vector<64x128xf32>
    %cst_34 = arith.constant 1.000000e+00 : f32
    %167 = vector.broadcast %cst_34 : f32 to vector<64x128xf32>
    %168 = arith.addf %167, %166 : vector<64x128xf32>
    %169 = arith.divf %167, %168 : vector<64x128xf32>
    %170 = vector.extract_strided_slice %169 {offsets = [0, 0], sizes = [32, 128], strides = [1, 1]} : vector<64x128xf32> to vector<32x128xf32>
    %171 = vector.extract_strided_slice %169 {offsets = [32, 0], sizes = [32, 128], strides = [1, 1]} : vector<64x128xf32> to vector<32x128xf32>
    %172 = vector.extract_strided_slice %158 {offsets = [64, 0], sizes = [32, 128], strides = [1, 1]} : vector<96x128xf32> to vector<32x128xf32>
    %173 = vector.extract_strided_slice %161 {offsets = [64, 0], sizes = [32, 128], strides = [1, 1]} : vector<96x128xf32> to vector<32x128xf32>
    %174 = arith.mulf %170, %173 : vector<32x128xf32>
    %175 = arith.addf %172, %174 : vector<32x128xf32>
    %176 = math.tanh %175 : vector<32x128xf32>
    %cst_35 = arith.constant 1.000000e+00 : f32
    %177 = vector.broadcast %cst_35 : f32 to vector<32x128xf32>
    %178 = arith.subf %177, %171 : vector<32x128xf32>
    %179 = arith.mulf %178, %176 : vector<32x128xf32>
    %180 = arith.mulf %171, %153 : vector<32x128xf32>
    %181 = arith.addf %179, %180 : vector<32x128xf32>
    %182 = vector.extract_strided_slice %40 {offsets = [5, 0, 0], sizes = [1, 32, 128], strides = [1, 1, 1]} : vector<6x32x128xf32> to vector<1x32x128xf32>
    %183 = vector.shape_cast %182 : vector<1x32x128xf32> to vector<32x128xf32>
    %cst_36 = arith.constant dense<0.000000e+00> : vector<96x128xf32>
    %184 = tpu.matmul %9, %183, %cst_36 {dimension_numbers = #tpu.dot_dimension_numbers<[1], [0], [0], [1], [0, 0, 1, 1], [], []>} : vector<96x32xf32>, vector<32x128xf32>, vector<96x128xf32> -> vector<96x128xf32>
    %185 = vector.broadcast %3 : vector<96x1xf32> to vector<96x128xf32>
    %186 = arith.addf %184, %185 : vector<96x128xf32>
    %cst_37 = arith.constant dense<0.000000e+00> : vector<96x128xf32>
    %187 = tpu.matmul %10, %181, %cst_37 {dimension_numbers = #tpu.dot_dimension_numbers<[1], [0], [0], [1], [0, 0, 1, 1], [], []>} : vector<96x32xf32>, vector<32x128xf32>, vector<96x128xf32> -> vector<96x128xf32>
    %188 = vector.broadcast %4 : vector<96x1xf32> to vector<96x128xf32>
    %189 = arith.addf %187, %188 : vector<96x128xf32>
    %190 = vector.extract_strided_slice %186 {offsets = [0, 0], sizes = [64, 128], strides = [1, 1]} : vector<96x128xf32> to vector<64x128xf32>
    %191 = vector.extract_strided_slice %189 {offsets = [0, 0], sizes = [64, 128], strides = [1, 1]} : vector<96x128xf32> to vector<64x128xf32>
    %192 = arith.addf %190, %191 : vector<64x128xf32>
    %193 = arith.negf %192 : vector<64x128xf32>
    %194 = math.exp %193 : vector<64x128xf32>
    %cst_38 = arith.constant 1.000000e+00 : f32
    %195 = vector.broadcast %cst_38 : f32 to vector<64x128xf32>
    %196 = arith.addf %195, %194 : vector<64x128xf32>
    %197 = arith.divf %195, %196 : vector<64x128xf32>
    %198 = vector.extract_strided_slice %197 {offsets = [0, 0], sizes = [32, 128], strides = [1, 1]} : vector<64x128xf32> to vector<32x128xf32>
    %199 = vector.extract_strided_slice %197 {offsets = [32, 0], sizes = [32, 128], strides = [1, 1]} : vector<64x128xf32> to vector<32x128xf32>
    %200 = vector.extract_strided_slice %186 {offsets = [64, 0], sizes = [32, 128], strides = [1, 1]} : vector<96x128xf32> to vector<32x128xf32>
    %201 = vector.extract_strided_slice %189 {offsets = [64, 0], sizes = [32, 128], strides = [1, 1]} : vector<96x128xf32> to vector<32x128xf32>
    %202 = arith.mulf %198, %201 : vector<32x128xf32>
    %203 = arith.addf %200, %202 : vector<32x128xf32>
    %204 = math.tanh %203 : vector<32x128xf32>
    %cst_39 = arith.constant 1.000000e+00 : f32
    %205 = vector.broadcast %cst_39 : f32 to vector<32x128xf32>
    %206 = arith.subf %205, %199 : vector<32x128xf32>
    %207 = arith.mulf %206, %204 : vector<32x128xf32>
    %208 = arith.mulf %199, %181 : vector<32x128xf32>
    %209 = arith.addf %207, %208 : vector<32x128xf32>
    %cst_40 = arith.constant dense<0.000000e+00> : vector<128xf32>
    %210 = vector.multi_reduction <add>, %209, %cst_40 [0] : vector<32x128xf32> to vector<128xf32>
    %211 = vector.shape_cast %210 : vector<128xf32> to vector<1x128xf32>
    %cst_41 = arith.constant 3.200000e+01 : f32
    %212 = vector.broadcast %cst_41 : f32 to vector<1x128xf32>
    %213 = arith.divf %211, %212 : vector<1x128xf32>
    %214 = arith.mulf %209, %209 : vector<32x128xf32>
    %cst_42 = arith.constant dense<0.000000e+00> : vector<128xf32>
    %215 = vector.multi_reduction <add>, %214, %cst_42 [0] : vector<32x128xf32> to vector<128xf32>
    %216 = vector.shape_cast %215 : vector<128xf32> to vector<1x128xf32>
    %cst_43 = arith.constant 3.200000e+01 : f32
    %217 = vector.broadcast %cst_43 : f32 to vector<1x128xf32>
    %218 = arith.divf %216, %217 : vector<1x128xf32>
    %219 = arith.mulf %213, %213 : vector<1x128xf32>
    %220 = arith.subf %218, %219 : vector<1x128xf32>
    %cst_44 = arith.constant 0.000000e+00 : f32
    %221 = vector.broadcast %cst_44 : f32 to vector<1x128xf32>
    %222 = arith.maximumf %220, %221 : vector<1x128xf32>
    %223 = vector.broadcast %213 : vector<1x128xf32> to vector<32x128xf32>
    %224 = arith.subf %209, %223 : vector<32x128xf32>
    %cst_45 = arith.constant 9.99999974E-6 : f32
    %225 = vector.broadcast %cst_45 : f32 to vector<1x128xf32>
    %226 = arith.addf %222, %225 : vector<1x128xf32>
    %227 = math.rsqrt %226 : vector<1x128xf32>
    %228 = vector.broadcast %227 : vector<1x128xf32> to vector<32x128xf32>
    %229 = vector.broadcast %1 : vector<32x1xf32> to vector<32x128xf32>
    %230 = arith.mulf %228, %229 : vector<32x128xf32>
    %231 = arith.mulf %224, %230 : vector<32x128xf32>
    %232 = vector.broadcast %2 : vector<32x1xf32> to vector<32x128xf32>
    %233 = arith.addf %231, %232 : vector<32x128xf32>
    %cst_46 = arith.constant dense<0.000000e+00> : vector<64x128xf32>
    %234 = tpu.matmul %11, %233, %cst_46 {dimension_numbers = #tpu.dot_dimension_numbers<[1], [0], [0], [1], [0, 0, 1, 1], [], []>} : vector<64x32xf32>, vector<32x128xf32>, vector<64x128xf32> -> vector<64x128xf32>
    %235 = vector.broadcast %5 : vector<64x1xf32> to vector<64x128xf32>
    %236 = arith.addf %234, %235 : vector<64x128xf32>
    %cst_47 = arith.constant 0.000000e+00 : f32
    %237 = vector.broadcast %cst_47 : f32 to vector<64x128xf32>
    %238 = arith.maximumf %236, %237 : vector<64x128xf32>
    %cst_48 = arith.constant dense<0.000000e+00> : vector<24x128xf32>
    %239 = tpu.matmul %12, %238, %cst_48 {dimension_numbers = #tpu.dot_dimension_numbers<[1], [0], [0], [1], [0, 0, 1, 1], [], []>} : vector<24x64xf32>, vector<64x128xf32>, vector<24x128xf32> -> vector<24x128xf32>
    %240 = vector.broadcast %6 : vector<24x1xf32> to vector<24x128xf32>
    %241 = arith.addf %239, %240 : vector<24x128xf32>
    %cst_49 = arith.constant 0.000000e+00 : f32
    %242 = vector.broadcast %cst_49 : f32 to vector<24x128xf32>
    %243 = arith.maximumf %241, %242 : vector<24x128xf32>
    %cst_50 = arith.constant dense<0.000000e+00> : vector<8x128xf32>
    %244 = tpu.matmul %13, %243, %cst_50 {dimension_numbers = #tpu.dot_dimension_numbers<[1], [0], [0], [1], [0, 0, 1, 1], [], []>} : vector<8x24xf32>, vector<24x128xf32>, vector<8x128xf32> -> vector<8x128xf32>
    %245 = vector.broadcast %7 : vector<8x1xf32> to vector<8x128xf32>
    %246 = arith.addf %244, %245 : vector<8x128xf32>
    %247 = tpu.iota {dimensions = array<i32: 0>} : vector<8x128xi32>
    %cst_51 = arith.constant -4.000000e+00 : f32
    %cst_52 = arith.constant 4.000000e+00 : f32
    %248 = vector.broadcast %cst_51 : f32 to vector<8x128xf32>
    %249 = arith.maximumf %248, %246 : vector<8x128xf32>
    %250 = vector.broadcast %cst_52 : f32 to vector<8x128xf32>
    %251 = arith.minimumf %250, %249 : vector<8x128xf32>
    %cst_53 = arith.constant 0.000000e+00 : f32
    %252 = vector.broadcast %cst_53 : f32 to vector<8x128xf32>
    %253 = arith.maximumf %246, %252 : vector<8x128xf32>
    %cst_54 = arith.constant 2.000000e-01 : f32
    %254 = vector.broadcast %cst_54 : f32 to vector<8x128xf32>
    %255 = arith.addf %253, %254 : vector<8x128xf32>
    %cst_55 = arith.constant 2.000000e-01 : f32
    %cst_56 = arith.constant 4.000000e+00 : f32
    %256 = vector.broadcast %cst_55 : f32 to vector<8x128xf32>
    %257 = arith.maximumf %256, %255 : vector<8x128xf32>
    %258 = vector.broadcast %cst_56 : f32 to vector<8x128xf32>
    %259 = arith.minimumf %258, %257 : vector<8x128xf32>
    %c2_i32 = arith.constant 2 : i32
    %260 = vector.broadcast %c2_i32 : i32 to vector<8x128xi32>
    %261 = arith.cmpi eq, %247, %260 : vector<8x128xi32>
    %262 = arith.select %261, %259, %251 : vector<8x128xi1>, vector<8x128xf32>
    %c0_57 = arith.constant 0 : index
    %c0_58 = arith.constant 0 : index
    %263 = vector.load %arg6[%c0_57, %c0_58] : memref<8x128xf32, #tpu.memory_space<vmem>>, vector<8x128xf32>
    tpu.vector_store %arg6[%c0_57, %c0_58], %262 {strides = array<i32>} : memref<8x128xf32, #tpu.memory_space<vmem>>, vector<8x128xf32>,
    return
  }
  func.func @transform_0(%arg0: i32) -> (i32, i32, i32) {
    %c0_i32 = arith.constant 0 : i32
    %c0_i32_0 = arith.constant 0 : i32
    %c0_i32_1 = arith.constant 0 : i32
    return %c0_i32, %c0_i32_0, %arg0 : i32, i32, i32
  }
  func.func @transform_1(%arg0: i32) -> (i32, i32) {
    %c0_i32 = arith.constant 0 : i32
    %c0_i32_0 = arith.constant 0 : i32
    %c0_i32_1 = arith.constant 0 : i32
    return %c0_i32, %c0_i32_0 : i32, i32
  }
  func.func @transform_2(%arg0: i32) -> (i32, i32) {
    %c0_i32 = arith.constant 0 : i32
    %c0_i32_0 = arith.constant 0 : i32
    %c0_i32_1 = arith.constant 0 : i32
    return %c0_i32, %c0_i32_0 : i32, i32
  }
  func.func @transform_3(%arg0: i32) -> (i32, i32) {
    %c0_i32 = arith.constant 0 : i32
    %c0_i32_0 = arith.constant 0 : i32
    %c0_i32_1 = arith.constant 0 : i32
    return %c0_i32, %c0_i32_0 : i32, i32
  }
  func.func @transform_4(%arg0: i32) -> (i32, i32) {
    %c0_i32 = arith.constant 0 : i32
    %c0_i32_0 = arith.constant 0 : i32
    %c0_i32_1 = arith.constant 0 : i32
    return %c0_i32, %c0_i32_0 : i32, i32
  }
  func.func @transform_5(%arg0: i32) -> (i32, i32) {
    %c0_i32 = arith.constant 0 : i32
    %c0_i32_0 = arith.constant 0 : i32
    return %c0_i32, %arg0 : i32, i32
  }
}

</mosaic_0001>

<llo_original>
// kernel: tpu_custom_call.1
$region0: #{tpu_custom_call.1}
  #allocation0 [shape = 'u32[]', space=smem, size = 0x4, offset = 0x4, fixed_abs, tag = 'smem constant byte address 0x4 - core index']
  #allocation1 [shape = 'u32[144,128]{1,0:T(1,128)}', space=vmem, size = 0x12000, scoped, tag = 'internal scratch']
  %s0 = inlined_call_operand.vmem [shape: f32[6,32,128], index: 0, kind: input, shape index: {}]
  %s1 = inlined_call_operand.vmem [shape: f32[256,32], index: 1, kind: input, shape index: {}]
  %s2 = inlined_call_operand.vmem [shape: f32[24,64], index: 2, kind: input, shape index: {}]
  %s3 = inlined_call_operand.vmem [shape: f32[8,24], index: 3, kind: input, shape index: {}]
  %s4 = inlined_call_operand.vmem [shape: f32[352,1], index: 4, kind: input, shape index: {}]
  %s5 = inlined_call_operand.hbm [shape: f32[8,128], index: 5, kind: output, shape index: {}]
  %s6 = sld [smem:[#allocation0]]
  $region30: #{tpu_custom_call.1} parent=0
    _
  %s8 = ssub.s32 1, %s6
  %s9 = scalar_select 0, %s8, %s6
  $region1: #{tpu_custom_call.1} parent=0
    #allocation2 [shape = 'u8[4096]{0}', space=vmem, size = 0x1000, scoped, tag = 'output window, operand 0, single buffered']
    #allocation3 [shape = 's32[1]{0}', space=sflag, size = 0x4, scoped, tag = 'scoped memory for tpu_custom_call.1']
    %10 = vsyncpa [#allocation3], 0
    // Predicated region
    $region2: #{tpu_custom_call.1} parent=1 // pred_check
      _
    $region3: #{tpu_custom_call.1} parent=1 // pred_check_branch
      %12 = sbr.rel (0) target = $region5
    $region4: #{tpu_custom_call.1} parent=1 // pred_region
      _
    $region5: #{tpu_custom_call.1} parent=1 // pred_fallthru
      _
    // Predicated region
    $region6: #{tpu_custom_call.1} parent=1 // pred_check
      _
    $region7: #{tpu_custom_call.1} parent=1 // pred_check_branch
      %14 = sbr.rel (0) target = $region9
    $region8: #{tpu_custom_call.1} parent=1 // pred_region
      _
    $region9: #{tpu_custom_call.1} parent=1 // pred_fallthru
      _
    // Predicated region
    $region10: #{tpu_custom_call.1} parent=1 // pred_check
      _
    $region11: #{tpu_custom_call.1} parent=1 // pred_check_branch
      %16 = sbr.rel (0) target = $region13
    $region12: #{tpu_custom_call.1} parent=1 // pred_region
      _
    $region13: #{tpu_custom_call.1} parent=1 // pred_fallthru
      _
    // Predicated region
    $region14: #{tpu_custom_call.1} parent=1 // pred_check
      _
    $region15: #{tpu_custom_call.1} parent=1 // pred_check_branch
      %18 = sbr.rel (0) target = $region17
    $region16: #{tpu_custom_call.1} parent=1 // pred_region
      _
    $region17: #{tpu_custom_call.1} parent=1 // pred_fallthru
      _
    // Predicated region
    $region18: #{tpu_custom_call.1} parent=1 // pred_check
      _
    $region19: #{tpu_custom_call.1} parent=1 // pred_check_branch
      %20 = sbr.rel (0) target = $region21
    $region20: #{tpu_custom_call.1} parent=1 // pred_region
      _
    $region21: #{tpu_custom_call.1} parent=1 // pred_fallthru
      _
    %v21 = vld [vmem:[%s4] sm:$0xff]
    %v22 = vld [vmem:[%s4 + $0x8] sm:$0xff]
    %v23 = vld [vmem:[%s4 + $0x10] sm:$0xff]
    %v24 = vld [vmem:[%s4 + $0x18] sm:$0xff]
    %v25 = vld [vmem:[%s4 + $0x20] sm:$0xff]
    %v26 = vld [vmem:[%s4 + $0x28] sm:$0xff]
    %v27 = vld [vmem:[%s4 + $0x30] sm:$0xff]
    %v28 = vld [vmem:[%s4 + $0x38] sm:$0xff]
    %v29 = vld [vmem:[%s4 + $0x40] sm:$0xff]
    %v30 = vld [vmem:[%s4 + $0x48] sm:$0xff]
    %v31 = vld [vmem:[%s4 + $0x50] sm:$0xff]
    %v32 = vld [vmem:[%s4 + $0x58] sm:$0xff]
    %v33 = vld [vmem:[%s4 + $0x60] sm:$0xff]
    %v34 = vld [vmem:[%s4 + $0x68] sm:$0xff]
    %v35 = vld [vmem:[%s4 + $0x70] sm:$0xff]
    %v36 = vld [vmem:[%s4 + $0x78] sm:$0xff]
    %v37 = vld [vmem:[%s4 + $0x80] sm:$0xff]
    %v38 = vld [vmem:[%s4 + $0x88] sm:$0xff]
    %v39 = vld [vmem:[%s4 + $0x90] sm:$0xff]
    %v40 = vld [vmem:[%s4 + $0x98] sm:$0xff]
    %v41 = vld [vmem:[%s4 + $0xa0] sm:$0xff]
    %v42 = vld [vmem:[%s4 + $0xa8] sm:$0xff]
    %v43 = vld [vmem:[%s4 + $0xb0] sm:$0xff]
    %v44 = vld [vmem:[%s4 + $0xb8] sm:$0xff]
    %v45 = vld [vmem:[%s4 + $0xc0] sm:$0xff]
    %v46 = vld [vmem:[%s4 + $0xc8] sm:$0xff]
    %v47 = vld [vmem:[%s4 + $0xd0] sm:$0xff]
    %v48 = vld [vmem:[%s4 + $0xd8] sm:$0xff]
    %v49 = vld [vmem:[%s4 + $0xe0] sm:$0xff]
    %v50 = vld [vmem:[%s4 + $0xe8] sm:$0xff]
    %v51 = vld [vmem:[%s4 + $0xf0] sm:$0xff]
    %v52 = vld [vmem:[%s4 + $0xf8] sm:$0xff]
    %v53 = vld [vmem:[%s4 + $0x100] sm:$0xff]
    %v54 = vld [vmem:[%s4 + $0x108] sm:$0xff]
    %v55 = vld [vmem:[%s4 + $0x110] sm:$0xff]
    %v56 = vld [vmem:[%s4 + $0x118] sm:$0xff]
    %v57 = vld [vmem:[%s4 + $0x120] sm:$0xff]
    %v58 = vld [vmem:[%s4 + $0x128] sm:$0xff]
    %v59 = vld [vmem:[%s4 + $0x130] sm:$0xff]
    %v60 = vld [vmem:[%s4 + $0x138] sm:$0xff]
    %v61 = vld [vmem:[%s4 + $0x140] sm:$0xff]
    %v62 = vld [vmem:[%s4 + $0x148] sm:$0xff]
    %v63 = vld [vmem:[%s4 + $0x150] sm:$0xff]
    %v64 = vld [vmem:[%s4 + $0x158] sm:$0xff]
    %v65 = vld [vmem:[%s1] sm:$0xff]
    %v66 = vld [vmem:[%s1 + $0x8] sm:$0xff]
    %v67 = vld [vmem:[%s1 + $0x10] sm:$0xff]
    %v68 = vld [vmem:[%s1 + $0x18] sm:$0xff]
    %v69 = vld [vmem:[%s1 + $0x20] sm:$0xff]
    %v70 = vld [vmem:[%s1 + $0x28] sm:$0xff]
    %v71 = vld [vmem:[%s1 + $0x30] sm:$0xff]
    %v72 = vld [vmem:[%s1 + $0x38] sm:$0xff]
    %v73 = vld [vmem:[%s1 + $0x40] sm:$0xff]
    %v74 = vld [vmem:[%s1 + $0x48] sm:$0xff]
    %v75 = vld [vmem:[%s1 + $0x50] sm:$0xff]
    %v76 = vld [vmem:[%s1 + $0x58] sm:$0xff]
    %v77 = vld [vmem:[%s1 + $0x60] sm:$0xff]
    %v78 = vld [vmem:[%s1 + $0x68] sm:$0xff]
    %v79 = vld [vmem:[%s1 + $0x70] sm:$0xff]
    %v80 = vld [vmem:[%s1 + $0x78] sm:$0xff]
    %v81 = vld [vmem:[%s1 + $0x80] sm:$0xff]
    %v82 = vld [vmem:[%s1 + $0x88] sm:$0xff]
    %v83 = vld [vmem:[%s1 + $0x90] sm:$0xff]
    %v84 = vld [vmem:[%s1 + $0x98] sm:$0xff]
    %v85 = vld [vmem:[%s1 + $0xa0] sm:$0xff]
    %v86 = vld [vmem:[%s1 + $0xa8] sm:$0xff]
    %v87 = vld [vmem:[%s1 + $0xb0] sm:$0xff]
    %v88 = vld [vmem:[%s1 + $0xb8] sm:$0xff]
    %v89 = vld [vmem:[%s1 + $0xc0] sm:$0xff]
    %v90 = vld [vmem:[%s1 + $0xc8] sm:$0xff]
    %v91 = vld [vmem:[%s1 + $0xd0] sm:$0xff]
    %v92 = vld [vmem:[%s1 + $0xd8] sm:$0xff]
    %v93 = vld [vmem:[%s1 + $0xe0] sm:$0xff]
    %v94 = vld [vmem:[%s1 + $0xe8] sm:$0xff]
    %v95 = vld [vmem:[%s1 + $0xf0] sm:$0xff]
    %v96 = vld [vmem:[%s1 + $0xf8] sm:$0xff]
    %v97 = vld [vmem:[%s2] sm:$0xff]
    %v98 = vld [vmem:[%s2 + $0x8] sm:$0xff]
    %v99 = vld [vmem:[%s2 + $0x10] sm:$0xff]
    %v100 = vld [vmem:[%s3] sm:$0xff]
    %v101 = vld [vmem:[%s0] sm:$0xff]
    %v102 = vld [vmem:[%s0 + $0x8] sm:$0xff]
    %v103 = vld [vmem:[%s0 + $0x10] sm:$0xff]
    %v104 = vld [vmem:[%s0 + $0x18] sm:$0xff]
    %v105 = vld [vmem:[%s0 + $0x20] sm:$0xff]
    %v106 = vld [vmem:[%s0 + $0x28] sm:$0xff]
    %v107 = vld [vmem:[%s0 + $0x30] sm:$0xff]
    %v108 = vld [vmem:[%s0 + $0x38] sm:$0xff]
    %v109 = vld [vmem:[%s0 + $0x40] sm:$0xff]
    %v110 = vld [vmem:[%s0 + $0x48] sm:$0xff]
    %v111 = vld [vmem:[%s0 + $0x50] sm:$0xff]
    %v112 = vld [vmem:[%s0 + $0x58] sm:$0xff]
    %v113 = vld [vmem:[%s0 + $0x60] sm:$0xff]
    %v114 = vld [vmem:[%s0 + $0x68] sm:$0xff]
    %v115 = vld [vmem:[%s0 + $0x70] sm:$0xff]
    %v116 = vld [vmem:[%s0 + $0x78] sm:$0xff]
    %v117 = vld [vmem:[%s0 + $0x80] sm:$0xff]
    %v118 = vld [vmem:[%s0 + $0x88] sm:$0xff]
    %v119 = vld [vmem:[%s0 + $0x90] sm:$0xff]
    %v120 = vld [vmem:[%s0 + $0x98] sm:$0xff]
    %v121 = vld [vmem:[%s0 + $0xa0] sm:$0xff]
    %v122 = vld [vmem:[%s0 + $0xa8] sm:$0xff]
    %v123 = vld [vmem:[%s0 + $0xb0] sm:$0xff]
    %v124 = vld [vmem:[%s0 + $0xb8] sm:$0xff]
    %v125 = vadd.f32 %v101, %v102
    %v126 = vadd.f32 %v125, %v103
    %v127 = vadd.f32 %v126, %v104
    %v128 = vrot.slane %v127, 4
    %v129 = vadd.f32 %v127, %v128
    %v130 = vrot.slane %v129, 2
    %v131 = vadd.f32 %v129, %v130
    %v132 = vrot.slane %v131, 1
    %v133 = vadd.f32 %v131, %v132
    %v134 = vadd.f32 %v105, %v106
    %v135 = vadd.f32 %v134, %v107
    %v136 = vadd.f32 %v135, %v108
    %v137 = vrot.slane %v136, 4
    %v138 = vadd.f32 %v136, %v137
    %v139 = vrot.slane %v138, 2
    %v140 = vadd.f32 %v138, %v139
    %v141 = vrot.slane %v140, 1
    %v142 = vadd.f32 %v140, %v141
    %v143 = vadd.f32 %v109, %v110
    %v144 = vadd.f32 %v143, %v111
    %v145 = vadd.f32 %v144, %v112
    %v146 = vrot.slane %v145, 4
    %v147 = vadd.f32 %v145, %v146
    %v148 = vrot.slane %v147, 2
    %v149 = vadd.f32 %v147, %v148
    %v150 = vrot.slane %v149, 1
    %v151 = vadd.f32 %v149, %v150
    %v152 = vadd.f32 %v113, %v114
    %v153 = vadd.f32 %v152, %v115
    %v154 = vadd.f32 %v153, %v116
    %v155 = vrot.slane %v154, 4
    %v156 = vadd.f32 %v154, %v155
    %v157 = vrot.slane %v156, 2
    %v158 = vadd.f32 %v156, %v157
    %v159 = vrot.slane %v158, 1
    %v160 = vadd.f32 %v158, %v159
    %v161 = vadd.f32 %v117, %v118
    %v162 = vadd.f32 %v161, %v119
    %v163 = vadd.f32 %v162, %v120
    %v164 = vrot.slane %v163, 4
    %v165 = vadd.f32 %v163, %v164
    %v166 = vrot.slane %v165, 2
    %v167 = vadd.f32 %v165, %v166
    %v168 = vrot.slane %v167, 1
    %v169 = vadd.f32 %v167, %v168
    %v170 = vadd.f32 %v121, %v122
    %v171 = vadd.f32 %v170, %v123
    %v172 = vadd.f32 %v171, %v124
    %v173 = vrot.slane %v172, 4
    %v174 = vadd.f32 %v172, %v173
    %v175 = vrot.slane %v174, 2
    %v176 = vadd.f32 %v174, %v175
    %v177 = vrot.slane %v176, 1
    %v178 = vadd.f32 %v176, %v177
    %v179 = vrcp.pop 32.0
    %v180 = vmul.f32 %v133, %v179
    %v181 = vmul.f32 %v142, %v179
    %v182 = vmul.f32 %v151, %v179
    %v183 = vmul.f32 %v160, %v179
    %v184 = vmul.f32 %v169, %v179
    %v185 = vmul.f32 %v178, %v179
    %v186 = vmul.f32 %v101, %v101
    %v187 = vmul.f32 %v102, %v102
    %v188 = vmul.f32 %v103, %v103
    %v189 = vmul.f32 %v104, %v104
    %v190 = vmul.f32 %v105, %v105
    %v191 = vmul.f32 %v106, %v106
    %v192 = vmul.f32 %v107, %v107
    %v193 = vmul.f32 %v108, %v108
    %v194 = vmul.f32 %v109, %v109
    %v195 = vmul.f32 %v110, %v110
    %v196 = vmul.f32 %v111, %v111
    %v197 = vmul.f32 %v112, %v112
    %v198 = vmul.f32 %v113, %v113
    %v199 = vmul.f32 %v114, %v114
    %v200 = vmul.f32 %v115, %v115
    %v201 = vmul.f32 %v116, %v116
    %v202 = vmul.f32 %v117, %v117
    %v203 = vmul.f32 %v118, %v118
    %v204 = vmul.f32 %v119, %v119
    %v205 = vmul.f32 %v120, %v120
    %v206 = vmul.f32 %v121, %v121
    %v207 = vmul.f32 %v122, %v122
    %v208 = vmul.f32 %v123, %v123
    %v209 = vmul.f32 %v124, %v124
    %v210 = vadd.f32 %v186, %v187
    %v211 = vadd.f32 %v210, %v188
    %v212 = vadd.f32 %v211, %v189
    %v213 = vrot.slane %v212, 4
    %v214 = vadd.f32 %v212, %v213
    %v215 = vrot.slane %v214, 2
    %v216 = vadd.f32 %v214, %v215
    %v217 = vrot.slane %v216, 1
    %v218 = vadd.f32 %v216, %v217
    %v219 = vadd.f32 %v190, %v191
    %v220 = vadd.f32 %v219, %v192
    %v221 = vadd.f32 %v220, %v193
    %v222 = vrot.slane %v221, 4
    %v223 = vadd.f32 %v221, %v222
    %v224 = vrot.slane %v223, 2
    %v225 = vadd.f32 %v223, %v224
    %v226 = vrot.slane %v225, 1
    %v227 = vadd.f32 %v225, %v226
    %v228 = vadd.f32 %v194, %v195
    %v229 = vadd.f32 %v228, %v196
    %v230 = vadd.f32 %v229, %v197
    %v231 = vrot.slane %v230, 4
    %v232 = vadd.f32 %v230, %v231
    %v233 = vrot.slane %v232, 2
    %v234 = vadd.f32 %v232, %v233
    %v235 = vrot.slane %v234, 1
    %v236 = vadd.f32 %v234, %v235
    %v237 = vadd.f32 %v198, %v199
    %v238 = vadd.f32 %v237, %v200
    %v239 = vadd.f32 %v238, %v201
    %v240 = vrot.slane %v239, 4
    %v241 = vadd.f32 %v239, %v240
    %v242 = vrot.slane %v241, 2
    %v243 = vadd.f32 %v241, %v242
    %v244 = vrot.slane %v243, 1
    %v245 = vadd.f32 %v243, %v244
    %v246 = vadd.f32 %v202, %v203
    %v247 = vadd.f32 %v246, %v204
    %v248 = vadd.f32 %v247, %v205
    %v249 = vrot.slane %v248, 4
    %v250 = vadd.f32 %v248, %v249
    %v251 = vrot.slane %v250, 2
    %v252 = vadd.f32 %v250, %v251
    %v253 = vrot.slane %v252, 1
    %v254 = vadd.f32 %v252, %v253
    %v255 = vadd.f32 %v206, %v207
    %v256 = vadd.f32 %v255, %v208
    %v257 = vadd.f32 %v256, %v209
    %v258 = vrot.slane %v257, 4
    %v259 = vadd.f32 %v257, %v258
    %v260 = vrot.slane %v259, 2
    %v261 = vadd.f32 %v259, %v260
    %v262 = vrot.slane %v261, 1
    %v263 = vadd.f32 %v261, %v262
    %v264 = vmul.f32 %v218, %v179
    %v265 = vmul.f32 %v227, %v179
    %v266 = vmul.f32 %v236, %v179
    %v267 = vmul.f32 %v245, %v179
    %v268 = vmul.f32 %v254, %v179
    %v269 = vmul.f32 %v263, %v179
    %v270 = vmul.f32 %v180, %v180
    %v271 = vmul.f32 %v181, %v181
    %v272 = vmul.f32 %v182, %v182
    %v273 = vmul.f32 %v183, %v183
    %v274 = vmul.f32 %v184, %v184
    %v275 = vmul.f32 %v185, %v185
    %v276 = vsub.f32 %v264, %v270
    %v277 = vsub.f32 %v265, %v271
    %v278 = vsub.f32 %v266, %v272
    %v279 = vsub.f32 %v267, %v273
    %v280 = vsub.f32 %v268, %v274
    %v281 = vsub.f32 %v269, %v275
    %v282 = vmax.f32 %v276, 0.0
    %v283 = vmax.f32 %v277, 0.0
    %v284 = vmax.f32 %v278, 0.0
    %v285 = vmax.f32 %v279, 0.0
    %v286 = vmax.f32 %v280, 0.0
    %v287 = vmax.f32 %v281, 0.0
    %v288 = vsub.f32 %v101, %v180
    %v289 = vsub.f32 %v102, %v180
    %v290 = vsub.f32 %v103, %v180
    %v291 = vsub.f32 %v104, %v180
    %v292 = vsub.f32 %v105, %v181
    %v293 = vsub.f32 %v106, %v181
    %v294 = vsub.f32 %v107, %v181
    %v295 = vsub.f32 %v108, %v181
    %v296 = vsub.f32 %v109, %v182
    %v297 = vsub.f32 %v110, %v182
    %v298 = vsub.f32 %v111, %v182
    %v299 = vsub.f32 %v112, %v182
    %v300 = vsub.f32 %v113, %v183
    %v301 = vsub.f32 %v114, %v183
    %v302 = vsub.f32 %v115, %v183
    %v303 = vsub.f32 %v116, %v183
    %v304 = vsub.f32 %v117, %v184
    %v305 = vsub.f32 %v118, %v184
    %v306 = vsub.f32 %v119, %v184
    %v307 = vsub.f32 %v120, %v184
    %v308 = vsub.f32 %v121, %v185
    %v309 = vsub.f32 %v122, %v185
    %v310 = vsub.f32 %v123, %v185
    %v311 = vsub.f32 %v124, %v185
    %v312 = vadd.f32 %v282, 1e-05
    %v313 = vadd.f32 %v283, 1e-05
    %v314 = vadd.f32 %v284, 1e-05
    %v315 = vadd.f32 %v285, 1e-05
    %v316 = vadd.f32 %v286, 1e-05
    %v317 = vadd.f32 %v287, 1e-05
    %v318 = vrsqrt.pop %v312
    %v319 = vrsqrt.pop %v313
    %v320 = vrsqrt.pop %v314
    %v321 = vrsqrt.pop %v315
    %v322 = vrsqrt.pop %v316
    %v323 = vrsqrt.pop %v317
    %325 = vset.pattern.permute.xlu0 0
    %326 = vperm.xlu0 %325, %v21
    %v327 = vpop.permute.xlu0 %326
    %330 = vset.pattern.permute.xlu0 0
    %331 = vperm.xlu0 %330, %v22
    %v332 = vpop.permute.xlu0 %331
    %335 = vset.pattern.permute.xlu0 0
    %336 = vperm.xlu0 %335, %v23
    %v337 = vpop.permute.xlu0 %336
    %340 = vset.pattern.permute.xlu0 0
    %341 = vperm.xlu0 %340, %v24
    %v342 = vpop.permute.xlu0 %341
    %v344 = vmul.f32 %v318, %v327
    %v345 = vmul.f32 %v318, %v332
    %v346 = vmul.f32 %v318, %v337
    %v347 = vmul.f32 %v318, %v342
    %v348 = vmul.f32 %v319, %v327
    %v349 = vmul.f32 %v319, %v332
    %v350 = vmul.f32 %v319, %v337
    %v351 = vmul.f32 %v319, %v342
    %v352 = vmul.f32 %v320, %v327
    %v353 = vmul.f32 %v320, %v332
    %v354 = vmul.f32 %v320, %v337
    %v355 = vmul.f32 %v320, %v342
    %v356 = vmul.f32 %v321, %v327
    %v357 = vmul.f32 %v321, %v332
    %v358 = vmul.f32 %v321, %v337
    %v359 = vmul.f32 %v321, %v342
    %v360 = vmul.f32 %v322, %v327
    %v361 = vmul.f32 %v322, %v332
    %v362 = vmul.f32 %v322, %v337
    %v363 = vmul.f32 %v322, %v342
    %v364 = vmul.f32 %v323, %v327
    %v365 = vmul.f32 %v323, %v332
    %v366 = vmul.f32 %v323, %v337
    %v367 = vmul.f32 %v323, %v342
    %v368 = vmul.f32 %v288, %v344
    %v369 = vmul.f32 %v289, %v345
    %v370 = vmul.f32 %v290, %v346
    %v371 = vmul.f32 %v291, %v347
    %v372 = vmul.f32 %v292, %v348
    %v373 = vmul.f32 %v293, %v349
    %v374 = vmul.f32 %v294, %v350
    %v375 = vmul.f32 %v295, %v351
    %v376 = vmul.f32 %v296, %v352
    %v377 = vmul.f32 %v297, %v353
    %v378 = vmul.f32 %v298, %v354
    %v379 = vmul.f32 %v299, %v355
    %v380 = vmul.f32 %v300, %v356
    %v381 = vmul.f32 %v301, %v357
    %v382 = vmul.f32 %v302, %v358
    %v383 = vmul.f32 %v303, %v359
    %v384 = vmul.f32 %v304, %v360
    %v385 = vmul.f32 %v305, %v361
    %v386 = vmul.f32 %v306, %v362
    %v387 = vmul.f32 %v307, %v363
    %v388 = vmul.f32 %v308, %v364
    %v389 = vmul.f32 %v309, %v365
    %v390 = vmul.f32 %v310, %v366
    %v391 = vmul.f32 %v311, %v367
    %393 = vset.pattern.permute.xlu0 0
    %394 = vperm.xlu0 %393, %v25
    %v395 = vpop.permute.xlu0 %394
    %398 = vset.pattern.permute.xlu0 0
    %399 = vperm.xlu0 %398, %v26
    %v400 = vpop.permute.xlu0 %399
    %403 = vset.pattern.permute.xlu0 0
    %404 = vperm.xlu0 %403, %v27
    %v405 = vpop.permute.xlu0 %404
    %408 = vset.pattern.permute.xlu0 0
    %409 = vperm.xlu0 %408, %v28
    %v410 = vpop.permute.xlu0 %409
    %v412 = vadd.f32 %v368, %v395
    %v413 = vadd.f32 %v369, %v400
    %v414 = vadd.f32 %v370, %v405
    %v415 = vadd.f32 %v371, %v410
    %v416 = vadd.f32 %v372, %v395
    %v417 = vadd.f32 %v373, %v400
    %v418 = vadd.f32 %v374, %v405
    %v419 = vadd.f32 %v375, %v410
    %v420 = vadd.f32 %v376, %v395
    %v421 = vadd.f32 %v377, %v400
    %v422 = vadd.f32 %v378, %v405
    %v423 = vadd.f32 %v379, %v410
    %v424 = vadd.f32 %v380, %v395
    %v425 = vadd.f32 %v381, %v400
    %v426 = vadd.f32 %v382, %v405
    %v427 = vadd.f32 %v383, %v410
    %v428 = vadd.f32 %v384, %v395
    %v429 = vadd.f32 %v385, %v400
    %v430 = vadd.f32 %v386, %v405
    %v431 = vadd.f32 %v387, %v410
    %v432 = vadd.f32 %v388, %v395
    %v433 = vadd.f32 %v389, %v400
    %v434 = vadd.f32 %v390, %v405
    %v435 = vadd.f32 %v391, %v410
    %437 = vset.pattern.permute.xlu0 0
    %438 = vperm.xlu0 %437, %v29
    %v439 = vpop.permute.xlu0 %438
    %442 = vset.pattern.permute.xlu0 0
    %443 = vperm.xlu0 %442, %v30
    %v444 = vpop.permute.xlu0 %443
    %447 = vset.pattern.permute.xlu0 0
    %448 = vperm.xlu0 %447, %v31
    %v449 = vpop.permute.xlu0 %448
    %452 = vset.pattern.permute.xlu0 0
    %453 = vperm.xlu0 %452, %v32
    %v454 = vpop.permute.xlu0 %453
    %457 = vset.pattern.permute.xlu0 0
    %458 = vperm.xlu0 %457, %v33
    %v459 = vpop.permute.xlu0 %458
    %462 = vset.pattern.permute.xlu0 0
    %463 = vperm.xlu0 %462, %v34
    %v464 = vpop.permute.xlu0 %463
    %467 = vset.pattern.permute.xlu0 0
    %468 = vperm.xlu0 %467, %v35
    %v469 = vpop.permute.xlu0 %468
    %472 = vset.pattern.permute.xlu0 0
    %473 = vperm.xlu0 %472, %v36
    %v474 = vpop.permute.xlu0 %473
    %477 = vset.pattern.permute.xlu0 0
    %478 = vperm.xlu0 %477, %v37
    %v479 = vpop.permute.xlu0 %478
    %482 = vset.pattern.permute.xlu0 0
    %483 = vperm.xlu0 %482, %v38
    %v484 = vpop.permute.xlu0 %483
    %487 = vset.pattern.permute.xlu0 0
    %488 = vperm.xlu0 %487, %v39
    %v489 = vpop.permute.xlu0 %488
    %492 = vset.pattern.permute.xlu0 0
    %493 = vperm.xlu0 %492, %v40
    %v494 = vpop.permute.xlu0 %493
    %vm496 = vcmask 261120
    %v498 = vsel %vm496, %v65, 0
    %v501 = vsel %vm496, %v66, 0
    %v504 = vsel %vm496, %v67, 0
    %v507 = vsel %vm496, %v68, 0
    %v510 = vsel %vm496, %v69, 0
    %v513 = vsel %vm496, %v70, 0
    %v516 = vsel %vm496, %v71, 0
    %v519 = vsel %vm496, %v72, 0
    %v522 = vsel %vm496, %v73, 0
    %v525 = vsel %vm496, %v74, 0
    %v528 = vsel %vm496, %v75, 0
    %v531 = vsel %vm496, %v76, 0
    %533 = vmatprep.subr.mxu0 0.0
    %534 = vmatpush1.msra.mxu0 %v412
    %535 = vmatprep.subr.mxu0 0.0
    %536 = vmatpush1.msra.mxu0 %v413
    %537 = vmatprep.subr.mxu0 0.0
    %538 = vmatpush1.msra.mxu0 %v414
    %539 = vmatprep.subr.mxu0 0.0
    %540 = vmatpush1.msra.mxu0 %v415
    %541 = vmatprep.subr.mxu0 0.0
    %542 = vmatpush1.msra.mxu0 0.0
    %543 = vmatprep.subr.mxu0 0.0
    %544 = vmatpush1.msra.mxu0 0.0
    %545 = vmatprep.subr.mxu0 0.0
    %546 = vmatpush1.msra.mxu0 0.0
    %547 = vmatprep.subr.mxu0 0.0
    %548 = vmatpush1.msra.mxu0 0.0
    %549 = vmatprep.subr.mxu0 0.0
    %550 = vmatpush1.msra.mxu0 0.0
    %551 = vmatprep.subr.mxu0 0.0
    %552 = vmatpush1.msra.mxu0 0.0
    %553 = vmatprep.subr.mxu0 0.0
    %554 = vmatpush1.msra.mxu0 0.0
    %555 = vmatprep.subr.mxu0 0.0
    %556 = vmatpush1.msra.mxu0 0.0
    %557 = vmatprep.subr.mxu0 0.0
    %558 = vmatpush1.msra.mxu0 0.0
    %559 = vmatprep.subr.mxu0 0.0
    %560 = vmatpush1.msra.mxu0 0.0
    %561 = vmatprep.subr.mxu0 0.0
    %562 = vmatpush1.msra.mxu0 0.0
    %563 = vmatprep.subr.mxu0 0.0
    %564 = vmatpush1.msra.mxu0 0.0
    %565 = vmatprep.subr.mxu0 0.0
    %566 = vmatpush1.msra.mxu0 0.0
    %567 = vmatprep.subr.mxu0 0.0
    %568 = vmatpush1.msra.mxu0 0.0
    %569 = vmatprep.subr.mxu0 0.0
    %570 = vmatpush1.msra.mxu0 0.0
    %571 = vmatprep.subr.mxu0 0.0
    %572 = vmatpush1.msra.mxu0 0.0
    %573 = vmatprep.subr.mxu0 0.0
    %574 = vmatpush1.msra.mxu0 0.0
    %575 = vmatprep.subr.mxu0 0.0
    %576 = vmatpush1.msra.mxu0 0.0
    %577 = vmatprep.subr.mxu0 0.0
    %578 = vmatpush1.msra.mxu0 0.0
    %579 = vmatprep.subr.mxu0 0.0
    %580 = vmatpush1.msra.mxu0 0.0
    %581 = vmatprep.subr.mxu0 0.0
    %582 = vmatpush1.msra.mxu0 0.0
    %583 = vmatprep.subr.mxu0 0.0
    %584 = vmatpush1.msra.mxu0 0.0
    %585 = vmatprep.subr.mxu0 0.0
    %586 = vmatpush1.msra.mxu0 0.0
    %587 = vmatprep.subr.mxu0 0.0
    %588 = vmatpush1.msra.mxu0 0.0
    %589 = vmatprep.subr.mxu0 0.0
    %590 = vmatpush1.msra.mxu0 0.0
    %591 = vmatprep.subr.mxu0 0.0
    %592 = vmatpush1.msra.mxu0 0.0
    %593 = vmatprep.subr.mxu0 0.0
    %594 = vmatpush1.msra.mxu0 0.0
    %595 = vmatprep.subr.mxu0 0.0
    %596 = vmatpush1.msra.mxu0 0.0
    %597 = vmatprep.mubr.f32.mxu0 0.0
    %598 = vmatmul.mubr.f32.gmra.mrb[0].mxu0 %v498
    %v599 = vpop.f32.mrb[0].mxu0
    %v600 = vadd.f32 %v439, %v599
    %v601 = vpop.f32.mrb[0].mxu0
    %602 = vmatprep.mubr.f32.mxu0 0.0
    %603 = vmatmul.mubr.f32.gmra.mrb[0].mxu0 %v501
    %v604 = vpop.f32.mrb[0].mxu0
    %v605 = vadd.f32 %v444, %v604
    %v606 = vpop.f32.mrb[0].mxu0
    %607 = vmatprep.mubr.f32.mxu0 0.0
    %608 = vmatmul.mubr.f32.gmra.mrb[0].mxu0 %v504
    %v609 = vpop.f32.mrb[0].mxu0
    %v610 = vadd.f32 %v449, %v609
    %v611 = vpop.f32.mrb[0].mxu0
    %612 = vmatprep.mubr.f32.mxu0 0.0
    %613 = vmatmul.mubr.f32.gmra.mrb[0].mxu0 %v507
    %v614 = vpop.f32.mrb[0].mxu0
    %v615 = vadd.f32 %v454, %v614
    %v616 = vpop.f32.mrb[0].mxu0
    %617 = vmatprep.mubr.f32.mxu0 0.0
    %618 = vmatmul.mubr.f32.gmra.mrb[0].mxu0 %v510
    %v619 = vpop.f32.mrb[0].mxu0
    %v620 = vadd.f32 %v459, %v619
    %v621 = vpop.f32.mrb[0].mxu0
    %622 = vmatprep.mubr.f32.mxu0 0.0
    %623 = vmatmul.mubr.f32.gmra.mrb[0].mxu0 %v513
    %v624 = vpop.f32.mrb[0].mxu0
    %v625 = vadd.f32 %v464, %v624
    %v626 = vpop.f32.mrb[0].mxu0
    %627 = vmatprep.mubr.f32.mxu0 0.0
    %628 = vmatmul.mubr.f32.gmra.mrb[0].mxu0 %v516
    %v629 = vpop.f32.mrb[0].mxu0
    %v630 = vadd.f32 %v469, %v629
    %v631 = vpop.f32.mrb[0].mxu0
    %632 = vmatprep.mubr.f32.mxu0 0.0
    %633 = vmatmul.mubr.f32.gmra.mrb[0].mxu0 %v519
    %v634 = vpop.f32.mrb[0].mxu0
    %v635 = vadd.f32 %v474, %v634
    %v636 = vpop.f32.mrb[0].mxu0
    %637 = vmatprep.mubr.f32.mxu0 0.0
    %638 = vmatmul.mubr.f32.gmra.mrb[0].mxu0 %v522
    %v639 = vpop.f32.mrb[0].mxu0
    %v640 = vadd.f32 %v479, %v639
    %v641 = vpop.f32.mrb[0].mxu0
    %642 = vmatprep.mubr.f32.mxu0 0.0
    %643 = vmatmul.mubr.f32.gmra.mrb[0].mxu0 %v525
    %v644 = vpop.f32.mrb[0].mxu0
    %v645 = vadd.f32 %v484, %v644
    %v646 = vpop.f32.mrb[0].mxu0
    %647 = vmatprep.mubr.f32.mxu0 0.0
    %648 = vmatmul.mubr.f32.gmra.mrb[0].mxu0 %v528
    %v649 = vpop.f32.mrb[0].mxu0
    %v650 = vadd.f32 %v489, %v649
    %v651 = vpop.f32.mrb[0].mxu0
    %652 = vmatprep.mubr.f32.mxu0 0.0
    %653 = vmatmul.mubr.f32.gmra.mrb[0].mxu0 %v531
    %v654 = vpop.f32.mrb[0].mxu0
    %v655 = vadd.f32 %v494, %v654
    %v656 = vpop.f32.mrb[0].mxu0
    %657 = vdwg.mxu0
    %659 = vset.pattern.permute.xlu0 0
    %660 = vperm.xlu0 %659, %v41
    %v661 = vpop.permute.xlu0 %660
    %664 = vset.pattern.permute.xlu0 0
    %665 = vperm.xlu0 %664, %v42
    %v666 = vpop.permute.xlu0 %665
    %669 = vset.pattern.permute.xlu0 0
    %670 = vperm.xlu0 %669, %v43
    %v671 = vpop.permute.xlu0 %670
    %674 = vset.pattern.permute.xlu0 0
    %675 = vperm.xlu0 %674, %v44
    %v676 = vpop.permute.xlu0 %675
    %679 = vset.pattern.permute.xlu0 0
    %680 = vperm.xlu0 %679, %v45
    %v681 = vpop.permute.xlu0 %680
    %684 = vset.pattern.permute.xlu0 0
    %685 = vperm.xlu0 %684, %v46
    %v686 = vpop.permute.xlu0 %685
    %689 = vset.pattern.permute.xlu0 0
    %690 = vperm.xlu0 %689, %v47
    %v691 = vpop.permute.xlu0 %690
    %694 = vset.pattern.permute.xlu0 0
    %695 = vperm.xlu0 %694, %v48
    %v696 = vpop.permute.xlu0 %695
    %699 = vset.pattern.permute.xlu0 0
    %700 = vperm.xlu0 %699, %v49
    %v701 = vpop.permute.xlu0 %700
    %704 = vset.pattern.permute.xlu0 0
    %705 = vperm.xlu0 %704, %v50
    %v706 = vpop.permute.xlu0 %705
    %709 = vset.pattern.permute.xlu0 0
    %710 = vperm.xlu0 %709, %v51
    %v711 = vpop.permute.xlu0 %710
    %714 = vset.pattern.permute.xlu0 0
    %715 = vperm.xlu0 %714, %v52
    %v716 = vpop.permute.xlu0 %715
    %v719 = vsel %vm496, %v77, 0
    %v722 = vsel %vm496, %v78, 0
    %v725 = vsel %vm496, %v79, 0
    %v728 = vsel %vm496, %v80, 0
    %v731 = vsel %vm496, %v81, 0
    %v734 = vsel %vm496, %v82, 0
    %v737 = vsel %vm496, %v83, 0
    %v740 = vsel %vm496, %v84, 0
    %v743 = vsel %vm496, %v85, 0
    %v746 = vsel %vm496, %v86, 0
    %v749 = vsel %vm496, %v87, 0
    %v752 = vsel %vm496, %v88, 0
    %754 = vmatprep.subr.mxu0 0.0
    %755 = vmatpush1.msra.mxu0 0.0
    %756 = vmatprep.subr.mxu0 0.0
    %757 = vmatpush1.msra.mxu0 0.0
    %758 = vmatprep.subr.mxu0 0.0
    %759 = vmatpush1.msra.mxu0 0.0
    %760 = vmatprep.subr.mxu0 0.0
    %761 = vmatpush1.msra.mxu0 0.0
    %762 = vmatprep.subr.mxu0 0.0
    %763 = vmatpush1.msra.mxu0 0.0
    %764 = vmatprep.subr.mxu0 0.0
    %765 = vmatpush1.msra.mxu0 0.0
    %766 = vmatprep.subr.mxu0 0.0
    %767 = vmatpush1.msra.mxu0 0.0
    %768 = vmatprep.subr.mxu0 0.0
    %769 = vmatpush1.msra.mxu0 0.0
    %770 = vmatprep.subr.mxu0 0.0
    %771 = vmatpush1.msra.mxu0 0.0
    %772 = vmatprep.subr.mxu0 0.0
    %773 = vmatpush1.msra.mxu0 0.0
    %774 = vmatprep.subr.mxu0 0.0
    %775 = vmatpush1.msra.mxu0 0.0
    %776 = vmatprep.subr.mxu0 0.0
    %777 = vmatpush1.msra.mxu0 0.0
    %778 = vmatprep.subr.mxu0 0.0
    %779 = vmatpush1.msra.mxu0 0.0
    %780 = vmatprep.subr.mxu0 0.0
    %781 = vmatpush1.msra.mxu0 0.0
    %782 = vmatprep.subr.mxu0 0.0
    %783 = vmatpush1.msra.mxu0 0.0
    %784 = vmatprep.subr.mxu0 0.0
    %785 = vmatpush1.msra.mxu0 0.0
    %786 = vmatprep.subr.mxu0 0.0
    %787 = vmatpush1.msra.mxu0 0.0
    %788 = vmatprep.subr.mxu0 0.0
    %789 = vmatpush1.msra.mxu0 0.0
    %790 = vmatprep.subr.mxu0 0.0
    %791 = vmatpush1.msra.mxu0 0.0
    %792 = vmatprep.subr.mxu0 0.0
    %793 = vmatpush1.msra.mxu0 0.0
    %794 = vmatprep.subr.mxu0 0.0
    %795 = vmatpush1.msra.mxu0 0.0
    %796 = vmatprep.subr.mxu0 0.0
    %797 = vmatpush1.msra.mxu0 0.0
    %798 = vmatprep.subr.mxu0 0.0
    %799 = vmatpush1.msra.mxu0 0.0
    %800 = vmatprep.subr.mxu0 0.0
    %801 = vmatpush1.msra.mxu0 0.0
    %802 = vmatprep.subr.mxu0 0.0
    %803 = vmatpush1.msra.mxu0 0.0
    %804 = vmatprep.subr.mxu0 0.0
    %805 = vmatpush1.msra.mxu0 0.0
    %806 = vmatprep.subr.mxu0 0.0
    %807 = vmatpush1.msra.mxu0 0.0
    %808 = vmatprep.subr.mxu0 0.0
    %809 = vmatpush1.msra.mxu0 0.0
    %810 = vmatprep.subr.mxu0 0.0
    %811 = vmatpush1.msra.mxu0 0.0
    %812 = vmatprep.subr.mxu0 0.0
    %813 = vmatpush1.msra.mxu0 0.0
    %814 = vmatprep.subr.mxu0 0.0
    %815 = vmatpush1.msra.mxu0 0.0
    %816 = vmatprep.subr.mxu0 0.0
    %817 = vmatpush1.msra.mxu0 0.0
    %818 = vmatprep.mubr.f32.mxu0 0.0
    %819 = vmatmul.mubr.f32.gmra.mrb[0].mxu0 %v719
    %v820 = vpop.f32.mrb[0].mxu0
    %v821 = vadd.f32 %v661, %v820
    %v822 = vpop.f32.mrb[0].mxu0
    %823 = vmatprep.mubr.f32.mxu0 0.0
    %824 = vmatmul.mubr.f32.gmra.mrb[0].mxu0 %v722
    %v825 = vpop.f32.mrb[0].mxu0
    %v826 = vadd.f32 %v666, %v825
    %v827 = vpop.f32.mrb[0].mxu0
    %828 = vmatprep.mubr.f32.mxu0 0.0
    %829 = vmatmul.mubr.f32.gmra.mrb[0].mxu0 %v725
    %v830 = vpop.f32.mrb[0].mxu0
    %v831 = vadd.f32 %v671, %v830
    %v832 = vpop.f32.mrb[0].mxu0
    %833 = vmatprep.mubr.f32.mxu0 0.0
    %834 = vmatmul.mubr.f32.gmra.mrb[0].mxu0 %v728
    %v835 = vpop.f32.mrb[0].mxu0
    %v836 = vadd.f32 %v676, %v835
    %v837 = vpop.f32.mrb[0].mxu0
    %838 = vmatprep.mubr.f32.mxu0 0.0
    %839 = vmatmul.mubr.f32.gmra.mrb[0].mxu0 %v731
    %v840 = vpop.f32.mrb[0].mxu0
    %v841 = vadd.f32 %v681, %v840
    %v842 = vpop.f32.mrb[0].mxu0
    %843 = vmatprep.mubr.f32.mxu0 0.0
    %844 = vmatmul.mubr.f32.gmra.mrb[0].mxu0 %v734
    %v845 = vpop.f32.mrb[0].mxu0
    %v846 = vadd.f32 %v686, %v845
    %v847 = vpop.f32.mrb[0].mxu0
    %848 = vmatprep.mubr.f32.mxu0 0.0
    %849 = vmatmul.mubr.f32.gmra.mrb[0].mxu0 %v737
    %v850 = vpop.f32.mrb[0].mxu0
    %v851 = vadd.f32 %v691, %v850
    %v852 = vpop.f32.mrb[0].mxu0
    %853 = vmatprep.mubr.f32.mxu0 0.0
    %854 = vmatmul.mubr.f32.gmra.mrb[0].mxu0 %v740
    %v855 = vpop.f32.mrb[0].mxu0
    %v856 = vadd.f32 %v696, %v855
    %v857 = vpop.f32.mrb[0].mxu0
    %858 = vmatprep.mubr.f32.mxu0 0.0
    %859 = vmatmul.mubr.f32.gmra.mrb[0].mxu0 %v743
    %v860 = vpop.f32.mrb[0].mxu0
    %v861 = vadd.f32 %v701, %v860
    %v862 = vpop.f32.mrb[0].mxu0
    %863 = vmatprep.mubr.f32.mxu0 0.0
    %864 = vmatmul.mubr.f32.gmra.mrb[0].mxu0 %v746
    %v865 = vpop.f32.mrb[0].mxu0
    %v866 = vadd.f32 %v706, %v865
    %v867 = vpop.f32.mrb[0].mxu0
    %868 = vmatprep.mubr.f32.mxu0 0.0
    %869 = vmatmul.mubr.f32.gmra.mrb[0].mxu0 %v749
    %v870 = vpop.f32.mrb[0].mxu0
    %v871 = vadd.f32 %v711, %v870
    %v872 = vpop.f32.mrb[0].mxu0
    %873 = vmatprep.mubr.f32.mxu0 0.0
    %874 = vmatmul.mubr.f32.gmra.mrb[0].mxu0 %v752
    %v875 = vpop.f32.mrb[0].mxu0
    %v876 = vadd.f32 %v716, %v875
    %v877 = vpop.f32.mrb[0].mxu0
    %878 = vdwg.mxu0
    %v879 = vadd.f32 %v600, %v821
    %v880 = vadd.f32 %v605, %v826
    %v881 = vadd.f32 %v610, %v831
    %v882 = vadd.f32 %v615, %v836
    %v883 = vadd.f32 %v620, %v841
    %v884 = vadd.f32 %v625, %v846
    %v885 = vadd.f32 %v630, %v851
    %v886 = vadd.f32 %v635, %v856
    %v887 = vxor.u32 %v879, 2147483648
    %v888 = vxor.u32 %v880, 2147483648
    %v889 = vxor.u32 %v881, 2147483648
    %v890 = vxor.u32 %v882, 2147483648
    %v891 = vxor.u32 %v883, 2147483648
    %v892 = vxor.u32 %v884, 2147483648
    %v893 = vxor.u32 %v885, 2147483648
    %v894 = vxor.u32 %v886, 2147483648
    %v895 = vmul.f32 %v887, 1.442695
    %v896 = vpow.pop %v895
    %v897 = vmul.f32 %v888, 1.442695
    %v898 = vpow.pop %v897
    %v899 = vmul.f32 %v889, 1.442695
    %v900 = vpow.pop %v899
    %v901 = vmul.f32 %v890, 1.442695
    %v902 = vpow.pop %v901
    %v903 = vmul.f32 %v891, 1.442695
    %v904 = vpow.pop %v903
    %v905 = vmul.f32 %v892, 1.442695
    %v906 = vpow.pop %v905
    %v907 = vmul.f32 %v893, 1.442695
    %v908 = vpow.pop %v907
    %v909 = vmul.f32 %v894, 1.442695
    %v910 = vpow.pop %v909
    %v911 = vadd.f32 %v896, 1.0
    %v912 = vadd.f32 %v898, 1.0
    %v913 = vadd.f32 %v900, 1.0
    %v914 = vadd.f32 %v902, 1.0
    %v915 = vadd.f32 %v904, 1.0
    %v916 = vadd.f32 %v906, 1.0
    %v917 = vadd.f32 %v908, 1.0
    %v918 = vadd.f32 %v910, 1.0
    %v919 = vrcp.pop %v911
    %v920 = vmul.f32 1.0, %v919
    %v921 = vrcp.pop %v912
    %v922 = vmul.f32 1.0, %v921
    %v923 = vrcp.pop %v913
    %v924 = vmul.f32 1.0, %v923
    %v925 = vrcp.pop %v914
    %v926 = vmul.f32 1.0, %v925
    %v927 = vrcp.pop %v915
    %v928 = vmul.f32 1.0, %v927
    %v929 = vrcp.pop %v916
    %v930 = vmul.f32 1.0, %v929
    %v931 = vrcp.pop %v917
    %v932 = vmul.f32 1.0, %v931
    %v933 = vrcp.pop %v918
    %v934 = vmul.f32 1.0, %v933
    %v935 = vmul.f32 %v920, %v861
    %v936 = vmul.f32 %v922, %v866
    %v937 = vmul.f32 %v924, %v871
    %v938 = vmul.f32 %v926, %v876
    %v939 = vadd.f32 %v640, %v935
    %v940 = vadd.f32 %v645, %v936
    %v941 = vadd.f32 %v650, %v937
    %v942 = vadd.f32 %v655, %v938
    %v943 = vtanh.pop %v939
    %v944 = vtanh.pop %v940
    %v945 = vtanh.pop %v941
    %v946 = vtanh.pop %v942
    %v947 = vsub.f32 1.0, %v928
    %v948 = vsub.f32 1.0, %v930
    %v949 = vsub.f32 1.0, %v932
    %v950 = vsub.f32 1.0, %v934
    %v951 = vmul.f32 %v947, %v943
    %v952 = vmul.f32 %v948, %v944
    %v953 = vmul.f32 %v949, %v945
    %v954 = vmul.f32 %v950, %v946
    %v955 = vmul.f32 %v928, 0.0
    %v956 = vmul.f32 %v930, 0.0
    %v957 = vmul.f32 %v932, 0.0
    %v958 = vmul.f32 %v934, 0.0
    %v959 = vadd.f32 %v951, %v955
    %v960 = vadd.f32 %v952, %v956
    %v961 = vadd.f32 %v953, %v957
    %v962 = vadd.f32 %v954, %v958
    %963 = vmatprep.subr.mxu0 0.0
    %964 = vmatpush1.msra.mxu0 %v416
    %965 = vmatprep.subr.mxu0 0.0
    %966 = vmatpush1.msra.mxu0 %v417
    %967 = vmatprep.subr.mxu0 0.0
    %968 = vmatpush1.msra.mxu0 %v418
    %969 = vmatprep.subr.mxu0 0.0
    %970 = vmatpush1.msra.mxu0 %v419
    %971 = vmatprep.subr.mxu0 0.0
    %972 = vmatpush1.msra.mxu0 0.0
    %973 = vmatprep.subr.mxu0 0.0
    %974 = vmatpush1.msra.mxu0 0.0
    %975 = vmatprep.subr.mxu0 0.0
    %976 = vmatpush1.msra.mxu0 0.0
    %977 = vmatprep.subr.mxu0 0.0
    %978 = vmatpush1.msra.mxu0 0.0
    %979 = vmatprep.subr.mxu0 0.0
    %980 = vmatpush1.msra.mxu0 0.0
    %981 = vmatprep.subr.mxu0 0.0
    %982 = vmatpush1.msra.mxu0 0.0
    %983 = vmatprep.subr.mxu0 0.0
    %984 = vmatpush1.msra.mxu0 0.0
    %985 = vmatprep.subr.mxu0 0.0
    %986 = vmatpush1.msra.mxu0 0.0
    %987 = vmatprep.subr.mxu0 0.0
    %988 = vmatpush1.msra.mxu0 0.0
    %989 = vmatprep.subr.mxu0 0.0
    %990 = vmatpush1.msra.mxu0 0.0
    %991 = vmatprep.subr.mxu0 0.0
    %992 = vmatpush1.msra.mxu0 0.0
    %993 = vmatprep.subr.mxu0 0.0
    %994 = vmatpush1.msra.mxu0 0.0
    %995 = vmatprep.subr.mxu0 0.0
    %996 = vmatpush1.msra.mxu0 0.0
    %997 = vmatprep.subr.mxu0 0.0
    %998 = vmatpush1.msra.mxu0 0.0
    %999 = vmatprep.subr.mxu0 0.0
    %1000 = vmatpush1.msra.mxu0 0.0
    %1001 = vmatprep.subr.mxu0 0.0
    %1002 = vmatpush1.msra.mxu0 0.0
    %1003 = vmatprep.subr.mxu0 0.0
    %1004 = vmatpush1.msra.mxu0 0.0
    %1005 = vmatprep.subr.mxu0 0.0
    %1006 = vmatpush1.msra.mxu0 0.0
    %1007 = vmatprep.subr.mxu0 0.0
    %1008 = vmatpush1.msra.mxu0 0.0
    %1009 = vmatprep.subr.mxu0 0.0
    %1010 = vmatpush1.msra.mxu0 0.0
    %1011 = vmatprep.subr.mxu0 0.0
    %1012 = vmatpush1.msra.mxu0 0.0
    %1013 = vmatprep.subr.mxu0 0.0
    %1014 = vmatpush1.msra.mxu0 0.0
    %1015 = vmatprep.subr.mxu0 0.0
    %1016 = vmatpush1.msra.mxu0 0.0
    %1017 = vmatprep.subr.mxu0 0.0
    %1018 = vmatpush1.msra.mxu0 0.0
    %1019 = vmatprep.subr.mxu0 0.0
    %1020 = vmatpush1.msra.mxu0 0.0
    %1021 = vmatprep.subr.mxu0 0.0
    %1022 = vmatpush1.msra.mxu0 0.0
    %1023 = vmatprep.subr.mxu0 0.0
    %1024 = vmatpush1.msra.mxu0 0.0
    %1025 = vmatprep.subr.mxu0 0.0
    %1026 = vmatpush1.msra.mxu0 0.0
    %1027 = vmatprep.mubr.f32.mxu0 0.0
    %1028 = vmatmul.mubr.f32.gmra.mrb[0].mxu0 %v498
    %v1029 = vpop.f32.mrb[0].mxu0
    %v1030 = vadd.f32 %v439, %v1029
    %v1031 = vpop.f32.mrb[0].mxu0
    %1032 = vmatprep.mubr.f32.mxu0 0.0
    %1033 = vmatmul.mubr.f32.gmra.mrb[0].mxu0 %v501
    %v1034 = vpop.f32.mrb[0].mxu0
    %v1035 = vadd.f32 %v444, %v1034
    %v1036 = vpop.f32.mrb[0].mxu0
    %1037 = vmatprep.mubr.f32.mxu0 0.0
    %1038 = vmatmul.mubr.f32.gmra.mrb[0].mxu0 %v504
    %v1039 = vpop.f32.mrb[0].mxu0
    %v1040 = vadd.f32 %v449, %v1039
    %v1041 = vpop.f32.mrb[0].mxu0
    %1042 = vmatprep.mubr.f32.mxu0 0.0
    %1043 = vmatmul.mubr.f32.gmra.mrb[0].mxu0 %v507
    %v1044 = vpop.f32.mrb[0].mxu0
    %v1045 = vadd.f32 %v454, %v1044
    %v1046 = vpop.f32.mrb[0].mxu0
    %1047 = vmatprep.mubr.f32.mxu0 0.0
    %1048 = vmatmul.mubr.f32.gmra.mrb[0].mxu0 %v510
    %v1049 = vpop.f32.mrb[0].mxu0
    %v1050 = vadd.f32 %v459, %v1049
    %v1051 = vpop.f32.mrb[0].mxu0
    %1052 = vmatprep.mubr.f32.mxu0 0.0
    %1053 = vmatmul.mubr.f32.gmra.mrb[0].mxu0 %v513
    %v1054 = vpop.f32.mrb[0].mxu0
    %v1055 = vadd.f32 %v464, %v1054
    %v1056 = vpop.f32.mrb[0].mxu0
    %1057 = vmatprep.mubr.f32.mxu0 0.0
    %1058 = vmatmul.mubr.f32.gmra.mrb[0].mxu0 %v516
    %v1059 = vpop.f32.mrb[0].mxu0
    %v1060 = vadd.f32 %v469, %v1059
    %v1061 = vpop.f32.mrb[0].mxu0
    %1062 = vmatprep.mubr.f32.mxu0 0.0
    %1063 = vmatmul.mubr.f32.gmra.mrb[0].mxu0 %v519
    %v1064 = vpop.f32.mrb[0].mxu0
    %v1065 = vadd.f32 %v474, %v1064
    %v1066 = vpop.f32.mrb[0].mxu0
    %1067 = vmatprep.mubr.f32.mxu0 0.0
    %1068 = vmatmul.mubr.f32.gmra.mrb[0].mxu0 %v522
    %v1069 = vpop.f32.mrb[0].mxu0
    %v1070 = vadd.f32 %v479, %v1069
    %v1071 = vpop.f32.mrb[0].mxu0
    %1072 = vmatprep.mubr.f32.mxu0 0.0
    %1073 = vmatmul.mubr.f32.gmra.mrb[0].mxu0 %v525
    %v1074 = vpop.f32.mrb[0].mxu0
    %v1075 = vadd.f32 %v484, %v1074
    %v1076 = vpop.f32.mrb[0].mxu0
    %1077 = vmatprep.mubr.f32.mxu0 0.0
    %1078 = vmatmul.mubr.f32.gmra.mrb[0].mxu0 %v528
    %v1079 = vpop.f32.mrb[0].mxu0
    %v1080 = vadd.f32 %v489, %v1079
    %v1081 = vpop.f32.mrb[0].mxu0
    %1082 = vmatprep.mubr.f32.mxu0 0.0
    %1083 = vmatmul.mubr.f32.gmra.mrb[0].mxu0 %v531
    %v1084 = vpop.f32.mrb[0].mxu0
    %v1085 = vadd.f32 %v494, %v1084
    %v1086 = vpop.f32.mrb[0].mxu0
    %1087 = vdwg.mxu0
    %1088 = vmatprep.subr.mxu0 0.0
    %1089 = vmatpush1.msra.mxu0 %v959
    %1090 = vmatprep.subr.mxu0 0.0
    %1091 = vmatpush1.msra.mxu0 %v960
    %1092 = vmatprep.subr.mxu0 0.0
    %1093 = vmatpush1.msra.mxu0 %v961
    %1094 = vmatprep.subr.mxu0 0.0
    %1095 = vmatpush1.msra.mxu0 %v962
    %1096 = vmatprep.subr.mxu0 0.0
    %1097 = vmatpush1.msra.mxu0 0.0
    %1098 = vmatprep.subr.mxu0 0.0
    %1099 = vmatpush1.msra.mxu0 0.0
    %1100 = vmatprep.subr.mxu0 0.0
    %1101 = vmatpush1.msra.mxu0 0.0
    %1102 = vmatprep.subr.mxu0 0.0
    %1103 = vmatpush1.msra.mxu0 0.0
    %1104 = vmatprep.subr.mxu0 0.0
    %1105 = vmatpush1.msra.mxu0 0.0
    %1106 = vmatprep.subr.mxu0 0.0
    %1107 = vmatpush1.msra.mxu0 0.0
    %1108 = vmatprep.subr.mxu0 0.0
    %1109 = vmatpush1.msra.mxu0 0.0
    %1110 = vmatprep.subr.mxu0 0.0
    %1111 = vmatpush1.msra.mxu0 0.0
    %1112 = vmatprep.subr.mxu0 0.0
    %1113 = vmatpush1.msra.mxu0 0.0
    %1114 = vmatprep.subr.mxu0 0.0
    %1115 = vmatpush1.msra.mxu0 0.0
    %1116 = vmatprep.subr.mxu0 0.0
    %1117 = vmatpush1.msra.mxu0 0.0
    %1118 = vmatprep.subr.mxu0 0.0
    %1119 = vmatpush1.msra.mxu0 0.0
    %1120 = vmatprep.subr.mxu0 0.0
    %1121 = vmatpush1.msra.mxu0 0.0
    %1122 = vmatprep.subr.mxu0 0.0
    %1123 = vmatpush1.msra.mxu0 0.0
    %1124 = vmatprep.subr.mxu0 0.0
    %1125 = vmatpush1.msra.mxu0 0.0
    %1126 = vmatprep.subr.mxu0 0.0
    %1127 = vmatpush1.msra.mxu0 0.0
    %1128 = vmatprep.subr.mxu0 0.0
    %1129 = vmatpush1.msra.mxu0 0.0
    %1130 = vmatprep.subr.mxu0 0.0
    %1131 = vmatpush1.msra.mxu0 0.0
    %1132 = vmatprep.subr.mxu0 0.0
    %1133 = vmatpush1.msra.mxu0 0.0
    %1134 = vmatprep.subr.mxu0 0.0
    %1135 = vmatpush1.msra.mxu0 0.0
    %1136 = vmatprep.subr.mxu0 0.0
    %1137 = vmatpush1.msra.mxu0 0.0
    %1138 = vmatprep.subr.mxu0 0.0
    %1139 = vmatpush1.msra.mxu0 0.0
    %1140 = vmatprep.subr.mxu0 0.0
    %1141 = vmatpush1.msra.mxu0 0.0
    %1142 = vmatprep.subr.mxu0 0.0
    %1143 = vmatpush1.msra.mxu0 0.0
    %1144 = vmatprep.subr.mxu0 0.0
    %1145 = vmatpush1.msra.mxu0 0.0
    %1146 = vmatprep.subr.mxu0 0.0
    %1147 = vmatpush1.msra.mxu0 0.0
    %1148 = vmatprep.subr.mxu0 0.0
    %1149 = vmatpush1.msra.mxu0 0.0
    %1150 = vmatprep.subr.mxu0 0.0
    %1151 = vmatpush1.msra.mxu0 0.0
    %1152 = vmatprep.mubr.f32.mxu0 0.0
    %1153 = vmatmul.mubr.f32.gmra.mrb[0].mxu0 %v719
    %v1154 = vpop.f32.mrb[0].mxu0
    %v1155 = vadd.f32 %v661, %v1154
    %v1156 = vpop.f32.mrb[0].mxu0
    %1157 = vmatprep.mubr.f32.mxu0 0.0
    %1158 = vmatmul.mubr.f32.gmra.mrb[0].mxu0 %v722
    %v1159 = vpop.f32.mrb[0].mxu0
    %v1160 = vadd.f32 %v666, %v1159
    %v1161 = vpop.f32.mrb[0].mxu0
    %1162 = vmatprep.mubr.f32.mxu0 0.0
    %1163 = vmatmul.mubr.f32.gmra.mrb[0].mxu0 %v725
    %v1164 = vpop.f32.mrb[0].mxu0
    %v1165 = vadd.f32 %v671, %v1164
    %v1166 = vpop.f32.mrb[0].mxu0
    %1167 = vmatprep.mubr.f32.mxu0 0.0
    %1168 = vmatmul.mubr.f32.gmra.mrb[0].mxu0 %v728
    %v1169 = vpop.f32.mrb[0].mxu0
    %v1170 = vadd.f32 %v676, %v1169
    %v1171 = vpop.f32.mrb[0].mxu0
    %1172 = vmatprep.mubr.f32.mxu0 0.0
    %1173 = vmatmul.mubr.f32.gmra.mrb[0].mxu0 %v731
    %v1174 = vpop.f32.mrb[0].mxu0
    %v1175 = vadd.f32 %v681, %v1174
    %v1176 = vpop.f32.mrb[0].mxu0
    %1177 = vmatprep.mubr.f32.mxu0 0.0
    %1178 = vmatmul.mubr.f32.gmra.mrb[0].mxu0 %v734
    %v1179 = vpop.f32.mrb[0].mxu0
    %v1180 = vadd.f32 %v686, %v1179
    %v1181 = vpop.f32.mrb[0].mxu0
    %1182 = vmatprep.mubr.f32.mxu0 0.0
    %1183 = vmatmul.mubr.f32.gmra.mrb[0].mxu0 %v737
    %v1184 = vpop.f32.mrb[0].mxu0
    %v1185 = vadd.f32 %v691, %v1184
    %v1186 = vpop.f32.mrb[0].mxu0
    %1187 = vmatprep.mubr.f32.mxu0 0.0
    %1188 = vmatmul.mubr.f32.gmra.mrb[0].mxu0 %v740
    %v1189 = vpop.f32.mrb[0].mxu0
    %v1190 = vadd.f32 %v696, %v1189
    %v1191 = vpop.f32.mrb[0].mxu0
    %1192 = vmatprep.mubr.f32.mxu0 0.0
    %1193 = vmatmul.mubr.f32.gmra.mrb[0].mxu0 %v743
    %v1194 = vpop.f32.mrb[0].mxu0
    %v1195 = vadd.f32 %v701, %v1194
    %v1196 = vpop.f32.mrb[0].mxu0
    %1197 = vmatprep.mubr.f32.mxu0 0.0
    %1198 = vmatmul.mubr.f32.gmra.mrb[0].mxu0 %v746
    %v1199 = vpop.f32.mrb[0].mxu0
    %v1200 = vadd.f32 %v706, %v1199
    %v1201 = vpop.f32.mrb[0].mxu0
    %1202 = vmatprep.mubr.f32.mxu0 0.0
    %1203 = vmatmul.mubr.f32.gmra.mrb[0].mxu0 %v749
    %v1204 = vpop.f32.mrb[0].mxu0
    %v1205 = vadd.f32 %v711, %v1204
    %v1206 = vpop.f32.mrb[0].mxu0
    %1207 = vmatprep.mubr.f32.mxu0 0.0
    %1208 = vmatmul.mubr.f32.gmra.mrb[0].mxu0 %v752
    %v1209 = vpop.f32.mrb[0].mxu0
    %v1210 = vadd.f32 %v716, %v1209
    %v1211 = vpop.f32.mrb[0].mxu0
    %1212 = vdwg.mxu0
    %v1213 = vadd.f32 %v1030, %v1155
    %v1214 = vadd.f32 %v1035, %v1160
    %v1215 = vadd.f32 %v1040, %v1165
    %v1216 = vadd.f32 %v1045, %v1170
    %v1217 = vadd.f32 %v1050, %v1175
    %v1218 = vadd.f32 %v1055, %v1180
    %v1219 = vadd.f32 %v1060, %v1185
    %v1220 = vadd.f32 %v1065, %v1190
    %v1221 = vxor.u32 %v1213, 2147483648
    %v1222 = vxor.u32 %v1214, 2147483648
    %v1223 = vxor.u32 %v1215, 2147483648
    %v1224 = vxor.u32 %v1216, 2147483648
    %v1225 = vxor.u32 %v1217, 2147483648
    %v1226 = vxor.u32 %v1218, 2147483648
    %v1227 = vxor.u32 %v1219, 2147483648
    %v1228 = vxor.u32 %v1220, 2147483648
    %v1229 = vmul.f32 %v1221, 1.442695
    %v1230 = vpow.pop %v1229
    %v1231 = vmul.f32 %v1222, 1.442695
    %v1232 = vpow.pop %v1231
    %v1233 = vmul.f32 %v1223, 1.442695
    %v1234 = vpow.pop %v1233
    %v1235 = vmul.f32 %v1224, 1.442695
    %v1236 = vpow.pop %v1235
    %v1237 = vmul.f32 %v1225, 1.442695
    %v1238 = vpow.pop %v1237
    %v1239 = vmul.f32 %v1226, 1.442695
    %v1240 = vpow.pop %v1239
    %v1241 = vmul.f32 %v1227, 1.442695
    %v1242 = vpow.pop %v1241
    %v1243 = vmul.f32 %v1228, 1.442695
    %v1244 = vpow.pop %v1243
    %v1245 = vadd.f32 %v1230, 1.0
    %v1246 = vadd.f32 %v1232, 1.0
    %v1247 = vadd.f32 %v1234, 1.0
    %v1248 = vadd.f32 %v1236, 1.0
    %v1249 = vadd.f32 %v1238, 1.0
    %v1250 = vadd.f32 %v1240, 1.0
    %v1251 = vadd.f32 %v1242, 1.0
    %v1252 = vadd.f32 %v1244, 1.0
    %v1253 = vrcp.pop %v1245
    %v1254 = vmul.f32 1.0, %v1253
    %v1255 = vrcp.pop %v1246
    %v1256 = vmul.f32 1.0, %v1255
    %v1257 = vrcp.pop %v1247
    %v1258 = vmul.f32 1.0, %v1257
    %v1259 = vrcp.pop %v1248
    %v1260 = vmul.f32 1.0, %v1259
    %v1261 = vrcp.pop %v1249
    %v1262 = vmul.f32 1.0, %v1261
    %v1263 = vrcp.pop %v1250
    %v1264 = vmul.f32 1.0, %v1263
    %v1265 = vrcp.pop %v1251
    %v1266 = vmul.f32 1.0, %v1265
    %v1267 = vrcp.pop %v1252
    %v1268 = vmul.f32 1.0, %v1267
    %v1269 = vmul.f32 %v1254, %v1195
    %v1270 = vmul.f32 %v1256, %v1200
    %v1271 = vmul.f32 %v1258, %v1205
    %v1272 = vmul.f32 %v1260, %v1210
    %v1273 = vadd.f32 %v1070, %v1269
    %v1274 = vadd.f32 %v1075, %v1270
    %v1275 = vadd.f32 %v1080, %v1271
    %v1276 = vadd.f32 %v1085, %v1272
    %v1277 = vtanh.pop %v1273
    %v1278 = vtanh.pop %v1274
    %v1279 = vtanh.pop %v1275
    %v1280 = vtanh.pop %v1276
    %v1281 = vsub.f32 1.0, %v1262
    %v1282 = vsub.f32 1.0, %v1264
    %v1283 = vsub.f32 1.0, %v1266
    %v1284 = vsub.f32 1.0, %v1268
    %v1285 = vmul.f32 %v1281, %v1277
    %v1286 = vmul.f32 %v1282, %v1278
    %v1287 = vmul.f32 %v1283, %v1279
    %v1288 = vmul.f32 %v1284, %v1280
    %v1289 = vmul.f32 %v1262, %v959
    %v1290 = vmul.f32 %v1264, %v960
    %v1291 = vmul.f32 %v1266, %v961
    %v1292 = vmul.f32 %v1268, %v962
    %v1293 = vadd.f32 %v1285, %v1289
    %v1294 = vadd.f32 %v1286, %v1290
    %v1295 = vadd.f32 %v1287, %v1291
    %v1296 = vadd.f32 %v1288, %v1292
    %1297 = vmatprep.subr.mxu0 0.0
    %1298 = vmatpush1.msra.mxu0 %v420
    %1299 = vmatprep.subr.mxu0 0.0
    %1300 = vmatpush1.msra.mxu0 %v421
    %1301 = vmatprep.subr.mxu0 0.0
    %1302 = vmatpush1.msra.mxu0 %v422
    %1303 = vmatprep.subr.mxu0 0.0
    %1304 = vmatpush1.msra.mxu0 %v423
    %1305 = vmatprep.subr.mxu0 0.0
    %1306 = vmatpush1.msra.mxu0 0.0
    %1307 = vmatprep.subr.mxu0 0.0
    %1308 = vmatpush1.msra.mxu0 0.0
    %1309 = vmatprep.subr.mxu0 0.0
    %1310 = vmatpush1.msra.mxu0 0.0
    %1311 = vmatprep.subr.mxu0 0.0
    %1312 = vmatpush1.msra.mxu0 0.0
    %1313 = vmatprep.subr.mxu0 0.0
    %1314 = vmatpush1.msra.mxu0 0.0
    %1315 = vmatprep.subr.mxu0 0.0
    %1316 = vmatpush1.msra.mxu0 0.0
    %1317 = vmatprep.subr.mxu0 0.0
    %1318 = vmatpush1.msra.mxu0 0.0
    %1319 = vmatprep.subr.mxu0 0.0
    %1320 = vmatpush1.msra.mxu0 0.0
    %1321 = vmatprep.subr.mxu0 0.0
    %1322 = vmatpush1.msra.mxu0 0.0
    %1323 = vmatprep.subr.mxu0 0.0
    %1324 = vmatpush1.msra.mxu0 0.0
    %1325 = vmatprep.subr.mxu0 0.0
    %1326 = vmatpush1.msra.mxu0 0.0
    %1327 = vmatprep.subr.mxu0 0.0
    %1328 = vmatpush1.msra.mxu0 0.0
    %1329 = vmatprep.subr.mxu0 0.0
    %1330 = vmatpush1.msra.mxu0 0.0
    %1331 = vmatprep.subr.mxu0 0.0
    %1332 = vmatpush1.msra.mxu0 0.0
    %1333 = vmatprep.subr.mxu0 0.0
    %1334 = vmatpush1.msra.mxu0 0.0
    %1335 = vmatprep.subr.mxu0 0.0
    %1336 = vmatpush1.msra.mxu0 0.0
    %1337 = vmatprep.subr.mxu0 0.0
    %1338 = vmatpush1.msra.mxu0 0.0
    %1339 = vmatprep.subr.mxu0 0.0
    %1340 = vmatpush1.msra.mxu0 0.0
    %1341 = vmatprep.subr.mxu0 0.0
    %1342 = vmatpush1.msra.mxu0 0.0
    %1343 = vmatprep.subr.mxu0 0.0
    %1344 = vmatpush1.msra.mxu0 0.0
    %1345 = vmatprep.subr.mxu0 0.0
    %1346 = vmatpush1.msra.mxu0 0.0
    %1347 = vmatprep.subr.mxu0 0.0
    %1348 = vmatpush1.msra.mxu0 0.0
    %1349 = vmatprep.subr.mxu0 0.0
    %1350 = vmatpush1.msra.mxu0 0.0
    %1351 = vmatprep.subr.mxu0 0.0
    %1352 = vmatpush1.msra.mxu0 0.0
    %1353 = vmatprep.subr.mxu0 0.0
    %1354 = vmatpush1.msra.mxu0 0.0
    %1355 = vmatprep.subr.mxu0 0.0
    %1356 = vmatpush1.msra.mxu0 0.0
    %1357 = vmatprep.subr.mxu0 0.0
    %1358 = vmatpush1.msra.mxu0 0.0
    %1359 = vmatprep.subr.mxu0 0.0
    %1360 = vmatpush1.msra.mxu0 0.0
    %1361 = vmatprep.mubr.f32.mxu0 0.0
    %1362 = vmatmul.mubr.f32.gmra.mrb[0].mxu0 %v498
    %v1363 = vpop.f32.mrb[0].mxu0
    %v1364 = vadd.f32 %v439, %v1363
    %v1365 = vpop.f32.mrb[0].mxu0
    %1366 = vmatprep.mubr.f32.mxu0 0.0
    %1367 = vmatmul.mubr.f32.gmra.mrb[0].mxu0 %v501
    %v1368 = vpop.f32.mrb[0].mxu0
    %v1369 = vadd.f32 %v444, %v1368
    %v1370 = vpop.f32.mrb[0].mxu0
    %1371 = vmatprep.mubr.f32.mxu0 0.0
    %1372 = vmatmul.mubr.f32.gmra.mrb[0].mxu0 %v504
    %v1373 = vpop.f32.mrb[0].mxu0
    %v1374 = vadd.f32 %v449, %v1373
    %v1375 = vpop.f32.mrb[0].mxu0
    %1376 = vmatprep.mubr.f32.mxu0 0.0
    %1377 = vmatmul.mubr.f32.gmra.mrb[0].mxu0 %v507
    %v1378 = vpop.f32.mrb[0].mxu0
    %v1379 = vadd.f32 %v454, %v1378
    %v1380 = vpop.f32.mrb[0].mxu0
    %1381 = vmatprep.mubr.f32.mxu0 0.0
    %1382 = vmatmul.mubr.f32.gmra.mrb[0].mxu0 %v510
    %v1383 = vpop.f32.mrb[0].mxu0
    %v1384 = vadd.f32 %v459, %v1383
    %v1385 = vpop.f32.mrb[0].mxu0
    %1386 = vmatprep.mubr.f32.mxu0 0.0
    %1387 = vmatmul.mubr.f32.gmra.mrb[0].mxu0 %v513
    %v1388 = vpop.f32.mrb[0].mxu0
    %v1389 = vadd.f32 %v464, %v1388
    %v1390 = vpop.f32.mrb[0].mxu0
    %1391 = vmatprep.mubr.f32.mxu0 0.0
    %1392 = vmatmul.mubr.f32.gmra.mrb[0].mxu0 %v516
    %v1393 = vpop.f32.mrb[0].mxu0
    %v1394 = vadd.f32 %v469, %v1393
    %v1395 = vpop.f32.mrb[0].mxu0
    %1396 = vmatprep.mubr.f32.mxu0 0.0
    %1397 = vmatmul.mubr.f32.gmra.mrb[0].mxu0 %v519
    %v1398 = vpop.f32.mrb[0].mxu0
    %v1399 = vadd.f32 %v474, %v1398
    %v1400 = vpop.f32.mrb[0].mxu0
    %1401 = vmatprep.mubr.f32.mxu0 0.0
    %1402 = vmatmul.mubr.f32.gmra.mrb[0].mxu0 %v522
    %v1403 = vpop.f32.mrb[0].mxu0
    %v1404 = vadd.f32 %v479, %v1403
    %v1405 = vpop.f32.mrb[0].mxu0
    %1406 = vmatprep.mubr.f32.mxu0 0.0
    %1407 = vmatmul.mubr.f32.gmra.mrb[0].mxu0 %v525
    %v1408 = vpop.f32.mrb[0].mxu0
    %v1409 = vadd.f32 %v484, %v1408
    %v1410 = vpop.f32.mrb[0].mxu0
    %1411 = vmatprep.mubr.f32.mxu0 0.0
    %1412 = vmatmul.mubr.f32.gmra.mrb[0].mxu0 %v528
    %v1413 = vpop.f32.mrb[0].mxu0
    %v1414 = vadd.f32 %v489, %v1413
    %v1415 = vpop.f32.mrb[0].mxu0
    %1416 = vmatprep.mubr.f32.mxu0 0.0
    %1417 = vmatmul.mubr.f32.gmra.mrb[0].mxu0 %v531
    %v1418 = vpop.f32.mrb[0].mxu0
    %v1419 = vadd.f32 %v494, %v1418
    %v1420 = vpop.f32.mrb[0].mxu0
    %1421 = vdwg.mxu0
    %1422 = vmatprep.subr.mxu0 0.0
    %1423 = vmatpush1.msra.mxu0 %v1293
    %1424 = vmatprep.subr.mxu0 0.0
    %1425 = vmatpush1.msra.mxu0 %v1294
    %1426 = vmatprep.subr.mxu0 0.0
    %1427 = vmatpush1.msra.mxu0 %v1295
    %1428 = vmatprep.subr.mxu0 0.0
    %1429 = vmatpush1.msra.mxu0 %v1296
    %1430 = vmatprep.subr.mxu0 0.0
    %1431 = vmatpush1.msra.mxu0 0.0
    %1432 = vmatprep.subr.mxu0 0.0
    %1433 = vmatpush1.msra.mxu0 0.0
    %1434 = vmatprep.subr.mxu0 0.0
    %1435 = vmatpush1.msra.mxu0 0.0
    %1436 = vmatprep.subr.mxu0 0.0
    %1437 = vmatpush1.msra.mxu0 0.0
    %1438 = vmatprep.subr.mxu0 0.0
    %1439 = vmatpush1.msra.mxu0 0.0
    %1440 = vmatprep.subr.mxu0 0.0
    %1441 = vmatpush1.msra.mxu0 0.0
    %1442 = vmatprep.subr.mxu0 0.0
    %1443 = vmatpush1.msra.mxu0 0.0
    %1444 = vmatprep.subr.mxu0 0.0
    %1445 = vmatpush1.msra.mxu0 0.0
    %1446 = vmatprep.subr.mxu0 0.0
    %1447 = vmatpush1.msra.mxu0 0.0
    %1448 = vmatprep.subr.mxu0 0.0
    %1449 = vmatpush1.msra.mxu0 0.0
    %1450 = vmatprep.subr.mxu0 0.0
    %1451 = vmatpush1.msra.mxu0 0.0
    %1452 = vmatprep.subr.mxu0 0.0
    %1453 = vmatpush1.msra.mxu0 0.0
    %1454 = vmatprep.subr.mxu0 0.0
    %1455 = vmatpush1.msra.mxu0 0.0
    %1456 = vmatprep.subr.mxu0 0.0
    %1457 = vmatpush1.msra.mxu0 0.0
    %1458 = vmatprep.subr.mxu0 0.0
    %1459 = vmatpush1.msra.mxu0 0.0
    %1460 = vmatprep.subr.mxu0 0.0
    %1461 = vmatpush1.msra.mxu0 0.0
    %1462 = vmatprep.subr.mxu0 0.0
    %1463 = vmatpush1.msra.mxu0 0.0
    %1464 = vmatprep.subr.mxu0 0.0
    %1465 = vmatpush1.msra.mxu0 0.0
    %1466 = vmatprep.subr.mxu0 0.0
    %1467 = vmatpush1.msra.mxu0 0.0
    %1468 = vmatprep.subr.mxu0 0.0
    %1469 = vmatpush1.msra.mxu0 0.0
    %1470 = vmatprep.subr.mxu0 0.0
    %1471 = vmatpush1.msra.mxu0 0.0
    %1472 = vmatprep.subr.mxu0 0.0
    %1473 = vmatpush1.msra.mxu0 0.0
    %1474 = vmatprep.subr.mxu0 0.0
    %1475 = vmatpush1.msra.mxu0 0.0
    %1476 = vmatprep.subr.mxu0 0.0
    %1477 = vmatpush1.msra.mxu0 0.0
    %1478 = vmatprep.subr.mxu0 0.0
    %1479 = vmatpush1.msra.mxu0 0.0
    %1480 = vmatprep.subr.mxu0 0.0
    %1481 = vmatpush1.msra.mxu0 0.0
    %1482 = vmatprep.subr.mxu0 0.0
    %1483 = vmatpush1.msra.mxu0 0.0
    %1484 = vmatprep.subr.mxu0 0.0
    %1485 = vmatpush1.msra.mxu0 0.0
    %1486 = vmatprep.mubr.f32.mxu0 0.0
    %1487 = vmatmul.mubr.f32.gmra.mrb[0].mxu0 %v719
    %v1488 = vpop.f32.mrb[0].mxu0
    %v1489 = vadd.f32 %v661, %v1488
    %v1490 = vpop.f32.mrb[0].mxu0
    %1491 = vmatprep.mubr.f32.mxu0 0.0
    %1492 = vmatmul.mubr.f32.gmra.mrb[0].mxu0 %v722
    %v1493 = vpop.f32.mrb[0].mxu0
    %v1494 = vadd.f32 %v666, %v1493
    %v1495 = vpop.f32.mrb[0].mxu0
    %1496 = vmatprep.mubr.f32.mxu0 0.0
    %1497 = vmatmul.mubr.f32.gmra.mrb[0].mxu0 %v725
    %v1498 = vpop.f32.mrb[0].mxu0
    %v1499 = vadd.f32 %v671, %v1498
    %v1500 = vpop.f32.mrb[0].mxu0
    %1501 = vmatprep.mubr.f32.mxu0 0.0
    %1502 = vmatmul.mubr.f32.gmra.mrb[0].mxu0 %v728
    %v1503 = vpop.f32.mrb[0].mxu0
    %v1504 = vadd.f32 %v676, %v1503
    %v1505 = vpop.f32.mrb[0].mxu0
    %1506 = vmatprep.mubr.f32.mxu0 0.0
    %1507 = vmatmul.mubr.f32.gmra.mrb[0].mxu0 %v731
    %v1508 = vpop.f32.mrb[0].mxu0
    %v1509 = vadd.f32 %v681, %v1508
    %v1510 = vpop.f32.mrb[0].mxu0
    %1511 = vmatprep.mubr.f32.mxu0 0.0
    %1512 = vmatmul.mubr.f32.gmra.mrb[0].mxu0 %v734
    %v1513 = vpop.f32.mrb[0].mxu0
    %v1514 = vadd.f32 %v686, %v1513
    %v1515 = vpop.f32.mrb[0].mxu0
    %1516 = vmatprep.mubr.f32.mxu0 0.0
    %1517 = vmatmul.mubr.f32.gmra.mrb[0].mxu0 %v737
    %v1518 = vpop.f32.mrb[0].mxu0
    %v1519 = vadd.f32 %v691, %v1518
    %v1520 = vpop.f32.mrb[0].mxu0
    %1521 = vmatprep.mubr.f32.mxu0 0.0
    %1522 = vmatmul.mubr.f32.gmra.mrb[0].mxu0 %v740
    %v1523 = vpop.f32.mrb[0].mxu0
    %v1524 = vadd.f32 %v696, %v1523
    %v1525 = vpop.f32.mrb[0].mxu0
    %1526 = vmatprep.mubr.f32.mxu0 0.0
    %1527 = vmatmul.mubr.f32.gmra.mrb[0].mxu0 %v743
    %v1528 = vpop.f32.mrb[0].mxu0
    %v1529 = vadd.f32 %v701, %v1528
    %v1530 = vpop.f32.mrb[0].mxu0
    %1531 = vmatprep.mubr.f32.mxu0 0.0
    %1532 = vmatmul.mubr.f32.gmra.mrb[0].mxu0 %v746
    %v1533 = vpop.f32.mrb[0].mxu0
    %v1534 = vadd.f32 %v706, %v1533
    %v1535 = vpop.f32.mrb[0].mxu0
    %1536 = vmatprep.mubr.f32.mxu0 0.0
    %1537 = vmatmul.mubr.f32.gmra.mrb[0].mxu0 %v749
    %v1538 = vpop.f32.mrb[0].mxu0
    %v1539 = vadd.f32 %v711, %v1538
    %v1540 = vpop.f32.mrb[0].mxu0
    %1541 = vmatprep.mubr.f32.mxu0 0.0
    %1542 = vmatmul.mubr.f32.gmra.mrb[0].mxu0 %v752
    %v1543 = vpop.f32.mrb[0].mxu0
    %v1544 = vadd.f32 %v716, %v1543
    %v1545 = vpop.f32.mrb[0].mxu0
    %1546 = vdwg.mxu0
    %v1547 = vadd.f32 %v1364, %v1489
    %v1548 = vadd.f32 %v1369, %v1494
    %v1549 = vadd.f32 %v1374, %v1499
    %v1550 = vadd.f32 %v1379, %v1504
    %v1551 = vadd.f32 %v1384, %v1509
    %v1552 = vadd.f32 %v1389, %v1514
    %v1553 = vadd.f32 %v1394, %v1519
    %v1554 = vadd.f32 %v1399, %v1524
    %v1555 = vxor.u32 %v1547, 2147483648
    %v1556 = vxor.u32 %v1548, 2147483648
    %v1557 = vxor.u32 %v1549, 2147483648
    %v1558 = vxor.u32 %v1550, 2147483648
    %v1559 = vxor.u32 %v1551, 2147483648
    %v1560 = vxor.u32 %v1552, 2147483648
    %v1561 = vxor.u32 %v1553, 2147483648
    %v1562 = vxor.u32 %v1554, 2147483648
    %v1563 = vmul.f32 %v1555, 1.442695
    %v1564 = vpow.pop %v1563
    %v1565 = vmul.f32 %v1556, 1.442695
    %v1566 = vpow.pop %v1565
    %v1567 = vmul.f32 %v1557, 1.442695
    %v1568 = vpow.pop %v1567
    %v1569 = vmul.f32 %v1558, 1.442695
    %v1570 = vpow.pop %v1569
    %v1571 = vmul.f32 %v1559, 1.442695
    %v1572 = vpow.pop %v1571
    %v1573 = vmul.f32 %v1560, 1.442695
    %v1574 = vpow.pop %v1573
    %v1575 = vmul.f32 %v1561, 1.442695
    %v1576 = vpow.pop %v1575
    %v1577 = vmul.f32 %v1562, 1.442695
    %v1578 = vpow.pop %v1577
    %v1579 = vadd.f32 %v1564, 1.0
    %v1580 = vadd.f32 %v1566, 1.0
    %v1581 = vadd.f32 %v1568, 1.0
    %v1582 = vadd.f32 %v1570, 1.0
    %v1583 = vadd.f32 %v1572, 1.0
    %v1584 = vadd.f32 %v1574, 1.0
    %v1585 = vadd.f32 %v1576, 1.0
    %v1586 = vadd.f32 %v1578, 1.0
    %v1587 = vrcp.pop %v1579
    %v1588 = vmul.f32 1.0, %v1587
    %v1589 = vrcp.pop %v1580
    %v1590 = vmul.f32 1.0, %v1589
    %v1591 = vrcp.pop %v1581
    %v1592 = vmul.f32 1.0, %v1591
    %v1593 = vrcp.pop %v1582
    %v1594 = vmul.f32 1.0, %v1593
    %v1595 = vrcp.pop %v1583
    %v1596 = vmul.f32 1.0, %v1595
    %v1597 = vrcp.pop %v1584
    %v1598 = vmul.f32 1.0, %v1597
    %v1599 = vrcp.pop %v1585
    %v1600 = vmul.f32 1.0, %v1599
    %v1601 = vrcp.pop %v1586
    %v1602 = vmul.f32 1.0, %v1601
    %v1603 = vmul.f32 %v1588, %v1529
    %v1604 = vmul.f32 %v1590, %v1534
    %v1605 = vmul.f32 %v1592, %v1539
    %v1606 = vmul.f32 %v1594, %v1544
    %v1607 = vadd.f32 %v1404, %v1603
    %v1608 = vadd.f32 %v1409, %v1604
    %v1609 = vadd.f32 %v1414, %v1605
    %v1610 = vadd.f32 %v1419, %v1606
    %v1611 = vtanh.pop %v1607
    %v1612 = vtanh.pop %v1608
    %v1613 = vtanh.pop %v1609
    %v1614 = vtanh.pop %v1610
    %v1615 = vsub.f32 1.0, %v1596
    %v1616 = vsub.f32 1.0, %v1598
    %v1617 = vsub.f32 1.0, %v1600
    %v1618 = vsub.f32 1.0, %v1602
    %v1619 = vmul.f32 %v1615, %v1611
    %v1620 = vmul.f32 %v1616, %v1612
    %v1621 = vmul.f32 %v1617, %v1613
    %v1622 = vmul.f32 %v1618, %v1614
    %v1623 = vmul.f32 %v1596, %v1293
    %v1624 = vmul.f32 %v1598, %v1294
    %v1625 = vmul.f32 %v1600, %v1295
    %v1626 = vmul.f32 %v1602, %v1296
    %v1627 = vadd.f32 %v1619, %v1623
    %v1628 = vadd.f32 %v1620, %v1624
    %v1629 = vadd.f32 %v1621, %v1625
    %v1630 = vadd.f32 %v1622, %v1626
    %1631 = vmatprep.subr.mxu0 0.0
    %1632 = vmatpush1.msra.mxu0 %v424
    %1633 = vmatprep.subr.mxu0 0.0
    %1634 = vmatpush1.msra.mxu0 %v425
    %1635 = vmatprep.subr.mxu0 0.0
    %1636 = vmatpush1.msra.mxu0 %v426
    %1637 = vmatprep.subr.mxu0 0.0
    %1638 = vmatpush1.msra.mxu0 %v427
    %1639 = vmatprep.subr.mxu0 0.0
    %1640 = vmatpush1.msra.mxu0 0.0
    %1641 = vmatprep.subr.mxu0 0.0
    %1642 = vmatpush1.msra.mxu0 0.0
    %1643 = vmatprep.subr.mxu0 0.0
    %1644 = vmatpush1.msra.mxu0 0.0
    %1645 = vmatprep.subr.mxu0 0.0
    %1646 = vmatpush1.msra.mxu0 0.0
    %1647 = vmatprep.subr.mxu0 0.0
    %1648 = vmatpush1.msra.mxu0 0.0
    %1649 = vmatprep.subr.mxu0 0.0
    %1650 = vmatpush1.msra.mxu0 0.0
    %1651 = vmatprep.subr.mxu0 0.0
    %1652 = vmatpush1.msra.mxu0 0.0
    %1653 = vmatprep.subr.mxu0 0.0
    %1654 = vmatpush1.msra.mxu0 0.0
    %1655 = vmatprep.subr.mxu0 0.0
    %1656 = vmatpush1.msra.mxu0 0.0
    %1657 = vmatprep.subr.mxu0 0.0
    %1658 = vmatpush1.msra.mxu0 0.0
    %1659 = vmatprep.subr.mxu0 0.0
    %1660 = vmatpush1.msra.mxu0 0.0
    %1661 = vmatprep.subr.mxu0 0.0
    %1662 = vmatpush1.msra.mxu0 0.0
    %1663 = vmatprep.subr.mxu0 0.0
    %1664 = vmatpush1.msra.mxu0 0.0
    %1665 = vmatprep.subr.mxu0 0.0
    %1666 = vmatpush1.msra.mxu0 0.0
    %1667 = vmatprep.subr.mxu0 0.0
    %1668 = vmatpush1.msra.mxu0 0.0
    %1669 = vmatprep.subr.mxu0 0.0
    %1670 = vmatpush1.msra.mxu0 0.0
    %1671 = vmatprep.subr.mxu0 0.0
    %1672 = vmatpush1.msra.mxu0 0.0
    %1673 = vmatprep.subr.mxu0 0.0
    %1674 = vmatpush1.msra.mxu0 0.0
    %1675 = vmatprep.subr.mxu0 0.0
    %1676 = vmatpush1.msra.mxu0 0.0
    %1677 = vmatprep.subr.mxu0 0.0
    %1678 = vmatpush1.msra.mxu0 0.0
    %1679 = vmatprep.subr.mxu0 0.0
    %1680 = vmatpush1.msra.mxu0 0.0
    %1681 = vmatprep.subr.mxu0 0.0
    %1682 = vmatpush1.msra.mxu0 0.0
    %1683 = vmatprep.subr.mxu0 0.0
    %1684 = vmatpush1.msra.mxu0 0.0
    %1685 = vmatprep.subr.mxu0 0.0
    %1686 = vmatpush1.msra.mxu0 0.0
    %1687 = vmatprep.subr.mxu0 0.0
    %1688 = vmatpush1.msra.mxu0 0.0
    %1689 = vmatprep.subr.mxu0 0.0
    %1690 = vmatpush1.msra.mxu0 0.0
    %1691 = vmatprep.subr.mxu0 0.0
    %1692 = vmatpush1.msra.mxu0 0.0
    %1693 = vmatprep.subr.mxu0 0.0
    %1694 = vmatpush1.msra.mxu0 0.0
    %1695 = vmatprep.mubr.f32.mxu0 0.0
    %1696 = vmatmul.mubr.f32.gmra.mrb[0].mxu0 %v498
    %v1697 = vpop.f32.mrb[0].mxu0
    %v1698 = vadd.f32 %v439, %v1697
    %v1699 = vpop.f32.mrb[0].mxu0
    %1700 = vmatprep.mubr.f32.mxu0 0.0
    %1701 = vmatmul.mubr.f32.gmra.mrb[0].mxu0 %v501
    %v1702 = vpop.f32.mrb[0].mxu0
    %v1703 = vadd.f32 %v444, %v1702
    %v1704 = vpop.f32.mrb[0].mxu0
    %1705 = vmatprep.mubr.f32.mxu0 0.0
    %1706 = vmatmul.mubr.f32.gmra.mrb[0].mxu0 %v504
    %v1707 = vpop.f32.mrb[0].mxu0
    %v1708 = vadd.f32 %v449, %v1707
    %v1709 = vpop.f32.mrb[0].mxu0
    %1710 = vmatprep.mubr.f32.mxu0 0.0
    %1711 = vmatmul.mubr.f32.gmra.mrb[0].mxu0 %v507
    %v1712 = vpop.f32.mrb[0].mxu0
    %v1713 = vadd.f32 %v454, %v1712
    %v1714 = vpop.f32.mrb[0].mxu0
    %1715 = vmatprep.mubr.f32.mxu0 0.0
    %1716 = vmatmul.mubr.f32.gmra.mrb[0].mxu0 %v510
    %v1717 = vpop.f32.mrb[0].mxu0
    %v1718 = vadd.f32 %v459, %v1717
    %v1719 = vpop.f32.mrb[0].mxu0
    %1720 = vmatprep.mubr.f32.mxu0 0.0
    %1721 = vmatmul.mubr.f32.gmra.mrb[0].mxu0 %v513
    %v1722 = vpop.f32.mrb[0].mxu0
    %v1723 = vadd.f32 %v464, %v1722
    %v1724 = vpop.f32.mrb[0].mxu0
    %1725 = vmatprep.mubr.f32.mxu0 0.0
    %1726 = vmatmul.mubr.f32.gmra.mrb[0].mxu0 %v516
    %v1727 = vpop.f32.mrb[0].mxu0
    %v1728 = vadd.f32 %v469, %v1727
    %v1729 = vpop.f32.mrb[0].mxu0
    %1730 = vmatprep.mubr.f32.mxu0 0.0
    %1731 = vmatmul.mubr.f32.gmra.mrb[0].mxu0 %v519
    %v1732 = vpop.f32.mrb[0].mxu0
    %v1733 = vadd.f32 %v474, %v1732
    %v1734 = vpop.f32.mrb[0].mxu0
    %1735 = vmatprep.mubr.f32.mxu0 0.0
    %1736 = vmatmul.mubr.f32.gmra.mrb[0].mxu0 %v522
    %v1737 = vpop.f32.mrb[0].mxu0
    %v1738 = vadd.f32 %v479, %v1737
    %v1739 = vpop.f32.mrb[0].mxu0
    %1740 = vmatprep.mubr.f32.mxu0 0.0
    %1741 = vmatmul.mubr.f32.gmra.mrb[0].mxu0 %v525
    %v1742 = vpop.f32.mrb[0].mxu0
    %v1743 = vadd.f32 %v484, %v1742
    %v1744 = vpop.f32.mrb[0].mxu0
    %1745 = vmatprep.mubr.f32.mxu0 0.0
    %1746 = vmatmul.mubr.f32.gmra.mrb[0].mxu0 %v528
    %v1747 = vpop.f32.mrb[0].mxu0
    %v1748 = vadd.f32 %v489, %v1747
    %v1749 = vpop.f32.mrb[0].mxu0
    %1750 = vmatprep.mubr.f32.mxu0 0.0
    %1751 = vmatmul.mubr.f32.gmra.mrb[0].mxu0 %v531
    %v1752 = vpop.f32.mrb[0].mxu0
    %v1753 = vadd.f32 %v494, %v1752
    %v1754 = vpop.f32.mrb[0].mxu0
    %1755 = vdwg.mxu0
    %1756 = vmatprep.subr.mxu0 0.0
    %1757 = vmatpush1.msra.mxu0 %v1627
    %1758 = vmatprep.subr.mxu0 0.0
    %1759 = vmatpush1.msra.mxu0 %v1628
    %1760 = vmatprep.subr.mxu0 0.0
    %1761 = vmatpush1.msra.mxu0 %v1629
    %1762 = vmatprep.subr.mxu0 0.0
    %1763 = vmatpush1.msra.mxu0 %v1630
    %1764 = vmatprep.subr.mxu0 0.0
    %1765 = vmatpush1.msra.mxu0 0.0
    %1766 = vmatprep.subr.mxu0 0.0
    %1767 = vmatpush1.msra.mxu0 0.0
    %1768 = vmatprep.subr.mxu0 0.0
    %1769 = vmatpush1.msra.mxu0 0.0
    %1770 = vmatprep.subr.mxu0 0.0
    %1771 = vmatpush1.msra.mxu0 0.0
    %1772 = vmatprep.subr.mxu0 0.0
    %1773 = vmatpush1.msra.mxu0 0.0
    %1774 = vmatprep.subr.mxu0 0.0
    %1775 = vmatpush1.msra.mxu0 0.0
    %1776 = vmatprep.subr.mxu0 0.0
    %1777 = vmatpush1.msra.mxu0 0.0
    %1778 = vmatprep.subr.mxu0 0.0
    %1779 = vmatpush1.msra.mxu0 0.0
    %1780 = vmatprep.subr.mxu0 0.0
    %1781 = vmatpush1.msra.mxu0 0.0
    %1782 = vmatprep.subr.mxu0 0.0
    %1783 = vmatpush1.msra.mxu0 0.0
    %1784 = vmatprep.subr.mxu0 0.0
    %1785 = vmatpush1.msra.mxu0 0.0
    %1786 = vmatprep.subr.mxu0 0.0
    %1787 = vmatpush1.msra.mxu0 0.0
    %1788 = vmatprep.subr.mxu0 0.0
    %1789 = vmatpush1.msra.mxu0 0.0
    %1790 = vmatprep.subr.mxu0 0.0
    %1791 = vmatpush1.msra.mxu0 0.0
    %1792 = vmatprep.subr.mxu0 0.0
    %1793 = vmatpush1.msra.mxu0 0.0
    %1794 = vmatprep.subr.mxu0 0.0
    %1795 = vmatpush1.msra.mxu0 0.0
    %1796 = vmatprep.subr.mxu0 0.0
    %1797 = vmatpush1.msra.mxu0 0.0
    %1798 = vmatprep.subr.mxu0 0.0
    %1799 = vmatpush1.msra.mxu0 0.0
    %1800 = vmatprep.subr.mxu0 0.0
    %1801 = vmatpush1.msra.mxu0 0.0
    %1802 = vmatprep.subr.mxu0 0.0
    %1803 = vmatpush1.msra.mxu0 0.0
    %1804 = vmatprep.subr.mxu0 0.0
    %1805 = vmatpush1.msra.mxu0 0.0
    %1806 = vmatprep.subr.mxu0 0.0
    %1807 = vmatpush1.msra.mxu0 0.0
    %1808 = vmatprep.subr.mxu0 0.0
    %1809 = vmatpush1.msra.mxu0 0.0
    %1810 = vmatprep.subr.mxu0 0.0
    %1811 = vmatpush1.msra.mxu0 0.0
    %1812 = vmatprep.subr.mxu0 0.0
    %1813 = vmatpush1.msra.mxu0 0.0
    %1814 = vmatprep.subr.mxu0 0.0
    %1815 = vmatpush1.msra.mxu0 0.0
    %1816 = vmatprep.subr.mxu0 0.0
    %1817 = vmatpush1.msra.mxu0 0.0
    %1818 = vmatprep.subr.mxu0 0.0
    %1819 = vmatpush1.msra.mxu0 0.0
    %1820 = vmatprep.mubr.f32.mxu0 0.0
    %1821 = vmatmul.mubr.f32.gmra.mrb[0].mxu0 %v719
    %v1822 = vpop.f32.mrb[0].mxu0
    %v1823 = vadd.f32 %v661, %v1822
    %v1824 = vpop.f32.mrb[0].mxu0
    %1825 = vmatprep.mubr.f32.mxu0 0.0
    %1826 = vmatmul.mubr.f32.gmra.mrb[0].mxu0 %v722
    %v1827 = vpop.f32.mrb[0].mxu0
    %v1828 = vadd.f32 %v666, %v1827
    %v1829 = vpop.f32.mrb[0].mxu0
    %1830 = vmatprep.mubr.f32.mxu0 0.0
    %1831 = vmatmul.mubr.f32.gmra.mrb[0].mxu0 %v725
    %v1832 = vpop.f32.mrb[0].mxu0
    %v1833 = vadd.f32 %v671, %v1832
    %v1834 = vpop.f32.mrb[0].mxu0
    %1835 = vmatprep.mubr.f32.mxu0 0.0
    %1836 = vmatmul.mubr.f32.gmra.mrb[0].mxu0 %v728
    %v1837 = vpop.f32.mrb[0].mxu0
    %v1838 = vadd.f32 %v676, %v1837
    %v1839 = vpop.f32.mrb[0].mxu0
    %1840 = vmatprep.mubr.f32.mxu0 0.0
    %1841 = vmatmul.mubr.f32.gmra.mrb[0].mxu0 %v731
    %v1842 = vpop.f32.mrb[0].mxu0
    %v1843 = vadd.f32 %v681, %v1842
    %v1844 = vpop.f32.mrb[0].mxu0
    %1845 = vmatprep.mubr.f32.mxu0 0.0
    %1846 = vmatmul.mubr.f32.gmra.mrb[0].mxu0 %v734
    %v1847 = vpop.f32.mrb[0].mxu0
    %v1848 = vadd.f32 %v686, %v1847
    %v1849 = vpop.f32.mrb[0].mxu0
    %1850 = vmatprep.mubr.f32.mxu0 0.0
    %1851 = vmatmul.mubr.f32.gmra.mrb[0].mxu0 %v737
    %v1852 = vpop.f32.mrb[0].mxu0
    %v1853 = vadd.f32 %v691, %v1852
    %v1854 = vpop.f32.mrb[0].mxu0
    %1855 = vmatprep.mubr.f32.mxu0 0.0
    %1856 = vmatmul.mubr.f32.gmra.mrb[0].mxu0 %v740
    %v1857 = vpop.f32.mrb[0].mxu0
    %v1858 = vadd.f32 %v696, %v1857
    %v1859 = vpop.f32.mrb[0].mxu0
    %1860 = vmatprep.mubr.f32.mxu0 0.0
    %1861 = vmatmul.mubr.f32.gmra.mrb[0].mxu0 %v743
    %v1862 = vpop.f32.mrb[0].mxu0
    %v1863 = vadd.f32 %v701, %v1862
    %v1864 = vpop.f32.mrb[0].mxu0
    %1865 = vmatprep.mubr.f32.mxu0 0.0
    %1866 = vmatmul.mubr.f32.gmra.mrb[0].mxu0 %v746
    %v1867 = vpop.f32.mrb[0].mxu0
    %v1868 = vadd.f32 %v706, %v1867
    %v1869 = vpop.f32.mrb[0].mxu0
    %1870 = vmatprep.mubr.f32.mxu0 0.0
    %1871 = vmatmul.mubr.f32.gmra.mrb[0].mxu0 %v749
    %v1872 = vpop.f32.mrb[0].mxu0
    %v1873 = vadd.f32 %v711, %v1872
    %v1874 = vpop.f32.mrb[0].mxu0
    %1875 = vmatprep.mubr.f32.mxu0 0.0
    %1876 = vmatmul.mubr.f32.gmra.mrb[0].mxu0 %v752
    %v1877 = vpop.f32.mrb[0].mxu0
    %v1878 = vadd.f32 %v716, %v1877
    %v1879 = vpop.f32.mrb[0].mxu0
    %1880 = vdwg.mxu0
    %v1881 = vadd.f32 %v1698, %v1823
    %v1882 = vadd.f32 %v1703, %v1828
    %v1883 = vadd.f32 %v1708, %v1833
    %v1884 = vadd.f32 %v1713, %v1838
    %v1885 = vadd.f32 %v1718, %v1843
    %v1886 = vadd.f32 %v1723, %v1848
    %v1887 = vadd.f32 %v1728, %v1853
    %v1888 = vadd.f32 %v1733, %v1858
    %v1889 = vxor.u32 %v1881, 2147483648
    %v1890 = vxor.u32 %v1882, 2147483648
    %v1891 = vxor.u32 %v1883, 2147483648
    %v1892 = vxor.u32 %v1884, 2147483648
    %v1893 = vxor.u32 %v1885, 2147483648
    %v1894 = vxor.u32 %v1886, 2147483648
    %v1895 = vxor.u32 %v1887, 2147483648
    %v1896 = vxor.u32 %v1888, 2147483648
    %v1897 = vmul.f32 %v1889, 1.442695
    %v1898 = vpow.pop %v1897
    %v1899 = vmul.f32 %v1890, 1.442695
    %v1900 = vpow.pop %v1899
    %v1901 = vmul.f32 %v1891, 1.442695
    %v1902 = vpow.pop %v1901
    %v1903 = vmul.f32 %v1892, 1.442695
    %v1904 = vpow.pop %v1903
    %v1905 = vmul.f32 %v1893, 1.442695
    %v1906 = vpow.pop %v1905
    %v1907 = vmul.f32 %v1894, 1.442695
    %v1908 = vpow.pop %v1907
    %v1909 = vmul.f32 %v1895, 1.442695
    %v1910 = vpow.pop %v1909
    %v1911 = vmul.f32 %v1896, 1.442695
    %v1912 = vpow.pop %v1911
    %v1913 = vadd.f32 %v1898, 1.0
    %v1914 = vadd.f32 %v1900, 1.0
    %v1915 = vadd.f32 %v1902, 1.0
    %v1916 = vadd.f32 %v1904, 1.0
    %v1917 = vadd.f32 %v1906, 1.0
    %v1918 = vadd.f32 %v1908, 1.0
    %v1919 = vadd.f32 %v1910, 1.0
    %v1920 = vadd.f32 %v1912, 1.0
    %v1921 = vrcp.pop %v1913
    %v1922 = vmul.f32 1.0, %v1921
    %v1923 = vrcp.pop %v1914
    %v1924 = vmul.f32 1.0, %v1923
    %v1925 = vrcp.pop %v1915
    %v1926 = vmul.f32 1.0, %v1925
    %v1927 = vrcp.pop %v1916
    %v1928 = vmul.f32 1.0, %v1927
    %v1929 = vrcp.pop %v1917
    %v1930 = vmul.f32 1.0, %v1929
    %v1931 = vrcp.pop %v1918
    %v1932 = vmul.f32 1.0, %v1931
    %v1933 = vrcp.pop %v1919
    %v1934 = vmul.f32 1.0, %v1933
    %v1935 = vrcp.pop %v1920
    %v1936 = vmul.f32 1.0, %v1935
    %v1937 = vmul.f32 %v1922, %v1863
    %v1938 = vmul.f32 %v1924, %v1868
    %v1939 = vmul.f32 %v1926, %v1873
    %v1940 = vmul.f32 %v1928, %v1878
    %v1941 = vadd.f32 %v1738, %v1937
    %v1942 = vadd.f32 %v1743, %v1938
    %v1943 = vadd.f32 %v1748, %v1939
    %v1944 = vadd.f32 %v1753, %v1940
    %v1945 = vtanh.pop %v1941
    %v1946 = vtanh.pop %v1942
    %v1947 = vtanh.pop %v1943
    %v1948 = vtanh.pop %v1944
    %v1949 = vsub.f32 1.0, %v1930
    %v1950 = vsub.f32 1.0, %v1932
    %v1951 = vsub.f32 1.0, %v1934
    %v1952 = vsub.f32 1.0, %v1936
    %v1953 = vmul.f32 %v1949, %v1945
    %v1954 = vmul.f32 %v1950, %v1946
    %v1955 = vmul.f32 %v1951, %v1947
    %v1956 = vmul.f32 %v1952, %v1948
    %v1957 = vmul.f32 %v1930, %v1627
    %v1958 = vmul.f32 %v1932, %v1628
    %v1959 = vmul.f32 %v1934, %v1629
    %v1960 = vmul.f32 %v1936, %v1630
    %v1961 = vadd.f32 %v1953, %v1957
    %v1962 = vadd.f32 %v1954, %v1958
    %v1963 = vadd.f32 %v1955, %v1959
    %v1964 = vadd.f32 %v1956, %v1960
    %1965 = vmatprep.subr.mxu0 0.0
    %1966 = vmatpush1.msra.mxu0 %v428
    %1967 = vmatprep.subr.mxu0 0.0
    %1968 = vmatpush1.msra.mxu0 %v429
    %1969 = vmatprep.subr.mxu0 0.0
    %1970 = vmatpush1.msra.mxu0 %v430
    %1971 = vmatprep.subr.mxu0 0.0
    %1972 = vmatpush1.msra.mxu0 %v431
    %1973 = vmatprep.subr.mxu0 0.0
    %1974 = vmatpush1.msra.mxu0 0.0
    %1975 = vmatprep.subr.mxu0 0.0
    %1976 = vmatpush1.msra.mxu0 0.0
    %1977 = vmatprep.subr.mxu0 0.0
    %1978 = vmatpush1.msra.mxu0 0.0
    %1979 = vmatprep.subr.mxu0 0.0
    %1980 = vmatpush1.msra.mxu0 0.0
    %1981 = vmatprep.subr.mxu0 0.0
    %1982 = vmatpush1.msra.mxu0 0.0
    %1983 = vmatprep.subr.mxu0 0.0
    %1984 = vmatpush1.msra.mxu0 0.0
    %1985 = vmatprep.subr.mxu0 0.0
    %1986 = vmatpush1.msra.mxu0 0.0
    %1987 = vmatprep.subr.mxu0 0.0
    %1988 = vmatpush1.msra.mxu0 0.0
    %1989 = vmatprep.subr.mxu0 0.0
    %1990 = vmatpush1.msra.mxu0 0.0
    %1991 = vmatprep.subr.mxu0 0.0
    %1992 = vmatpush1.msra.mxu0 0.0
    %1993 = vmatprep.subr.mxu0 0.0
    %1994 = vmatpush1.msra.mxu0 0.0
    %1995 = vmatprep.subr.mxu0 0.0
    %1996 = vmatpush1.msra.mxu0 0.0
    %1997 = vmatprep.subr.mxu0 0.0
    %1998 = vmatpush1.msra.mxu0 0.0
    %1999 = vmatprep.subr.mxu0 0.0
    %2000 = vmatpush1.msra.mxu0 0.0
    %2001 = vmatprep.subr.mxu0 0.0
    %2002 = vmatpush1.msra.mxu0 0.0
    %2003 = vmatprep.subr.mxu0 0.0
    %2004 = vmatpush1.msra.mxu0 0.0
    %2005 = vmatprep.subr.mxu0 0.0
    %2006 = vmatpush1.msra.mxu0 0.0
    %2007 = vmatprep.subr.mxu0 0.0
    %2008 = vmatpush1.msra.mxu0 0.0
    %2009 = vmatprep.subr.mxu0 0.0
    %2010 = vmatpush1.msra.mxu0 0.0
    %2011 = vmatprep.subr.mxu0 0.0
    %2012 = vmatpush1.msra.mxu0 0.0
    %2013 = vmatprep.subr.mxu0 0.0
    %2014 = vmatpush1.msra.mxu0 0.0
    %2015 = vmatprep.subr.mxu0 0.0
    %2016 = vmatpush1.msra.mxu0 0.0
    %2017 = vmatprep.subr.mxu0 0.0
    %2018 = vmatpush1.msra.mxu0 0.0
    %2019 = vmatprep.subr.mxu0 0.0
    %2020 = vmatpush1.msra.mxu0 0.0
    %2021 = vmatprep.subr.mxu0 0.0
    %2022 = vmatpush1.msra.mxu0 0.0
    %2023 = vmatprep.subr.mxu0 0.0
    %2024 = vmatpush1.msra.mxu0 0.0
    %2025 = vmatprep.subr.mxu0 0.0
    %2026 = vmatpush1.msra.mxu0 0.0
    %2027 = vmatprep.subr.mxu0 0.0
    %2028 = vmatpush1.msra.mxu0 0.0
    %2029 = vmatprep.mubr.f32.mxu0 0.0
    %2030 = vmatmul.mubr.f32.gmra.mrb[0].mxu0 %v498
    %v2031 = vpop.f32.mrb[0].mxu0
    %v2032 = vadd.f32 %v439, %v2031
    %v2033 = vpop.f32.mrb[0].mxu0
    %2034 = vmatprep.mubr.f32.mxu0 0.0
    %2035 = vmatmul.mubr.f32.gmra.mrb[0].mxu0 %v501
    %v2036 = vpop.f32.mrb[0].mxu0
    %v2037 = vadd.f32 %v444, %v2036
    %v2038 = vpop.f32.mrb[0].mxu0
    %2039 = vmatprep.mubr.f32.mxu0 0.0
    %2040 = vmatmul.mubr.f32.gmra.mrb[0].mxu0 %v504
    %v2041 = vpop.f32.mrb[0].mxu0
    %v2042 = vadd.f32 %v449, %v2041
    %v2043 = vpop.f32.mrb[0].mxu0
    %2044 = vmatprep.mubr.f32.mxu0 0.0
    %2045 = vmatmul.mubr.f32.gmra.mrb[0].mxu0 %v507
    %v2046 = vpop.f32.mrb[0].mxu0
    %v2047 = vadd.f32 %v454, %v2046
    %v2048 = vpop.f32.mrb[0].mxu0
    %2049 = vmatprep.mubr.f32.mxu0 0.0
    %2050 = vmatmul.mubr.f32.gmra.mrb[0].mxu0 %v510
    %v2051 = vpop.f32.mrb[0].mxu0
    %v2052 = vadd.f32 %v459, %v2051
    %v2053 = vpop.f32.mrb[0].mxu0
    %2054 = vmatprep.mubr.f32.mxu0 0.0
    %2055 = vmatmul.mubr.f32.gmra.mrb[0].mxu0 %v513
    %v2056 = vpop.f32.mrb[0].mxu0
    %v2057 = vadd.f32 %v464, %v2056
    %v2058 = vpop.f32.mrb[0].mxu0
    %2059 = vmatprep.mubr.f32.mxu0 0.0
    %2060 = vmatmul.mubr.f32.gmra.mrb[0].mxu0 %v516
    %v2061 = vpop.f32.mrb[0].mxu0
    %v2062 = vadd.f32 %v469, %v2061
    %v2063 = vpop.f32.mrb[0].mxu0
    %2064 = vmatprep.mubr.f32.mxu0 0.0
    %2065 = vmatmul.mubr.f32.gmra.mrb[0].mxu0 %v519
    %v2066 = vpop.f32.mrb[0].mxu0
    %v2067 = vadd.f32 %v474, %v2066
    %v2068 = vpop.f32.mrb[0].mxu0
    %2069 = vmatprep.mubr.f32.mxu0 0.0
    %2070 = vmatmul.mubr.f32.gmra.mrb[0].mxu0 %v522
    %v2071 = vpop.f32.mrb[0].mxu0
    %v2072 = vadd.f32 %v479, %v2071
    %v2073 = vpop.f32.mrb[0].mxu0
    %2074 = vmatprep.mubr.f32.mxu0 0.0
    %2075 = vmatmul.mubr.f32.gmra.mrb[0].mxu0 %v525
    %v2076 = vpop.f32.mrb[0].mxu0
    %v2077 = vadd.f32 %v484, %v2076
    %v2078 = vpop.f32.mrb[0].mxu0
    %2079 = vmatprep.mubr.f32.mxu0 0.0
    %2080 = vmatmul.mubr.f32.gmra.mrb[0].mxu0 %v528
    %v2081 = vpop.f32.mrb[0].mxu0
    %v2082 = vadd.f32 %v489, %v2081
    %v2083 = vpop.f32.mrb[0].mxu0
    %2084 = vmatprep.mubr.f32.mxu0 0.0
    %2085 = vmatmul.mubr.f32.gmra.mrb[0].mxu0 %v531
    %v2086 = vpop.f32.mrb[0].mxu0
    %v2087 = vadd.f32 %v494, %v2086
    %v2088 = vpop.f32.mrb[0].mxu0
    %2089 = vdwg.mxu0
    %2090 = vmatprep.subr.mxu0 0.0
    %2091 = vmatpush1.msra.mxu0 %v1961
    %2092 = vmatprep.subr.mxu0 0.0
    %2093 = vmatpush1.msra.mxu0 %v1962
    %2094 = vmatprep.subr.mxu0 0.0
    %2095 = vmatpush1.msra.mxu0 %v1963
    %2096 = vmatprep.subr.mxu0 0.0
    %2097 = vmatpush1.msra.mxu0 %v1964
    %2098 = vmatprep.subr.mxu0 0.0
    %2099 = vmatpush1.msra.mxu0 0.0
    %2100 = vmatprep.subr.mxu0 0.0
    %2101 = vmatpush1.msra.mxu0 0.0
    %2102 = vmatprep.subr.mxu0 0.0
    %2103 = vmatpush1.msra.mxu0 0.0
    %2104 = vmatprep.subr.mxu0 0.0
    %2105 = vmatpush1.msra.mxu0 0.0
    %2106 = vmatprep.subr.mxu0 0.0
    %2107 = vmatpush1.msra.mxu0 0.0
    %2108 = vmatprep.subr.mxu0 0.0
    %2109 = vmatpush1.msra.mxu0 0.0
    %2110 = vmatprep.subr.mxu0 0.0
    %2111 = vmatpush1.msra.mxu0 0.0
    %2112 = vmatprep.subr.mxu0 0.0
    %2113 = vmatpush1.msra.mxu0 0.0
    %2114 = vmatprep.subr.mxu0 0.0
    %2115 = vmatpush1.msra.mxu0 0.0
    %2116 = vmatprep.subr.mxu0 0.0
    %2117 = vmatpush1.msra.mxu0 0.0
    %2118 = vmatprep.subr.mxu0 0.0
    %2119 = vmatpush1.msra.mxu0 0.0
    %2120 = vmatprep.subr.mxu0 0.0
    %2121 = vmatpush1.msra.mxu0 0.0
    %2122 = vmatprep.subr.mxu0 0.0
    %2123 = vmatpush1.msra.mxu0 0.0
    %2124 = vmatprep.subr.mxu0 0.0
    %2125 = vmatpush1.msra.mxu0 0.0
    %2126 = vmatprep.subr.mxu0 0.0
    %2127 = vmatpush1.msra.mxu0 0.0
    %2128 = vmatprep.subr.mxu0 0.0
    %2129 = vmatpush1.msra.mxu0 0.0
    %2130 = vmatprep.subr.mxu0 0.0
    %2131 = vmatpush1.msra.mxu0 0.0
    %2132 = vmatprep.subr.mxu0 0.0
    %2133 = vmatpush1.msra.mxu0 0.0
    %2134 = vmatprep.subr.mxu0 0.0
    %2135 = vmatpush1.msra.mxu0 0.0
    %2136 = vmatprep.subr.mxu0 0.0
    %2137 = vmatpush1.msra.mxu0 0.0
    %2138 = vmatprep.subr.mxu0 0.0
    %2139 = vmatpush1.msra.mxu0 0.0
    %2140 = vmatprep.subr.mxu0 0.0
    %2141 = vmatpush1.msra.mxu0 0.0
    %2142 = vmatprep.subr.mxu0 0.0
    %2143 = vmatpush1.msra.mxu0 0.0
    %2144 = vmatprep.subr.mxu0 0.0
    %2145 = vmatpush1.msra.mxu0 0.0
    %2146 = vmatprep.subr.mxu0 0.0
    %2147 = vmatpush1.msra.mxu0 0.0
    %2148 = vmatprep.subr.mxu0 0.0
    %2149 = vmatpush1.msra.mxu0 0.0
    %2150 = vmatprep.subr.mxu0 0.0
    %2151 = vmatpush1.msra.mxu0 0.0
    %2152 = vmatprep.subr.mxu0 0.0
    %2153 = vmatpush1.msra.mxu0 0.0
    %2154 = vmatprep.mubr.f32.mxu0 0.0
    %2155 = vmatmul.mubr.f32.gmra.mrb[0].mxu0 %v719
    %v2156 = vpop.f32.mrb[0].mxu0
    %v2157 = vadd.f32 %v661, %v2156
    %v2158 = vpop.f32.mrb[0].mxu0
    %2159 = vmatprep.mubr.f32.mxu0 0.0
    %2160 = vmatmul.mubr.f32.gmra.mrb[0].mxu0 %v722
    %v2161 = vpop.f32.mrb[0].mxu0
    %v2162 = vadd.f32 %v666, %v2161
    %v2163 = vpop.f32.mrb[0].mxu0
    %2164 = vmatprep.mubr.f32.mxu0 0.0
    %2165 = vmatmul.mubr.f32.gmra.mrb[0].mxu0 %v725
    %v2166 = vpop.f32.mrb[0].mxu0
    %v2167 = vadd.f32 %v671, %v2166
    %v2168 = vpop.f32.mrb[0].mxu0
    %2169 = vmatprep.mubr.f32.mxu0 0.0
    %2170 = vmatmul.mubr.f32.gmra.mrb[0].mxu0 %v728
    %v2171 = vpop.f32.mrb[0].mxu0
    %v2172 = vadd.f32 %v676, %v2171
    %v2173 = vpop.f32.mrb[0].mxu0
    %2174 = vmatprep.mubr.f32.mxu0 0.0
    %2175 = vmatmul.mubr.f32.gmra.mrb[0].mxu0 %v731
    %v2176 = vpop.f32.mrb[0].mxu0
    %v2177 = vadd.f32 %v681, %v2176
    %v2178 = vpop.f32.mrb[0].mxu0
    %2179 = vmatprep.mubr.f32.mxu0 0.0
    %2180 = vmatmul.mubr.f32.gmra.mrb[0].mxu0 %v734
    %v2181 = vpop.f32.mrb[0].mxu0
    %v2182 = vadd.f32 %v686, %v2181
    %v2183 = vpop.f32.mrb[0].mxu0
    %2184 = vmatprep.mubr.f32.mxu0 0.0
    %2185 = vmatmul.mubr.f32.gmra.mrb[0].mxu0 %v737
    %v2186 = vpop.f32.mrb[0].mxu0
    %v2187 = vadd.f32 %v691, %v2186
    %v2188 = vpop.f32.mrb[0].mxu0
    %2189 = vmatprep.mubr.f32.mxu0 0.0
    %2190 = vmatmul.mubr.f32.gmra.mrb[0].mxu0 %v740
    %v2191 = vpop.f32.mrb[0].mxu0
    %v2192 = vadd.f32 %v696, %v2191
    %v2193 = vpop.f32.mrb[0].mxu0
    %2194 = vmatprep.mubr.f32.mxu0 0.0
    %2195 = vmatmul.mubr.f32.gmra.mrb[0].mxu0 %v743
    %v2196 = vpop.f32.mrb[0].mxu0
    %v2197 = vadd.f32 %v701, %v2196
    %v2198 = vpop.f32.mrb[0].mxu0
    %2199 = vmatprep.mubr.f32.mxu0 0.0
    %2200 = vmatmul.mubr.f32.gmra.mrb[0].mxu0 %v746
    %v2201 = vpop.f32.mrb[0].mxu0
    %v2202 = vadd.f32 %v706, %v2201
    %v2203 = vpop.f32.mrb[0].mxu0
    %2204 = vmatprep.mubr.f32.mxu0 0.0
    %2205 = vmatmul.mubr.f32.gmra.mrb[0].mxu0 %v749
    %v2206 = vpop.f32.mrb[0].mxu0
    %v2207 = vadd.f32 %v711, %v2206
    %v2208 = vpop.f32.mrb[0].mxu0
    %2209 = vmatprep.mubr.f32.mxu0 0.0
    %2210 = vmatmul.mubr.f32.gmra.mrb[0].mxu0 %v752
    %v2211 = vpop.f32.mrb[0].mxu0
    %v2212 = vadd.f32 %v716, %v2211
    %v2213 = vpop.f32.mrb[0].mxu0
    %2214 = vdwg.mxu0
    %v2215 = vadd.f32 %v2032, %v2157
    %v2216 = vadd.f32 %v2037, %v2162
    %v2217 = vadd.f32 %v2042, %v2167
    %v2218 = vadd.f32 %v2047, %v2172
    %v2219 = vadd.f32 %v2052, %v2177
    %v2220 = vadd.f32 %v2057, %v2182
    %v2221 = vadd.f32 %v2062, %v2187
    %v2222 = vadd.f32 %v2067, %v2192
    %v2223 = vxor.u32 %v2215, 2147483648
    %v2224 = vxor.u32 %v2216, 2147483648
    %v2225 = vxor.u32 %v2217, 2147483648
    %v2226 = vxor.u32 %v2218, 2147483648
    %v2227 = vxor.u32 %v2219, 2147483648
    %v2228 = vxor.u32 %v2220, 2147483648
    %v2229 = vxor.u32 %v2221, 2147483648
    %v2230 = vxor.u32 %v2222, 2147483648
    %v2231 = vmul.f32 %v2223, 1.442695
    %v2232 = vpow.pop %v2231
    %v2233 = vmul.f32 %v2224, 1.442695
    %v2234 = vpow.pop %v2233
    %v2235 = vmul.f32 %v2225, 1.442695
    %v2236 = vpow.pop %v2235
    %v2237 = vmul.f32 %v2226, 1.442695
    %v2238 = vpow.pop %v2237
    %v2239 = vmul.f32 %v2227, 1.442695
    %v2240 = vpow.pop %v2239
    %v2241 = vmul.f32 %v2228, 1.442695
    %v2242 = vpow.pop %v2241
    %v2243 = vmul.f32 %v2229, 1.442695
    %v2244 = vpow.pop %v2243
    %v2245 = vmul.f32 %v2230, 1.442695
    %v2246 = vpow.pop %v2245
    %v2247 = vadd.f32 %v2232, 1.0
    %v2248 = vadd.f32 %v2234, 1.0
    %v2249 = vadd.f32 %v2236, 1.0
    %v2250 = vadd.f32 %v2238, 1.0
    %v2251 = vadd.f32 %v2240, 1.0
    %v2252 = vadd.f32 %v2242, 1.0
    %v2253 = vadd.f32 %v2244, 1.0
    %v2254 = vadd.f32 %v2246, 1.0
    %v2255 = vrcp.pop %v2247
    %v2256 = vmul.f32 1.0, %v2255
    %v2257 = vrcp.pop %v2248
    %v2258 = vmul.f32 1.0, %v2257
    %v2259 = vrcp.pop %v2249
    %v2260 = vmul.f32 1.0, %v2259
    %v2261 = vrcp.pop %v2250
    %v2262 = vmul.f32 1.0, %v2261
    %v2263 = vrcp.pop %v2251
    %v2264 = vmul.f32 1.0, %v2263
    %v2265 = vrcp.pop %v2252
    %v2266 = vmul.f32 1.0, %v2265
    %v2267 = vrcp.pop %v2253
    %v2268 = vmul.f32 1.0, %v2267
    %v2269 = vrcp.pop %v2254
    %v2270 = vmul.f32 1.0, %v2269
    %v2271 = vmul.f32 %v2256, %v2197
    %v2272 = vmul.f32 %v2258, %v2202
    %v2273 = vmul.f32 %v2260, %v2207
    %v2274 = vmul.f32 %v2262, %v2212
    %v2275 = vadd.f32 %v2072, %v2271
    %v2276 = vadd.f32 %v2077, %v2272
    %v2277 = vadd.f32 %v2082, %v2273
    %v2278 = vadd.f32 %v2087, %v2274
    %v2279 = vtanh.pop %v2275
    %v2280 = vtanh.pop %v2276
    %v2281 = vtanh.pop %v2277
    %v2282 = vtanh.pop %v2278
    %v2283 = vsub.f32 1.0, %v2264
    %v2284 = vsub.f32 1.0, %v2266
    %v2285 = vsub.f32 1.0, %v2268
    %v2286 = vsub.f32 1.0, %v2270
    %v2287 = vmul.f32 %v2283, %v2279
    %v2288 = vmul.f32 %v2284, %v2280
    %v2289 = vmul.f32 %v2285, %v2281
    %v2290 = vmul.f32 %v2286, %v2282
    %v2291 = vmul.f32 %v2264, %v1961
    %v2292 = vmul.f32 %v2266, %v1962
    %v2293 = vmul.f32 %v2268, %v1963
    %v2294 = vmul.f32 %v2270, %v1964
    %v2295 = vadd.f32 %v2287, %v2291
    %v2296 = vadd.f32 %v2288, %v2292
    %v2297 = vadd.f32 %v2289, %v2293
    %v2298 = vadd.f32 %v2290, %v2294
    %2299 = vmatprep.subr.mxu0 0.0
    %2300 = vmatpush1.msra.mxu0 %v432
    %2301 = vmatprep.subr.mxu0 0.0
    %2302 = vmatpush1.msra.mxu0 %v433
    %2303 = vmatprep.subr.mxu0 0.0
    %2304 = vmatpush1.msra.mxu0 %v434
    %2305 = vmatprep.subr.mxu0 0.0
    %2306 = vmatpush1.msra.mxu0 %v435
    %2307 = vmatprep.subr.mxu0 0.0
    %2308 = vmatpush1.msra.mxu0 0.0
    %2309 = vmatprep.subr.mxu0 0.0
    %2310 = vmatpush1.msra.mxu0 0.0
    %2311 = vmatprep.subr.mxu0 0.0
    %2312 = vmatpush1.msra.mxu0 0.0
    %2313 = vmatprep.subr.mxu0 0.0
    %2314 = vmatpush1.msra.mxu0 0.0
    %2315 = vmatprep.subr.mxu0 0.0
    %2316 = vmatpush1.msra.mxu0 0.0
    %2317 = vmatprep.subr.mxu0 0.0
    %2318 = vmatpush1.msra.mxu0 0.0
    %2319 = vmatprep.subr.mxu0 0.0
    %2320 = vmatpush1.msra.mxu0 0.0
    %2321 = vmatprep.subr.mxu0 0.0
    %2322 = vmatpush1.msra.mxu0 0.0
    %2323 = vmatprep.subr.mxu0 0.0
    %2324 = vmatpush1.msra.mxu0 0.0
    %2325 = vmatprep.subr.mxu0 0.0
    %2326 = vmatpush1.msra.mxu0 0.0
    %2327 = vmatprep.subr.mxu0 0.0
    %2328 = vmatpush1.msra.mxu0 0.0
    %2329 = vmatprep.subr.mxu0 0.0
    %2330 = vmatpush1.msra.mxu0 0.0
    %2331 = vmatprep.subr.mxu0 0.0
    %2332 = vmatpush1.msra.mxu0 0.0
    %2333 = vmatprep.subr.mxu0 0.0
    %2334 = vmatpush1.msra.mxu0 0.0
    %2335 = vmatprep.subr.mxu0 0.0
    %2336 = vmatpush1.msra.mxu0 0.0
    %2337 = vmatprep.subr.mxu0 0.0
    %2338 = vmatpush1.msra.mxu0 0.0
    %2339 = vmatprep.subr.mxu0 0.0
    %2340 = vmatpush1.msra.mxu0 0.0
    %2341 = vmatprep.subr.mxu0 0.0
    %2342 = vmatpush1.msra.mxu0 0.0
    %2343 = vmatprep.subr.mxu0 0.0
    %2344 = vmatpush1.msra.mxu0 0.0
    %2345 = vmatprep.subr.mxu0 0.0
    %2346 = vmatpush1.msra.mxu0 0.0
    %2347 = vmatprep.subr.mxu0 0.0
    %2348 = vmatpush1.msra.mxu0 0.0
    %2349 = vmatprep.subr.mxu0 0.0
    %2350 = vmatpush1.msra.mxu0 0.0
    %2351 = vmatprep.subr.mxu0 0.0
    %2352 = vmatpush1.msra.mxu0 0.0
    %2353 = vmatprep.subr.mxu0 0.0
    %2354 = vmatpush1.msra.mxu0 0.0
    %2355 = vmatprep.subr.mxu0 0.0
    %2356 = vmatpush1.msra.mxu0 0.0
    %2357 = vmatprep.subr.mxu0 0.0
    %2358 = vmatpush1.msra.mxu0 0.0
    %2359 = vmatprep.subr.mxu0 0.0
    %2360 = vmatpush1.msra.mxu0 0.0
    %2361 = vmatprep.subr.mxu0 0.0
    %2362 = vmatpush1.msra.mxu0 0.0
    %2363 = vmatprep.mubr.f32.mxu0 0.0
    %2364 = vmatmul.mubr.f32.gmra.mrb[0].mxu0 %v498
    %v2365 = vpop.f32.mrb[0].mxu0
    %v2366 = vadd.f32 %v439, %v2365
    %v2367 = vpop.f32.mrb[0].mxu0
    %2368 = vmatprep.mubr.f32.mxu0 0.0
    %2369 = vmatmul.mubr.f32.gmra.mrb[0].mxu0 %v501
    %v2370 = vpop.f32.mrb[0].mxu0
    %v2371 = vadd.f32 %v444, %v2370
    %v2372 = vpop.f32.mrb[0].mxu0
    %2373 = vmatprep.mubr.f32.mxu0 0.0
    %2374 = vmatmul.mubr.f32.gmra.mrb[0].mxu0 %v504
    %v2375 = vpop.f32.mrb[0].mxu0
    %v2376 = vadd.f32 %v449, %v2375
    %v2377 = vpop.f32.mrb[0].mxu0
    %2378 = vmatprep.mubr.f32.mxu0 0.0
    %2379 = vmatmul.mubr.f32.gmra.mrb[0].mxu0 %v507
    %v2380 = vpop.f32.mrb[0].mxu0
    %v2381 = vadd.f32 %v454, %v2380
    %v2382 = vpop.f32.mrb[0].mxu0
    %2383 = vmatprep.mubr.f32.mxu0 0.0
    %2384 = vmatmul.mubr.f32.gmra.mrb[0].mxu0 %v510
    %v2385 = vpop.f32.mrb[0].mxu0
    %v2386 = vadd.f32 %v459, %v2385
    %v2387 = vpop.f32.mrb[0].mxu0
    %2388 = vmatprep.mubr.f32.mxu0 0.0
    %2389 = vmatmul.mubr.f32.gmra.mrb[0].mxu0 %v513
    %v2390 = vpop.f32.mrb[0].mxu0
    %v2391 = vadd.f32 %v464, %v2390
    %v2392 = vpop.f32.mrb[0].mxu0
    %2393 = vmatprep.mubr.f32.mxu0 0.0
    %2394 = vmatmul.mubr.f32.gmra.mrb[0].mxu0 %v516
    %v2395 = vpop.f32.mrb[0].mxu0
    %v2396 = vadd.f32 %v469, %v2395
    %v2397 = vpop.f32.mrb[0].mxu0
    %2398 = vmatprep.mubr.f32.mxu0 0.0
    %2399 = vmatmul.mubr.f32.gmra.mrb[0].mxu0 %v519
    %v2400 = vpop.f32.mrb[0].mxu0
    %v2401 = vadd.f32 %v474, %v2400
    %v2402 = vpop.f32.mrb[0].mxu0
    %2403 = vmatprep.mubr.f32.mxu0 0.0
    %2404 = vmatmul.mubr.f32.gmra.mrb[0].mxu0 %v522
    %v2405 = vpop.f32.mrb[0].mxu0
    %v2406 = vadd.f32 %v479, %v2405
    %v2407 = vpop.f32.mrb[0].mxu0
    %2408 = vmatprep.mubr.f32.mxu0 0.0
    %2409 = vmatmul.mubr.f32.gmra.mrb[0].mxu0 %v525
    %v2410 = vpop.f32.mrb[0].mxu0
    %v2411 = vadd.f32 %v484, %v2410
    %v2412 = vpop.f32.mrb[0].mxu0
    %2413 = vmatprep.mubr.f32.mxu0 0.0
    %2414 = vmatmul.mubr.f32.gmra.mrb[0].mxu0 %v528
    %v2415 = vpop.f32.mrb[0].mxu0
    %v2416 = vadd.f32 %v489, %v2415
    %v2417 = vpop.f32.mrb[0].mxu0
    %2418 = vmatprep.mubr.f32.mxu0 0.0
    %2419 = vmatmul.mubr.f32.gmra.mrb[0].mxu0 %v531
    %v2420 = vpop.f32.mrb[0].mxu0
    %v2421 = vadd.f32 %v494, %v2420
    %v2422 = vpop.f32.mrb[0].mxu0
    %2423 = vdwg.mxu0
    %2424 = vmatprep.subr.mxu0 0.0
    %2425 = vmatpush1.msra.mxu0 %v2295
    %2426 = vmatprep.subr.mxu0 0.0
    %2427 = vmatpush1.msra.mxu0 %v2296
    %2428 = vmatprep.subr.mxu0 0.0
    %2429 = vmatpush1.msra.mxu0 %v2297
    %2430 = vmatprep.subr.mxu0 0.0
    %2431 = vmatpush1.msra.mxu0 %v2298
    %2432 = vmatprep.subr.mxu0 0.0
    %2433 = vmatpush1.msra.mxu0 0.0
    %2434 = vmatprep.subr.mxu0 0.0
    %2435 = vmatpush1.msra.mxu0 0.0
    %2436 = vmatprep.subr.mxu0 0.0
    %2437 = vmatpush1.msra.mxu0 0.0
    %2438 = vmatprep.subr.mxu0 0.0
    %2439 = vmatpush1.msra.mxu0 0.0
    %2440 = vmatprep.subr.mxu0 0.0
    %2441 = vmatpush1.msra.mxu0 0.0
    %2442 = vmatprep.subr.mxu0 0.0
    %2443 = vmatpush1.msra.mxu0 0.0
    %2444 = vmatprep.subr.mxu0 0.0
    %2445 = vmatpush1.msra.mxu0 0.0
    %2446 = vmatprep.subr.mxu0 0.0
    %2447 = vmatpush1.msra.mxu0 0.0
    %2448 = vmatprep.subr.mxu0 0.0
    %2449 = vmatpush1.msra.mxu0 0.0
    %2450 = vmatprep.subr.mxu0 0.0
    %2451 = vmatpush1.msra.mxu0 0.0
    %2452 = vmatprep.subr.mxu0 0.0
    %2453 = vmatpush1.msra.mxu0 0.0
    %2454 = vmatprep.subr.mxu0 0.0
    %2455 = vmatpush1.msra.mxu0 0.0
    %2456 = vmatprep.subr.mxu0 0.0
    %2457 = vmatpush1.msra.mxu0 0.0
    %2458 = vmatprep.subr.mxu0 0.0
    %2459 = vmatpush1.msra.mxu0 0.0
    %2460 = vmatprep.subr.mxu0 0.0
    %2461 = vmatpush1.msra.mxu0 0.0
    %2462 = vmatprep.subr.mxu0 0.0
    %2463 = vmatpush1.msra.mxu0 0.0
    %2464 = vmatprep.subr.mxu0 0.0
    %2465 = vmatpush1.msra.mxu0 0.0
    %2466 = vmatprep.subr.mxu0 0.0
    %2467 = vmatpush1.msra.mxu0 0.0
    %2468 = vmatprep.subr.mxu0 0.0
    %2469 = vmatpush1.msra.mxu0 0.0
    %2470 = vmatprep.subr.mxu0 0.0
    %2471 = vmatpush1.msra.mxu0 0.0
    %2472 = vmatprep.subr.mxu0 0.0
    %2473 = vmatpush1.msra.mxu0 0.0
    %2474 = vmatprep.subr.mxu0 0.0
    %2475 = vmatpush1.msra.mxu0 0.0
    %2476 = vmatprep.subr.mxu0 0.0
    %2477 = vmatpush1.msra.mxu0 0.0
    %2478 = vmatprep.subr.mxu0 0.0
    %2479 = vmatpush1.msra.mxu0 0.0
    %2480 = vmatprep.subr.mxu0 0.0
    %2481 = vmatpush1.msra.mxu0 0.0
    %2482 = vmatprep.subr.mxu0 0.0
    %2483 = vmatpush1.msra.mxu0 0.0
    %2484 = vmatprep.subr.mxu0 0.0
    %2485 = vmatpush1.msra.mxu0 0.0
    %2486 = vmatprep.subr.mxu0 0.0
    %2487 = vmatpush1.msra.mxu0 0.0
    %2488 = vmatprep.mubr.f32.mxu0 0.0
    %2489 = vmatmul.mubr.f32.gmra.mrb[0].mxu0 %v719
    %v2490 = vpop.f32.mrb[0].mxu0
    %v2491 = vadd.f32 %v661, %v2490
    %v2492 = vpop.f32.mrb[0].mxu0
    %2493 = vmatprep.mubr.f32.mxu0 0.0
    %2494 = vmatmul.mubr.f32.gmra.mrb[0].mxu0 %v722
    %v2495 = vpop.f32.mrb[0].mxu0
    %v2496 = vadd.f32 %v666, %v2495
    %v2497 = vpop.f32.mrb[0].mxu0
    %2498 = vmatprep.mubr.f32.mxu0 0.0
    %2499 = vmatmul.mubr.f32.gmra.mrb[0].mxu0 %v725
    %v2500 = vpop.f32.mrb[0].mxu0
    %v2501 = vadd.f32 %v671, %v2500
    %v2502 = vpop.f32.mrb[0].mxu0
    %2503 = vmatprep.mubr.f32.mxu0 0.0
    %2504 = vmatmul.mubr.f32.gmra.mrb[0].mxu0 %v728
    %v2505 = vpop.f32.mrb[0].mxu0
    %v2506 = vadd.f32 %v676, %v2505
    %v2507 = vpop.f32.mrb[0].mxu0
    %2508 = vmatprep.mubr.f32.mxu0 0.0
    %2509 = vmatmul.mubr.f32.gmra.mrb[0].mxu0 %v731
    %v2510 = vpop.f32.mrb[0].mxu0
    %v2511 = vadd.f32 %v681, %v2510
    %v2512 = vpop.f32.mrb[0].mxu0
    %2513 = vmatprep.mubr.f32.mxu0 0.0
    %2514 = vmatmul.mubr.f32.gmra.mrb[0].mxu0 %v734
    %v2515 = vpop.f32.mrb[0].mxu0
    %v2516 = vadd.f32 %v686, %v2515
    %v2517 = vpop.f32.mrb[0].mxu0
    %2518 = vmatprep.mubr.f32.mxu0 0.0
    %2519 = vmatmul.mubr.f32.gmra.mrb[0].mxu0 %v737
    %v2520 = vpop.f32.mrb[0].mxu0
    %v2521 = vadd.f32 %v691, %v2520
    %v2522 = vpop.f32.mrb[0].mxu0
    %2523 = vmatprep.mubr.f32.mxu0 0.0
    %2524 = vmatmul.mubr.f32.gmra.mrb[0].mxu0 %v740
    %v2525 = vpop.f32.mrb[0].mxu0
    %v2526 = vadd.f32 %v696, %v2525
    %v2527 = vpop.f32.mrb[0].mxu0
    %2528 = vmatprep.mubr.f32.mxu0 0.0
    %2529 = vmatmul.mubr.f32.gmra.mrb[0].mxu0 %v743
    %v2530 = vpop.f32.mrb[0].mxu0
    %v2531 = vadd.f32 %v701, %v2530
    %v2532 = vpop.f32.mrb[0].mxu0
    %2533 = vmatprep.mubr.f32.mxu0 0.0
    %2534 = vmatmul.mubr.f32.gmra.mrb[0].mxu0 %v746
    %v2535 = vpop.f32.mrb[0].mxu0
    %v2536 = vadd.f32 %v706, %v2535
    %v2537 = vpop.f32.mrb[0].mxu0
    %2538 = vmatprep.mubr.f32.mxu0 0.0
    %2539 = vmatmul.mubr.f32.gmra.mrb[0].mxu0 %v749
    %v2540 = vpop.f32.mrb[0].mxu0
    %v2541 = vadd.f32 %v711, %v2540
    %v2542 = vpop.f32.mrb[0].mxu0
    %2543 = vmatprep.mubr.f32.mxu0 0.0
    %2544 = vmatmul.mubr.f32.gmra.mrb[0].mxu0 %v752
    %v2545 = vpop.f32.mrb[0].mxu0
    %v2546 = vadd.f32 %v716, %v2545
    %v2547 = vpop.f32.mrb[0].mxu0
    %2548 = vdwg.mxu0
    %v2549 = vadd.f32 %v2366, %v2491
    %v2550 = vadd.f32 %v2371, %v2496
    %v2551 = vadd.f32 %v2376, %v2501
    %v2552 = vadd.f32 %v2381, %v2506
    %v2553 = vadd.f32 %v2386, %v2511
    %v2554 = vadd.f32 %v2391, %v2516
    %v2555 = vadd.f32 %v2396, %v2521
    %v2556 = vadd.f32 %v2401, %v2526
    %v2557 = vxor.u32 %v2549, 2147483648
    %v2558 = vxor.u32 %v2550, 2147483648
    %v2559 = vxor.u32 %v2551, 2147483648
    %v2560 = vxor.u32 %v2552, 2147483648
    %v2561 = vxor.u32 %v2553, 2147483648
    %v2562 = vxor.u32 %v2554, 2147483648
    %v2563 = vxor.u32 %v2555, 2147483648
    %v2564 = vxor.u32 %v2556, 2147483648
    %v2565 = vmul.f32 %v2557, 1.442695
    %v2566 = vpow.pop %v2565
    %v2567 = vmul.f32 %v2558, 1.442695
    %v2568 = vpow.pop %v2567
    %v2569 = vmul.f32 %v2559, 1.442695
    %v2570 = vpow.pop %v2569
    %v2571 = vmul.f32 %v2560, 1.442695
    %v2572 = vpow.pop %v2571
    %v2573 = vmul.f32 %v2561, 1.442695
    %v2574 = vpow.pop %v2573
    %v2575 = vmul.f32 %v2562, 1.442695
    %v2576 = vpow.pop %v2575
    %v2577 = vmul.f32 %v2563, 1.442695
    %v2578 = vpow.pop %v2577
    %v2579 = vmul.f32 %v2564, 1.442695
    %v2580 = vpow.pop %v2579
    %v2581 = vadd.f32 %v2566, 1.0
    %v2582 = vadd.f32 %v2568, 1.0
    %v2583 = vadd.f32 %v2570, 1.0
    %v2584 = vadd.f32 %v2572, 1.0
    %v2585 = vadd.f32 %v2574, 1.0
    %v2586 = vadd.f32 %v2576, 1.0
    %v2587 = vadd.f32 %v2578, 1.0
    %v2588 = vadd.f32 %v2580, 1.0
    %v2589 = vrcp.pop %v2581
    %v2590 = vmul.f32 1.0, %v2589
    %v2591 = vrcp.pop %v2582
    %v2592 = vmul.f32 1.0, %v2591
    %v2593 = vrcp.pop %v2583
    %v2594 = vmul.f32 1.0, %v2593
    %v2595 = vrcp.pop %v2584
    %v2596 = vmul.f32 1.0, %v2595
    %v2597 = vrcp.pop %v2585
    %v2598 = vmul.f32 1.0, %v2597
    %v2599 = vrcp.pop %v2586
    %v2600 = vmul.f32 1.0, %v2599
    %v2601 = vrcp.pop %v2587
    %v2602 = vmul.f32 1.0, %v2601
    %v2603 = vrcp.pop %v2588
    %v2604 = vmul.f32 1.0, %v2603
    %v2605 = vmul.f32 %v2590, %v2531
    %v2606 = vmul.f32 %v2592, %v2536
    %v2607 = vmul.f32 %v2594, %v2541
    %v2608 = vmul.f32 %v2596, %v2546
    %v2609 = vadd.f32 %v2406, %v2605
    %v2610 = vadd.f32 %v2411, %v2606
    %v2611 = vadd.f32 %v2416, %v2607
    %v2612 = vadd.f32 %v2421, %v2608
    %v2613 = vtanh.pop %v2609
    %v2614 = vtanh.pop %v2610
    %v2615 = vtanh.pop %v2611
    %v2616 = vtanh.pop %v2612
    %v2617 = vsub.f32 1.0, %v2598
    %v2618 = vsub.f32 1.0, %v2600
    %v2619 = vsub.f32 1.0, %v2602
    %v2620 = vsub.f32 1.0, %v2604
    %v2621 = vmul.f32 %v2617, %v2613
    %v2622 = vmul.f32 %v2618, %v2614
    %v2623 = vmul.f32 %v2619, %v2615
    %v2624 = vmul.f32 %v2620, %v2616
    %v2625 = vmul.f32 %v2598, %v2295
    %v2626 = vmul.f32 %v2600, %v2296
    %v2627 = vmul.f32 %v2602, %v2297
    %v2628 = vmul.f32 %v2604, %v2298
    %v2629 = vadd.f32 %v2621, %v2625
    %v2630 = vadd.f32 %v2622, %v2626
    %v2631 = vadd.f32 %v2623, %v2627
    %v2632 = vadd.f32 %v2624, %v2628
    %v2633 = vadd.f32 %v2629, %v2630
    %v2634 = vadd.f32 %v2633, %v2631
    %v2635 = vadd.f32 %v2634, %v2632
    %v2636 = vrot.slane %v2635, 4
    %v2637 = vadd.f32 %v2635, %v2636
    %v2638 = vrot.slane %v2637, 2
    %v2639 = vadd.f32 %v2637, %v2638
    %v2640 = vrot.slane %v2639, 1
    %v2641 = vadd.f32 %v2639, %v2640
    %v2642 = vmul.f32 %v2641, %v179
    %v2643 = vmul.f32 %v2629, %v2629
    %v2644 = vmul.f32 %v2630, %v2630
    %v2645 = vmul.f32 %v2631, %v2631
    %v2646 = vmul.f32 %v2632, %v2632
    %v2647 = vadd.f32 %v2643, %v2644
    %v2648 = vadd.f32 %v2647, %v2645
    %v2649 = vadd.f32 %v2648, %v2646
    %v2650 = vrot.slane %v2649, 4
    %v2651 = vadd.f32 %v2649, %v2650
    %v2652 = vrot.slane %v2651, 2
    %v2653 = vadd.f32 %v2651, %v2652
    %v2654 = vrot.slane %v2653, 1
    %v2655 = vadd.f32 %v2653, %v2654
    %v2656 = vmul.f32 %v2655, %v179
    %v2657 = vmul.f32 %v2642, %v2642
    %v2658 = vsub.f32 %v2656, %v2657
    %v2659 = vmax.f32 %v2658, 0.0
    %v2660 = vsub.f32 %v2629, %v2642
    %v2661 = vsub.f32 %v2630, %v2642
    %v2662 = vsub.f32 %v2631, %v2642
    %v2663 = vsub.f32 %v2632, %v2642
    %v2664 = vadd.f32 %v2659, 1e-05
    %v2665 = vrsqrt.pop %v2664
    %v2666 = vmul.f32 %v2665, %v327
    %v2667 = vmul.f32 %v2665, %v332
    %v2668 = vmul.f32 %v2665, %v337
    %v2669 = vmul.f32 %v2665, %v342
    %v2670 = vmul.f32 %v2660, %v2666
    %v2671 = vmul.f32 %v2661, %v2667
    %v2672 = vmul.f32 %v2662, %v2668
    %v2673 = vmul.f32 %v2663, %v2669
    %v2674 = vadd.f32 %v2670, %v395
    %v2675 = vadd.f32 %v2671, %v400
    %v2676 = vadd.f32 %v2672, %v405
    %v2677 = vadd.f32 %v2673, %v410
    %2679 = vset.pattern.permute.xlu0 0
    %2680 = vperm.xlu0 %2679, %v53
    %v2681 = vpop.permute.xlu0 %2680
    %2684 = vset.pattern.permute.xlu0 0
    %2685 = vperm.xlu0 %2684, %v54
    %v2686 = vpop.permute.xlu0 %2685
    %2689 = vset.pattern.permute.xlu0 0
    %2690 = vperm.xlu0 %2689, %v55
    %v2691 = vpop.permute.xlu0 %2690
    %2694 = vset.pattern.permute.xlu0 0
    %2695 = vperm.xlu0 %2694, %v56
    %v2696 = vpop.permute.xlu0 %2695
    %2699 = vset.pattern.permute.xlu0 0
    %2700 = vperm.xlu0 %2699, %v57
    %v2701 = vpop.permute.xlu0 %2700
    %2704 = vset.pattern.permute.xlu0 0
    %2705 = vperm.xlu0 %2704, %v58
    %v2706 = vpop.permute.xlu0 %2705
    %2709 = vset.pattern.permute.xlu0 0
    %2710 = vperm.xlu0 %2709, %v59
    %v2711 = vpop.permute.xlu0 %2710
    %2714 = vset.pattern.permute.xlu0 0
    %2715 = vperm.xlu0 %2714, %v60
    %v2716 = vpop.permute.xlu0 %2715
    %v2719 = vsel %vm496, %v89, 0
    %v2722 = vsel %vm496, %v90, 0
    %v2725 = vsel %vm496, %v91, 0
    %v2728 = vsel %vm496, %v92, 0
    %v2731 = vsel %vm496, %v93, 0
    %v2734 = vsel %vm496, %v94, 0
    %v2737 = vsel %vm496, %v95, 0
    %v2740 = vsel %vm496, %v96, 0
    %2742 = vmatprep.subr.mxu0 0.0
    %2743 = vmatpush1.msra.mxu0 %v2674
    %2744 = vmatprep.subr.mxu0 0.0
    %2745 = vmatpush1.msra.mxu0 %v2675
    %2746 = vmatprep.subr.mxu0 0.0
    %2747 = vmatpush1.msra.mxu0 %v2676
    %2748 = vmatprep.subr.mxu0 0.0
    %2749 = vmatpush1.msra.mxu0 %v2677
    %2750 = vmatprep.subr.mxu0 0.0
    %2751 = vmatpush1.msra.mxu0 0.0
    %2752 = vmatprep.subr.mxu0 0.0
    %2753 = vmatpush1.msra.mxu0 0.0
    %2754 = vmatprep.subr.mxu0 0.0
    %2755 = vmatpush1.msra.mxu0 0.0
    %2756 = vmatprep.subr.mxu0 0.0
    %2757 = vmatpush1.msra.mxu0 0.0
    %2758 = vmatprep.subr.mxu0 0.0
    %2759 = vmatpush1.msra.mxu0 0.0
    %2760 = vmatprep.subr.mxu0 0.0
    %2761 = vmatpush1.msra.mxu0 0.0
    %2762 = vmatprep.subr.mxu0 0.0
    %2763 = vmatpush1.msra.mxu0 0.0
    %2764 = vmatprep.subr.mxu0 0.0
    %2765 = vmatpush1.msra.mxu0 0.0
    %2766 = vmatprep.subr.mxu0 0.0
    %2767 = vmatpush1.msra.mxu0 0.0
    %2768 = vmatprep.subr.mxu0 0.0
    %2769 = vmatpush1.msra.mxu0 0.0
    %2770 = vmatprep.subr.mxu0 0.0
    %2771 = vmatpush1.msra.mxu0 0.0
    %2772 = vmatprep.subr.mxu0 0.0
    %2773 = vmatpush1.msra.mxu0 0.0
    %2774 = vmatprep.subr.mxu0 0.0
    %2775 = vmatpush1.msra.mxu0 0.0
    %2776 = vmatprep.subr.mxu0 0.0
    %2777 = vmatpush1.msra.mxu0 0.0
    %2778 = vmatprep.subr.mxu0 0.0
    %2779 = vmatpush1.msra.mxu0 0.0
    %2780 = vmatprep.subr.mxu0 0.0
    %2781 = vmatpush1.msra.mxu0 0.0
    %2782 = vmatprep.subr.mxu0 0.0
    %2783 = vmatpush1.msra.mxu0 0.0
    %2784 = vmatprep.subr.mxu0 0.0
    %2785 = vmatpush1.msra.mxu0 0.0
    %2786 = vmatprep.subr.mxu0 0.0
    %2787 = vmatpush1.msra.mxu0 0.0
    %2788 = vmatprep.subr.mxu0 0.0
    %2789 = vmatpush1.msra.mxu0 0.0
    %2790 = vmatprep.subr.mxu0 0.0
    %2791 = vmatpush1.msra.mxu0 0.0
    %2792 = vmatprep.subr.mxu0 0.0
    %2793 = vmatpush1.msra.mxu0 0.0
    %2794 = vmatprep.subr.mxu0 0.0
    %2795 = vmatpush1.msra.mxu0 0.0
    %2796 = vmatprep.subr.mxu0 0.0
    %2797 = vmatpush1.msra.mxu0 0.0
    %2798 = vmatprep.subr.mxu0 0.0
    %2799 = vmatpush1.msra.mxu0 0.0
    %2800 = vmatprep.subr.mxu0 0.0
    %2801 = vmatpush1.msra.mxu0 0.0
    %2802 = vmatprep.subr.mxu0 0.0
    %2803 = vmatpush1.msra.mxu0 0.0
    %2804 = vmatprep.subr.mxu0 0.0
    %2805 = vmatpush1.msra.mxu0 0.0
    %2806 = vmatprep.mubr.f32.mxu0 0.0
    %2807 = vmatmul.mubr.f32.gmra.mrb[0].mxu0 %v2719
    %v2808 = vpop.f32.mrb[0].mxu0
    %v2809 = vadd.f32 %v2681, %v2808
    %v2810 = vpop.f32.mrb[0].mxu0
    %2811 = vmatprep.mubr.f32.mxu0 0.0
    %2812 = vmatmul.mubr.f32.gmra.mrb[0].mxu0 %v2722
    %v2813 = vpop.f32.mrb[0].mxu0
    %v2814 = vadd.f32 %v2686, %v2813
    %v2815 = vpop.f32.mrb[0].mxu0
    %2816 = vmatprep.mubr.f32.mxu0 0.0
    %2817 = vmatmul.mubr.f32.gmra.mrb[0].mxu0 %v2725
    %v2818 = vpop.f32.mrb[0].mxu0
    %v2819 = vadd.f32 %v2691, %v2818
    %v2820 = vpop.f32.mrb[0].mxu0
    %2821 = vmatprep.mubr.f32.mxu0 0.0
    %2822 = vmatmul.mubr.f32.gmra.mrb[0].mxu0 %v2728
    %v2823 = vpop.f32.mrb[0].mxu0
    %v2824 = vadd.f32 %v2696, %v2823
    %v2825 = vpop.f32.mrb[0].mxu0
    %2826 = vmatprep.mubr.f32.mxu0 0.0
    %2827 = vmatmul.mubr.f32.gmra.mrb[0].mxu0 %v2731
    %v2828 = vpop.f32.mrb[0].mxu0
    %v2829 = vadd.f32 %v2701, %v2828
    %v2830 = vpop.f32.mrb[0].mxu0
    %2831 = vmatprep.mubr.f32.mxu0 0.0
    %2832 = vmatmul.mubr.f32.gmra.mrb[0].mxu0 %v2734
    %v2833 = vpop.f32.mrb[0].mxu0
    %v2834 = vadd.f32 %v2706, %v2833
    %v2835 = vpop.f32.mrb[0].mxu0
    %2836 = vmatprep.mubr.f32.mxu0 0.0
    %2837 = vmatmul.mubr.f32.gmra.mrb[0].mxu0 %v2737
    %v2838 = vpop.f32.mrb[0].mxu0
    %v2839 = vadd.f32 %v2711, %v2838
    %v2840 = vpop.f32.mrb[0].mxu0
    %2841 = vmatprep.mubr.f32.mxu0 0.0
    %2842 = vmatmul.mubr.f32.gmra.mrb[0].mxu0 %v2740
    %v2843 = vpop.f32.mrb[0].mxu0
    %v2844 = vadd.f32 %v2716, %v2843
    %v2845 = vpop.f32.mrb[0].mxu0
    %2846 = vdwg.mxu0
    %v2847 = vmax.f32 %v2809, 0.0
    %v2848 = vmax.f32 %v2814, 0.0
    %v2849 = vmax.f32 %v2819, 0.0
    %v2850 = vmax.f32 %v2824, 0.0
    %v2851 = vmax.f32 %v2829, 0.0
    %v2852 = vmax.f32 %v2834, 0.0
    %v2853 = vmax.f32 %v2839, 0.0
    %v2854 = vmax.f32 %v2844, 0.0
    %2856 = vset.pattern.permute.xlu0 0
    %2857 = vperm.xlu0 %2856, %v61
    %v2858 = vpop.permute.xlu0 %2857
    %2861 = vset.pattern.permute.xlu0 0
    %2862 = vperm.xlu0 %2861, %v62
    %v2863 = vpop.permute.xlu0 %2862
    %2866 = vset.pattern.permute.xlu0 0
    %2867 = vperm.xlu0 %2866, %v63
    %v2868 = vpop.permute.xlu0 %2867
    %vm2870 = vcmask 523264
    %v2872 = vsel %vm2870, %v97, 0
    %v2875 = vsel %vm2870, %v98, 0
    %v2878 = vsel %vm2870, %v99, 0
    %2880 = vmatprep.subr.mxu0 0.0
    %2881 = vmatpush1.msra.mxu0 %v2847
    %2882 = vmatprep.subr.mxu0 0.0
    %2883 = vmatpush1.msra.mxu0 %v2848
    %2884 = vmatprep.subr.mxu0 0.0
    %2885 = vmatpush1.msra.mxu0 %v2849
    %2886 = vmatprep.subr.mxu0 0.0
    %2887 = vmatpush1.msra.mxu0 %v2850
    %2888 = vmatprep.subr.mxu0 0.0
    %2889 = vmatpush1.msra.mxu0 %v2851
    %2890 = vmatprep.subr.mxu0 0.0
    %2891 = vmatpush1.msra.mxu0 %v2852
    %2892 = vmatprep.subr.mxu0 0.0
    %2893 = vmatpush1.msra.mxu0 %v2853
    %2894 = vmatprep.subr.mxu0 0.0
    %2895 = vmatpush1.msra.mxu0 %v2854
    %2896 = vmatprep.subr.mxu0 0.0
    %2897 = vmatpush1.msra.mxu0 0.0
    %2898 = vmatprep.subr.mxu0 0.0
    %2899 = vmatpush1.msra.mxu0 0.0
    %2900 = vmatprep.subr.mxu0 0.0
    %2901 = vmatpush1.msra.mxu0 0.0
    %2902 = vmatprep.subr.mxu0 0.0
    %2903 = vmatpush1.msra.mxu0 0.0
    %2904 = vmatprep.subr.mxu0 0.0
    %2905 = vmatpush1.msra.mxu0 0.0
    %2906 = vmatprep.subr.mxu0 0.0
    %2907 = vmatpush1.msra.mxu0 0.0
    %2908 = vmatprep.subr.mxu0 0.0
    %2909 = vmatpush1.msra.mxu0 0.0
    %2910 = vmatprep.subr.mxu0 0.0
    %2911 = vmatpush1.msra.mxu0 0.0
    %2912 = vmatprep.subr.mxu0 0.0
    %2913 = vmatpush1.msra.mxu0 0.0
    %2914 = vmatprep.subr.mxu0 0.0
    %2915 = vmatpush1.msra.mxu0 0.0
    %2916 = vmatprep.subr.mxu0 0.0
    %2917 = vmatpush1.msra.mxu0 0.0
    %2918 = vmatprep.subr.mxu0 0.0
    %2919 = vmatpush1.msra.mxu0 0.0
    %2920 = vmatprep.subr.mxu0 0.0
    %2921 = vmatpush1.msra.mxu0 0.0
    %2922 = vmatprep.subr.mxu0 0.0
    %2923 = vmatpush1.msra.mxu0 0.0
    %2924 = vmatprep.subr.mxu0 0.0
    %2925 = vmatpush1.msra.mxu0 0.0
    %2926 = vmatprep.subr.mxu0 0.0
    %2927 = vmatpush1.msra.mxu0 0.0
    %2928 = vmatprep.subr.mxu0 0.0
    %2929 = vmatpush1.msra.mxu0 0.0
    %2930 = vmatprep.subr.mxu0 0.0
    %2931 = vmatpush1.msra.mxu0 0.0
    %2932 = vmatprep.subr.mxu0 0.0
    %2933 = vmatpush1.msra.mxu0 0.0
    %2934 = vmatprep.subr.mxu0 0.0
    %2935 = vmatpush1.msra.mxu0 0.0
    %2936 = vmatprep.subr.mxu0 0.0
    %2937 = vmatpush1.msra.mxu0 0.0
    %2938 = vmatprep.subr.mxu0 0.0
    %2939 = vmatpush1.msra.mxu0 0.0
    %2940 = vmatprep.subr.mxu0 0.0
    %2941 = vmatpush1.msra.mxu0 0.0
    %2942 = vmatprep.subr.mxu0 0.0
    %2943 = vmatpush1.msra.mxu0 0.0
    %2944 = vmatprep.mubr.f32.mxu0 0.0
    %2945 = vmatmul.mubr.f32.gmra.mrb[0].mxu0 %v2872
    %v2946 = vpop.f32.mrb[0].mxu0
    %v2947 = vadd.f32 %v2858, %v2946
    %v2948 = vpop.f32.mrb[0].mxu0
    %2949 = vmatprep.mubr.f32.mxu0 0.0
    %2950 = vmatmul.mubr.f32.gmra.mrb[0].mxu0 %v2875
    %v2951 = vpop.f32.mrb[0].mxu0
    %v2952 = vadd.f32 %v2863, %v2951
    %v2953 = vpop.f32.mrb[0].mxu0
    %2954 = vmatprep.mubr.f32.mxu0 0.0
    %2955 = vmatmul.mubr.f32.gmra.mrb[0].mxu0 %v2878
    %v2956 = vpop.f32.mrb[0].mxu0
    %v2957 = vadd.f32 %v2868, %v2956
    %v2958 = vpop.f32.mrb[0].mxu0
    %2959 = vdwg.mxu0
    %v2960 = vmax.f32 %v2947, 0.0
    %v2961 = vmax.f32 %v2952, 0.0
    %v2962 = vmax.f32 %v2957, 0.0
    %2964 = vset.pattern.permute.xlu0 0
    %2965 = vperm.xlu0 %2964, %v64
    %v2966 = vpop.permute.xlu0 %2965
    %vm2968 = vcmask 195584
    %v2970 = vsel %vm2968, %v100, 0
    %2972 = vmatprep.subr.mxu0 0.0
    %2973 = vmatpush1.msra.mxu0 %v2960
    %2974 = vmatprep.subr.mxu0 0.0
    %2975 = vmatpush1.msra.mxu0 %v2961
    %2976 = vmatprep.subr.mxu0 0.0
    %2977 = vmatpush1.msra.mxu0 %v2962
    %2978 = vmatprep.subr.mxu0 0.0
    %2979 = vmatpush1.msra.mxu0 0.0
    %2980 = vmatprep.subr.mxu0 0.0
    %2981 = vmatpush1.msra.mxu0 0.0
    %2982 = vmatprep.subr.mxu0 0.0
    %2983 = vmatpush1.msra.mxu0 0.0
    %2984 = vmatprep.subr.mxu0 0.0
    %2985 = vmatpush1.msra.mxu0 0.0
    %2986 = vmatprep.subr.mxu0 0.0
    %2987 = vmatpush1.msra.mxu0 0.0
    %2988 = vmatprep.subr.mxu0 0.0
    %2989 = vmatpush1.msra.mxu0 0.0
    %2990 = vmatprep.subr.mxu0 0.0
    %2991 = vmatpush1.msra.mxu0 0.0
    %2992 = vmatprep.subr.mxu0 0.0
    %2993 = vmatpush1.msra.mxu0 0.0
    %2994 = vmatprep.subr.mxu0 0.0
    %2995 = vmatpush1.msra.mxu0 0.0
    %2996 = vmatprep.subr.mxu0 0.0
    %2997 = vmatpush1.msra.mxu0 0.0
    %2998 = vmatprep.subr.mxu0 0.0
    %2999 = vmatpush1.msra.mxu0 0.0
    %3000 = vmatprep.subr.mxu0 0.0
    %3001 = vmatpush1.msra.mxu0 0.0
    %3002 = vmatprep.subr.mxu0 0.0
    %3003 = vmatpush1.msra.mxu0 0.0
    %3004 = vmatprep.subr.mxu0 0.0
    %3005 = vmatpush1.msra.mxu0 0.0
    %3006 = vmatprep.subr.mxu0 0.0
    %3007 = vmatpush1.msra.mxu0 0.0
    %3008 = vmatprep.subr.mxu0 0.0
    %3009 = vmatpush1.msra.mxu0 0.0
    %3010 = vmatprep.subr.mxu0 0.0
    %3011 = vmatpush1.msra.mxu0 0.0
    %3012 = vmatprep.subr.mxu0 0.0
    %3013 = vmatpush1.msra.mxu0 0.0
    %3014 = vmatprep.subr.mxu0 0.0
    %3015 = vmatpush1.msra.mxu0 0.0
    %3016 = vmatprep.subr.mxu0 0.0
    %3017 = vmatpush1.msra.mxu0 0.0
    %3018 = vmatprep.subr.mxu0 0.0
    %3019 = vmatpush1.msra.mxu0 0.0
    %3020 = vmatprep.subr.mxu0 0.0
    %3021 = vmatpush1.msra.mxu0 0.0
    %3022 = vmatprep.subr.mxu0 0.0
    %3023 = vmatpush1.msra.mxu0 0.0
    %3024 = vmatprep.subr.mxu0 0.0
    %3025 = vmatpush1.msra.mxu0 0.0
    %3026 = vmatprep.subr.mxu0 0.0
    %3027 = vmatpush1.msra.mxu0 0.0
    %3028 = vmatprep.subr.mxu0 0.0
    %3029 = vmatpush1.msra.mxu0 0.0
    %3030 = vmatprep.subr.mxu0 0.0
    %3031 = vmatpush1.msra.mxu0 0.0
    %3032 = vmatprep.subr.mxu0 0.0
    %3033 = vmatpush1.msra.mxu0 0.0
    %3034 = vmatprep.subr.mxu0 0.0
    %3035 = vmatpush1.msra.mxu0 0.0
    %3036 = vmatprep.mubr.f32.mxu0 0.0
    %3037 = vmatmul.mubr.f32.gmra.mrb[0].mxu0 %v2970
    %v3038 = vpop.f32.mrb[0].mxu0
    %v3039 = vadd.f32 %v2966, %v3038
    %v3040 = vpop.f32.mrb[0].mxu0
    %3041 = vdwg.mxu0
    %v3042 = vlaneseq
    %v3043 = vshrl.u32 %v3042, 7
    %v3044 = vmax.f32 %v3039, -4.0
    %v3045 = vmin.f32 %v3044, 4.0
    %v3046 = vmax.f32 %v3039, 0.0
    %v3047 = vadd.f32 %v3046, 0.2
    %v3048 = vmax.f32 %v3047, 0.2
    %v3049 = vmin.f32 %v3048, 4.0
    %vm3050 = vcmp.eq.s32.totalorder %v3043, 2
    %v3051 = vsel %vm3050, %v3049, %v3045
    %3052 = vst [vmem:[#allocation2] sm:$0xff] %v3051
    // Predicated region
    $region22: #{tpu_custom_call.1} parent=1 // pred_check
      _
    $region23: #{tpu_custom_call.1} parent=1 // pred_check_branch
      %3054 = sbr.rel (0) target = $region25
    $region24: #{tpu_custom_call.1} parent=1 // pred_region
      %s3056 = ssub.s32 128, 128
      %3057 = vsyncadd [#allocation3], %s3056
      %s3059 = sshll.u32 [#allocation2], 4
      %s3060 = int_to_ptr.vmem [resolvable:$true] %s3059
      %3062 = dma.vmem_to_hbm [thread:$0]  %s3060, 128, %s5, [#allocation3]
    $region25: #{tpu_custom_call.1} parent=1 // pred_fallthru
      _
    // Predicated region
    $region26: #{tpu_custom_call.1} parent=1 // pred_check
      _
    $region27: #{tpu_custom_call.1} parent=1 // pred_check_branch
      %3064 = sbr.rel (0) target = $region29
    $region28: #{tpu_custom_call.1} parent=1 // pred_region
      %3065 = dma.done [#allocation3], 128
    $region29: #{tpu_custom_call.1} parent=1 // pred_fallthru
      _
    %3066 = vsyncpa [#allocation3], 1

</llo_original>
